<compile_context>
chip_gen: v5e
topology: v5e:2x2
jax: 0.10.0
libtpu: 0.0.40
codegen_flags: <defaults>
</compile_context>

<pallas_src>
import math
import functools

import jax
import jax.numpy as jnp
from jax import lax
from jax.experimental import pallas as pl
from jax.experimental.pallas import tpu as pltpu

_LN_EPS = 1e-5
_NEG_INF = -1e9          # additive mask value that stays finite if logits touch bf16


def _round_up(x, m):
    return (x + m - 1) // m * m


@functools.lru_cache(maxsize=None)
def _vmem_limit_bytes():
    """VMEM budget from the actual chip: ~3/4 of physical, capped at 112 MiB.
    -> ~96-112 MiB on v5e/v6e (128 MiB physical), ~48 MiB on v7x (64 MiB physical)."""
    try:
        phys = int(pltpu.get_tpu_info().vmem_capacity_bytes)
    except Exception:
        phys = 64 * 1024 * 1024
    return int(min(phys * 3 // 4, 112 * 1024 * 1024))


def _cparams(n_axes):
    return pltpu.CompilerParams(
        dimension_semantics=("parallel",) * n_axes,
        vmem_limit_bytes=_vmem_limit_bytes())


def _row_tile(M, pref=512):
    """Largest row tile <= pref that divides M exactly (keeps (M,D)<->(B,T,D) reshapes
    free and avoids any per-call padding). Prefers bf16-native 16-row multiples."""
    if M <= pref:
        return M
    for tm in range(pref - pref % 16, 15, -16):
        if M % tm == 0:
            return tm
    for tm in range(pref - pref % 8, 7, -8):
        if M % tm == 0:
            return tm
    return M


def _layernorm(x, g, b):
    mu = jnp.mean(x, axis=-1, keepdims=True)
    xc = x - mu
    var = jnp.mean(xc * xc, axis=-1, keepdims=True)
    return xc * lax.rsqrt(var + _LN_EPS) * g + b


# ----------------------------- Pallas kernels ------------------------------

def _make_ffn_kernel(final_ln):
    """LayerNorm -> W1 -> SiLU -> W2 -> x + 0.5*y  (-> optional final LayerNorm). bf16 I/O."""
    def kernel(x_ref, g_ref, b_ref, w1_ref, b1_ref, w2_ref, b2_ref, *rest):
        if final_ln:
            fg_ref, fb_ref, o_ref = rest
        else:
            (o_ref,) = rest
        x = x_ref[...].astype(jnp.float32)
        h = _layernorm(x, g_ref[...], b_ref[...])
        h = jnp.dot(h.astype(jnp.bfloat16), w1_ref[...],
                    preferred_element_type=jnp.float32) + b1_ref[...]
        h = h * jax.nn.sigmoid(h)                                   # SiLU
        y = jnp.dot(h.astype(jnp.bfloat16), w2_ref[...],
                    preferred_element_type=jnp.float32) + b2_ref[...]
        y = x + 0.5 * y                                             # fused residual
        if final_ln:
            y = _layernorm(y, fg_ref[...], fb_ref[...])
        o_ref[...] = y.astype(o_ref.dtype)
    return kernel


def _mhsa_kernel(x_ref, m_ref, g_ref, b_ref, wqkv_ref, bqkv_ref, wo_ref, bo_ref,
                 o_ref, *, H, dh, scale):
    """Fused MHSA sub-block for one batch element:
       LN -> fused QKV -> per-head attention accumulated into out-proj -> +residual."""
    x = x_ref[0].astype(jnp.float32)                    # (T, D)
    mask = m_ref[0]                                     # (1, T) additive, f32
    h = _layernorm(x, g_ref[...], b_ref[...])
    qkv = jnp.dot(h.astype(jnp.bfloat16), wqkv_ref[...],
                  preferred_element_type=jnp.float32) + bqkv_ref[...]   # (T, 3D)
    D = H * dh
    acc = jnp.zeros((x.shape[0], D), jnp.float32)       # out-proj accumulator
    for hd in range(H):                                 # static unroll; no concat, no k.T
        q = qkv[:, hd * dh:(hd + 1) * dh].astype(jnp.bfloat16)
        k = qkv[:, D + hd * dh:D + (hd + 1) * dh].astype(jnp.bfloat16)
        v = qkv[:, 2 * D + hd * dh:2 * D + (hd + 1) * dh].astype(jnp.bfloat16)
        s = lax.dot_general(q, k, (((1,), (1,)), ((), ())),
                            preferred_element_type=jnp.float32) * scale + mask
        s = s - jnp.max(s, axis=-1, keepdims=True)
        p = jnp.exp(s)
        p = p * pl.reciprocal(jnp.sum(p, axis=-1, keepdims=True), approx=True)
        o_h = jnp.dot(p.astype(jnp.bfloat16), v,
                      preferred_element_type=jnp.float32)               # (T, dh)
        # fold the output projection per head: concat(o_h) @ Wo == sum_h o_h @ Wo[h*dh:(h+1)*dh]
        acc = acc + jnp.dot(o_h.astype(jnp.bfloat16), wo_ref[hd * dh:(hd + 1) * dh, :],
                            preferred_element_type=jnp.float32)
    o_ref[0] = (x + acc + bo_ref[...]).astype(o_ref.dtype)


def _conv_block_kernel(x_ref, g_ref, b_ref, pw1w_ref, pw1b_ref, dww_ref,
                       bns_ref, bnb_ref, pw2w_ref, pw2b_ref, o_ref, *, k, T_valid):
    """Fused conv sub-block for one batch element:
       LN -> pw1 -> GLU -> depthwise conv (roll taps + zero-pad mask) -> BN+SiLU -> pw2 -> +res."""
    x = x_ref[0].astype(jnp.float32)                    # (Tp, D)
    Tp = x.shape[0]
    P = (k - 1) // 2
    h = _layernorm(x, g_ref[...], b_ref[...])
    y = jnp.dot(h.astype(jnp.bfloat16), pw1w_ref[...],
                preferred_element_type=jnp.float32) + pw1b_ref[...]     # (Tp, 2D)
    Dd = y.shape[-1] // 2
    a = y[:, :Dd] * jax.nn.sigmoid(y[:, Dd:])           # GLU
    rows = lax.broadcasted_iota(jnp.int32, (Tp, 1), 0)
    acc = jnp.zeros_like(a)
    for j in range(k):                                  # small static tap unroll
        off = j - P                                     # source index = t + off
        sh = (-off) % Tp
        src = a if sh == 0 else pltpu.roll(a, shift=sh, axis=0)
        # zero-padding semantics of Conv1d(padding=P): valid iff 0 <= t+off < T_valid
        valid = jnp.logical_and(rows + off >= 0, rows + off < T_valid).astype(jnp.float32)
        acc = acc + src * valid * dww_ref[j:j + 1, :]
    z = acc * bns_ref[...] + bnb_ref[...]               # conv bias + BatchNorm(eval) folded
    z = z * jax.nn.sigmoid(z)                           # SiLU
    w = jnp.dot(z.astype(jnp.bfloat16), pw2w_ref[...],
                preferred_element_type=jnp.float32) + pw2b_ref[...]
    o_ref[0] = (x + w).astype(o_ref.dtype)


def _classifier_kernel(x_ref, w_ref, b_ref, o_ref):
    y = jnp.dot(x_ref[...].astype(jnp.bfloat16), w_ref[...],
                preferred_element_type=jnp.float32) + b_ref[...]
    y = y - jnp.max(y, axis=-1, keepdims=True)
    e = jnp.exp(y)
    o_ref[...] = e * pl.reciprocal(jnp.sum(e, axis=-1, keepdims=True), approx=True)


# ----------------------------- kernel wrappers ------------------------------

def pallas_ffn(x2d, p, final_ln_g=None, final_ln_b=None):
    M, D = x2d.shape
    F = p["w1"].shape[1]
    tm = _row_tile(M)
    final_ln = final_ln_g is not None

    args = [x2d, p["ln_g"], p["ln_b"], p["w1"], p["b1"], p["w2"], p["b2"]]
    in_specs = [pl.BlockSpec((tm, D), lambda i: (i, 0)),
                pl.BlockSpec((1, D), lambda i: (0, 0)),
                pl.BlockSpec((1, D), lambda i: (0, 0)),
                pl.BlockSpec((D, F), lambda i: (0, 0)),
                pl.BlockSpec((1, F), lambda i: (0, 0)),
                pl.BlockSpec((F, D), lambda i: (0, 0)),
                pl.BlockSpec((1, D), lambda i: (0, 0))]
    if final_ln:
        args += [final_ln_g, final_ln_b]
        in_specs += [pl.BlockSpec((1, D), lambda i: (0, 0)),
                     pl.BlockSpec((1, D), lambda i: (0, 0))]

    return pl.pallas_call(
        _make_ffn_kernel(final_ln),
        out_shape=jax.ShapeDtypeStruct((M, D), jnp.bfloat16),
        grid=(M // tm,),
        in_specs=in_specs,
        out_specs=pl.BlockSpec((tm, D), lambda i: (i, 0)),
        compiler_params=_cparams(1),
    )(*args)


def pallas_mhsa(x, p, mask_add, H):
    """x: (B, Tp, D) bf16; mask_add: (B, 1, Tp) additive key mask. One fused call."""
    B, Tp, D = x.shape
    dh = D // H
    kern = functools.partial(_mhsa_kernel, H=H, dh=dh, scale=1.0 / math.sqrt(dh))
    # TODO(synk): for long T / v7x, switch to a KV-tiled flash-style grid (Tq, Tk tiles with
    # online-softmax scratch) so the per-step footprint is bounded and both TCs get >1 step.
    return pl.pallas_call(
        kern,
        out_shape=jax.ShapeDtypeStruct((B, Tp, D), jnp.bfloat16),
        grid=(B,),
        in_specs=[pl.BlockSpec((1, Tp, D), lambda i: (i, 0, 0)),
                  pl.BlockSpec((1, 1, Tp), lambda i: (i, 0, 0)),
                  pl.BlockSpec((1, D), lambda i: (0, 0)),
                  pl.BlockSpec((1, D), lambda i: (0, 0)),
                  pl.BlockSpec((D, 3 * D), lambda i: (0, 0)),
                  pl.BlockSpec((1, 3 * D), lambda i: (0, 0)),
                  pl.BlockSpec((D, D), lambda i: (0, 0)),
                  pl.BlockSpec((1, D), lambda i: (0, 0))],
        out_specs=pl.BlockSpec((1, Tp, D), lambda i: (i, 0, 0)),
        compiler_params=_cparams(1),
    )(x, mask_add, p["attn_ln_g"], p["attn_ln_b"], p["wqkv"], p["bqkv"], p["wo"], p["bo"])


def pallas_conv_block(x, p, k, T_valid):
    """x: (B, Tp, D) bf16. One fused call: LN+pw1+GLU -> dwconv+BN+SiLU -> pw2+residual."""
    B, Tp, D = x.shape
    kern = functools.partial(_conv_block_kernel, k=k, T_valid=T_valid)
    return pl.pallas_call(
        kern,
        out_shape=jax.ShapeDtypeStruct((B, Tp, D), jnp.bfloat16),
        grid=(B,),
        in_specs=[pl.BlockSpec((1, Tp, D), lambda i: (i, 0, 0)),
                  pl.BlockSpec((1, D), lambda i: (0, 0)),
                  pl.BlockSpec((1, D), lambda i: (0, 0)),
                  pl.BlockSpec((D, 2 * D), lambda i: (0, 0)),
                  pl.BlockSpec((1, 2 * D), lambda i: (0, 0)),
                  pl.BlockSpec((k, D), lambda i: (0, 0)),
                  pl.BlockSpec((1, D), lambda i: (0, 0)),
                  pl.BlockSpec((1, D), lambda i: (0, 0)),
                  pl.BlockSpec((D, D), lambda i: (0, 0)),
                  pl.BlockSpec((1, D), lambda i: (0, 0))],
        out_specs=pl.BlockSpec((1, Tp, D), lambda i: (i, 0, 0)),
        compiler_params=_cparams(1),
    )(x, p["conv_ln_g"], p["conv_ln_b"], p["pw1_w"], p["pw1_b"], p["dw_w"],
      p["bn_scale"], p["bn_shift"], p["pw2_w"], p["pw2_b"])


def pallas_classifier(x2d, w_pad, b_pad, out_dim):
    B, D = x2d.shape
    Np = w_pad.shape[1]                                  # lane-dense (>=128) padded logits
    Bp = _round_up(B, 8)
    xp = x2d if Bp == B else jnp.pad(x2d, ((0, Bp - B), (0, 0)))
    out = pl.pallas_call(
        _classifier_kernel,
        out_shape=jax.ShapeDtypeStruct((Bp, Np), jnp.float32),
        grid=(1,),
        in_specs=[pl.BlockSpec((Bp, D), lambda i: (0, 0)),
                  pl.BlockSpec((D, Np), lambda i: (0, 0)),
                  pl.BlockSpec((1, Np), lambda i: (0, 0))],
        out_specs=pl.BlockSpec((Bp, Np), lambda i: (0, 0)),
        compiler_params=_cparams(1),
    )(xp, w_pad, b_pad)
    return out[:B, :out_dim]


# ----------------------------- model pieces ------------------------------

def _conformer_layer(x, p, mask_add, H, k, T_valid):
    B, Tp, D = x.shape
    M = B * Tp
    x = pallas_ffn(x.reshape(M, D), p["ffn1"]).reshape(B, Tp, D)      # ffn1 (+0.5 residual)
    x = pallas_mhsa(x, p, mask_add, H)                                # fused MHSA (+residual)
    x = pallas_conv_block(x, p, k, T_valid)                           # fused conv (+residual)
    x = pallas_ffn(x.reshape(M, D), p["ffn2"],                        # ffn2 + final LayerNorm
                   final_ln_g=p["final_ln_g"], final_ln_b=p["final_ln_b"])
    return x.reshape(B, Tp, D)


@functools.partial(jax.jit, static_argnames=("num_heads", "dw_kernel", "output_dim"))
def predictor_forward(params, x, color, lengths, *, num_heads, dw_kernel, output_dim):
    """x: (B, T, D) float32; lengths: (B,) int32."""
    # TODO(synk): the `CNN` submodule class is not defined in the reference source; treated
    # as identity here and `color` is unused.
    B, T, D = x.shape

    # positional encoding (dropout is eval-mode identity)
    x = x + params["pe"][:, :T, :]

    # pad time to a sublane multiple ONCE; keep padded layout through all layers.
    Tp = _round_up(T, 8)
    if Tp != T:
        x = jnp.pad(x, ((0, 0), (0, Tp - T), (0, 0)))
    xb = x.astype(jnp.bfloat16)                          # bf16 inter-kernel activations

    # key padding mask (True = pad) -> additive (B, 1, Tp) f32 mask (covers t >= T too)
    t_idx = lax.broadcasted_iota(jnp.int32, (B, 1, Tp), 2)
    pad = t_idx >= lengths[:, None, None]
    mask_add = jnp.where(pad, _NEG_INF, 0.0).astype(jnp.float32)

    for layer_p in params["layers"]:
        xb = _conformer_layer(xb, layer_p, mask_add, num_heads, dw_kernel, T)

    out0 = xb[:, 0, :]                                                # (B, D)
    return pallas_classifier(out0, params["out_w"], params["out_b"], output_dim)


# ----------------------------- parameter init ------------------------------

def init_params(key, D, output_dim, max_len, H, F, num_layers, dw_kernel):
    keys = iter(jax.random.split(key, 4096))

    def dense(out_d, in_d):
        # torch nn.Linear layout: weight (out, in), bias (out,)
        w = 0.05 * jax.random.normal(next(keys), (out_d, in_d), jnp.float32)
        b = 0.01 * jax.random.normal(next(keys), (out_d,), jnp.float32)
        return w, b

    # pre-transpose to matmul (in, out) layout and pre-cast to bf16 once (MXU inputs)
    def as_matmul(w):
        return jnp.asarray(w.T, jnp.bfloat16)

    def as_bias(b):
        return b.reshape(1, -1).astype(jnp.float32)

    ones = lambda n: jnp.ones((1, n), jnp.float32)
    zeros = lambda n: jnp.zeros((1, n), jnp.float32)

    def ffn_params():
        w1, b1 = dense(F, D)
        w2, b2 = dense(D, F)
        return {"ln_g": ones(D), "ln_b": zeros(D),
                "w1": as_matmul(w1), "b1": as_bias(b1),
                "w2": as_matmul(w2), "b2": as_bias(b2)}

    def layer_params():
        wq, bq = dense(D, D)
        wk, bk = dense(D, D)
        wv, bv = dense(D, D)
        wo, bo = dense(D, D)
        pw1_w, pw1_b = dense(2 * D, D)
        pw2_w, pw2_b = dense(D, D)
        dw_w = 0.05 * jax.random.normal(next(keys), (D, 1, dw_kernel), jnp.float32)
        dw_b = 0.01 * jax.random.normal(next(keys), (D,), jnp.float32)
        # BatchNorm1d (eval) with default running stats; conv bias folded into the shift.
        bn_g, bn_b = jnp.ones((D,), jnp.float32), jnp.zeros((D,), jnp.float32)
        bn_mean, bn_var = jnp.zeros((D,), jnp.float32), jnp.ones((D,), jnp.float32)
        bn_scale = bn_g * lax.rsqrt(bn_var + 1e-5)
        bn_shift = (dw_b - bn_mean) * bn_scale + bn_b
        return {
            "ffn1": ffn_params(),
            "attn_ln_g": ones(D), "attn_ln_b": zeros(D),
            "wqkv": jnp.concatenate([as_matmul(wq), as_matmul(wk), as_matmul(wv)], axis=1),
            "bqkv": jnp.concatenate([bq, bk, bv]).reshape(1, -1).astype(jnp.float32),
            "wo": as_matmul(wo), "bo": as_bias(bo),
            "conv_ln_g": ones(D), "conv_ln_b": zeros(D),
            "pw1_w": as_matmul(pw1_w), "pw1_b": as_bias(pw1_b),
            "dw_w": jnp.transpose(dw_w.reshape(D, dw_kernel), (1, 0)).astype(jnp.float32),
            "bn_scale": bn_scale.reshape(1, D), "bn_shift": bn_shift.reshape(1, D),
            "pw2_w": as_matmul(pw2_w), "pw2_b": as_bias(pw2_b),
            "ffn2": ffn_params(),
            "final_ln_g": ones(D), "final_ln_b": zeros(D),
        }

    layers = [layer_params() for _ in range(num_layers)]

    # sinusoidal positional-encoding buffer (input_dim even here)
    pos = jnp.arange(max_len, dtype=jnp.float32)[:, None]
    div = jnp.exp(jnp.arange(0, D, 2, dtype=jnp.float32) * (-math.log(10000.0) / D))
    pe = jnp.zeros((max_len, D), jnp.float32)
    pe = pe.at[:, 0::2].set(jnp.sin(pos * div))
    pe = pe.at[:, 1::2].set(jnp.cos(pos * div))

    # classifier padded to a lane-dense 128-wide output; padded logits get a -1e9 bias so
    # the f32 softmax over the real columns is unchanged.
    out_w, out_b = dense(output_dim, D)
    Np = max(128, _round_up(output_dim, 128))
    out_w_pad = jnp.zeros((D, Np), jnp.bfloat16).at[:, :output_dim].set(as_matmul(out_w))
    out_b_pad = jnp.full((1, Np), _NEG_INF, jnp.float32).at[0, :output_dim].set(out_b)

    return {"pe": pe[None], "layers": layers, "out_w": out_w_pad, "out_b": out_b_pad}


# ----------------------------- main ------------------------------

if __name__ == "__main__":
    B, T, D = 2, 8, 32
    output_dim, max_len = 8, 16
    num_heads, ffn_dim, num_layers, dw_kernel = 4, 64, 2, 3

    key = jax.random.PRNGKey(0)
    kp, kx = jax.random.split(key)
    params = init_params(kp, D, output_dim, max_len, num_heads, ffn_dim, num_layers, dw_kernel)

    x = jax.random.normal(kx, (B, T, D), jnp.float32)
    color = jnp.zeros((B,), jnp.float32)          # unused (CNN not defined in reference)
    lengths = jnp.array([T, T - 2], jnp.int32)

    out = predictor_forward(params, x, color, lengths,
                            num_heads=num_heads, dw_kernel=dw_kernel,
                            output_dim=output_dim)
    out = jax.block_until_ready(out)
    assert out.shape == (B, output_dim)
    assert bool(jnp.all(jnp.isfinite(out)))
    print("KERNEL_OK")
</pallas_src>

<mosaic_0001>
module attributes {stable_mosaic.version = 11 : i64} {
  func.func @kernel(%arg0: i32, %arg1: memref<16x32xbf16, #tpu.memory_space<vmem>>, %arg2: memref<1x32xf32, #tpu.memory_space<vmem>>, %arg3: memref<1x32xf32, #tpu.memory_space<vmem>>, %arg4: memref<32x64xbf16, #tpu.memory_space<vmem>>, %arg5: memref<1x64xf32, #tpu.memory_space<vmem>>, %arg6: memref<64x32xbf16, #tpu.memory_space<vmem>>, %arg7: memref<1x32xf32, #tpu.memory_space<vmem>>, %arg8: memref<16x32xbf16, #tpu.memory_space<vmem>>) attributes {dimension_semantics = [#tpu.dimension_semantics<parallel>], iteration_bounds = array<i64: 1>, scalar_prefetch = 0 : i64, scratch_operands = 0 : i64, tpu.core_type = #tpu.core_type<tc>, window_params = [{transform_indices = @transform_0, window_bounds = array<i64: 16, 32>}, {pipeline_mode = #tpu.pipeline_mode<synchronous>, transform_indices = @transform_1, window_bounds = array<i64: 1, 32>}, {pipeline_mode = #tpu.pipeline_mode<synchronous>, transform_indices = @transform_2, window_bounds = array<i64: 1, 32>}, {pipeline_mode = #tpu.pipeline_mode<synchronous>, transform_indices = @transform_3, window_bounds = array<i64: 32, 64>}, {pipeline_mode = #tpu.pipeline_mode<synchronous>, transform_indices = @transform_4, window_bounds = array<i64: 1, 64>}, {pipeline_mode = #tpu.pipeline_mode<synchronous>, transform_indices = @transform_5, window_bounds = array<i64: 64, 32>}, {pipeline_mode = #tpu.pipeline_mode<synchronous>, transform_indices = @transform_6, window_bounds = array<i64: 1, 32>}, {transform_indices = @transform_7, window_bounds = array<i64: 16, 32>}]} {
    %c0 = arith.constant 0 : index
    %c0_0 = arith.constant 0 : index
    %0 = vector.load %arg1[%c0, %c0_0] : memref<16x32xbf16, #tpu.memory_space<vmem>>, vector<16x32xbf16>
    %1 = arith.extf %0 : vector<16x32xbf16> to vector<16x32xf32>
    %c0_1 = arith.constant 0 : index
    %c0_2 = arith.constant 0 : index
    %2 = vector.load %arg2[%c0_1, %c0_2] : memref<1x32xf32, #tpu.memory_space<vmem>>, vector<1x32xf32>
    %c0_3 = arith.constant 0 : index
    %c0_4 = arith.constant 0 : index
    %3 = vector.load %arg3[%c0_3, %c0_4] : memref<1x32xf32, #tpu.memory_space<vmem>>, vector<1x32xf32>
    %cst = arith.constant dense<0.000000e+00> : vector<16xf32>
    %4 = vector.multi_reduction <add>, %1, %cst [1] : vector<16x32xf32> to vector<16xf32>
    %5 = vector.shape_cast %4 : vector<16xf32> to vector<16x1xf32>
    %cst_5 = arith.constant 3.200000e+01 : f32
    %6 = vector.broadcast %cst_5 : f32 to vector<16x1xf32>
    %7 = arith.divf %5, %6 : vector<16x1xf32>
    %8 = vector.broadcast %7 : vector<16x1xf32> to vector<16x32xf32>
    %9 = arith.subf %1, %8 : vector<16x32xf32>
    %10 = arith.mulf %9, %9 : vector<16x32xf32>
    %cst_6 = arith.constant dense<0.000000e+00> : vector<16xf32>
    %11 = vector.multi_reduction <add>, %10, %cst_6 [1] : vector<16x32xf32> to vector<16xf32>
    %12 = vector.shape_cast %11 : vector<16xf32> to vector<16x1xf32>
    %cst_7 = arith.constant 3.200000e+01 : f32
    %13 = vector.broadcast %cst_7 : f32 to vector<16x1xf32>
    %14 = arith.divf %12, %13 : vector<16x1xf32>
    %cst_8 = arith.constant 9.99999974E-6 : f32
    %15 = vector.broadcast %cst_8 : f32 to vector<16x1xf32>
    %16 = arith.addf %14, %15 : vector<16x1xf32>
    %17 = math.rsqrt %16 : vector<16x1xf32>
    %18 = vector.broadcast %17 : vector<16x1xf32> to vector<16x32xf32>
    %19 = arith.mulf %9, %18 : vector<16x32xf32>
    %20 = vector.broadcast %2 : vector<1x32xf32> to vector<16x32xf32>
    %21 = arith.mulf %19, %20 : vector<16x32xf32>
    %22 = vector.broadcast %3 : vector<1x32xf32> to vector<16x32xf32>
    %23 = arith.addf %21, %22 : vector<16x32xf32>
    %24 = arith.truncf %23 : vector<16x32xf32> to vector<16x32xbf16>
    %c0_9 = arith.constant 0 : index
    %c0_10 = arith.constant 0 : index
    %25 = vector.load %arg4[%c0_9, %c0_10] : memref<32x64xbf16, #tpu.memory_space<vmem>>, vector<32x64xbf16>
    %cst_11 = arith.constant dense<0.000000e+00> : vector<16x64xf32>
    %26 = tpu.matmul %24, %25, %cst_11 {dimension_numbers = #tpu.dot_dimension_numbers<[1], [0], [0], [1], [0, 0, 1, 1], [], []>} : vector<16x32xbf16>, vector<32x64xbf16>, vector<16x64xf32> -> vector<16x64xf32>
    %c0_12 = arith.constant 0 : index
    %c0_13 = arith.constant 0 : index
    %27 = vector.load %arg5[%c0_12, %c0_13] : memref<1x64xf32, #tpu.memory_space<vmem>>, vector<1x64xf32>
    %28 = vector.broadcast %27 : vector<1x64xf32> to vector<16x64xf32>
    %29 = arith.addf %26, %28 : vector<16x64xf32>
    %30 = arith.negf %29 : vector<16x64xf32>
    %31 = math.exp %30 : vector<16x64xf32>
    %cst_14 = arith.constant 1.000000e+00 : f32
    %32 = vector.broadcast %cst_14 : f32 to vector<16x64xf32>
    %33 = arith.addf %32, %31 : vector<16x64xf32>
    %34 = arith.divf %32, %33 : vector<16x64xf32>
    %35 = arith.mulf %29, %34 : vector<16x64xf32>
    %36 = arith.truncf %35 : vector<16x64xf32> to vector<16x64xbf16>
    %c0_15 = arith.constant 0 : index
    %c0_16 = arith.constant 0 : index
    %37 = vector.load %arg6[%c0_15, %c0_16] : memref<64x32xbf16, #tpu.memory_space<vmem>>, vector<64x32xbf16>
    %cst_17 = arith.constant dense<0.000000e+00> : vector<16x32xf32>
    %38 = tpu.matmul %36, %37, %cst_17 {dimension_numbers = #tpu.dot_dimension_numbers<[1], [0], [0], [1], [0, 0, 1, 1], [], []>} : vector<16x64xbf16>, vector<64x32xbf16>, vector<16x32xf32> -> vector<16x32xf32>
    %c0_18 = arith.constant 0 : index
    %c0_19 = arith.constant 0 : index
    %39 = vector.load %arg7[%c0_18, %c0_19] : memref<1x32xf32, #tpu.memory_space<vmem>>, vector<1x32xf32>
    %40 = vector.broadcast %39 : vector<1x32xf32> to vector<16x32xf32>
    %41 = arith.addf %38, %40 : vector<16x32xf32>
    %cst_20 = arith.constant 5.000000e-01 : f32
    %42 = vector.broadcast %cst_20 : f32 to vector<16x32xf32>
    %43 = arith.mulf %42, %41 : vector<16x32xf32>
    %44 = arith.addf %1, %43 : vector<16x32xf32>
    %45 = arith.truncf %44 : vector<16x32xf32> to vector<16x32xbf16>
    %c0_21 = arith.constant 0 : index
    %c0_22 = arith.constant 0 : index
    %46 = vector.load %arg8[%c0_21, %c0_22] : memref<16x32xbf16, #tpu.memory_space<vmem>>, vector<16x32xbf16>
    tpu.vector_store %arg8[%c0_21, %c0_22], %45 {strides = array<i32>} : memref<16x32xbf16, #tpu.memory_space<vmem>>, vector<16x32xbf16>,
    return
  }
  func.func @transform_0(%arg0: i32) -> (i32, i32) {
    %c0_i32 = arith.constant 0 : i32
    %c0_i32_0 = arith.constant 0 : i32
    return %arg0, %c0_i32 : i32, i32
  }
  func.func @transform_1(%arg0: i32) -> (i32, i32) {
    %c0_i32 = arith.constant 0 : i32
    %c0_i32_0 = arith.constant 0 : i32
    %c0_i32_1 = arith.constant 0 : i32
    return %c0_i32, %c0_i32_0 : i32, i32
  }
  func.func @transform_2(%arg0: i32) -> (i32, i32) {
    %c0_i32 = arith.constant 0 : i32
    %c0_i32_0 = arith.constant 0 : i32
    %c0_i32_1 = arith.constant 0 : i32
    return %c0_i32, %c0_i32_0 : i32, i32
  }
  func.func @transform_3(%arg0: i32) -> (i32, i32) {
    %c0_i32 = arith.constant 0 : i32
    %c0_i32_0 = arith.constant 0 : i32
    %c0_i32_1 = arith.constant 0 : i32
    return %c0_i32, %c0_i32_0 : i32, i32
  }
  func.func @transform_4(%arg0: i32) -> (i32, i32) {
    %c0_i32 = arith.constant 0 : i32
    %c0_i32_0 = arith.constant 0 : i32
    %c0_i32_1 = arith.constant 0 : i32
    return %c0_i32, %c0_i32_0 : i32, i32
  }
  func.func @transform_5(%arg0: i32) -> (i32, i32) {
    %c0_i32 = arith.constant 0 : i32
    %c0_i32_0 = arith.constant 0 : i32
    %c0_i32_1 = arith.constant 0 : i32
    return %c0_i32, %c0_i32_0 : i32, i32
  }
  func.func @transform_6(%arg0: i32) -> (i32, i32) {
    %c0_i32 = arith.constant 0 : i32
    %c0_i32_0 = arith.constant 0 : i32
    %c0_i32_1 = arith.constant 0 : i32
    return %c0_i32, %c0_i32_0 : i32, i32
  }
  func.func @transform_7(%arg0: i32) -> (i32, i32) {
    %c0_i32 = arith.constant 0 : i32
    %c0_i32_0 = arith.constant 0 : i32
    return %arg0, %c0_i32 : i32, i32
  }
}

module attributes {stable_mosaic.version = 11 : i64} {
  func.func @_mhsa_kernel(%arg0: i32, %arg1: memref<1x8x32xbf16, #tpu.memory_space<vmem>>, %arg2: memref<1x1x8xf32, #tpu.memory_space<vmem>>, %arg3: memref<1x32xf32, #tpu.memory_space<vmem>>, %arg4: memref<1x32xf32, #tpu.memory_space<vmem>>, %arg5: memref<32x96xbf16, #tpu.memory_space<vmem>>, %arg6: memref<1x96xf32, #tpu.memory_space<vmem>>, %arg7: memref<32x32xbf16, #tpu.memory_space<vmem>>, %arg8: memref<1x32xf32, #tpu.memory_space<vmem>>, %arg9: memref<1x8x32xbf16, #tpu.memory_space<vmem>>) attributes {dimension_semantics = [#tpu.dimension_semantics<parallel>], iteration_bounds = array<i64: 2>, scalar_prefetch = 0 : i64, scratch_operands = 0 : i64, tpu.core_type = #tpu.core_type<tc>, window_params = [{transform_indices = @transform_0, window_bounds = array<i64: 1, 8, 32>}, {transform_indices = @transform_1, window_bounds = array<i64: 1, 1, 8>}, {pipeline_mode = #tpu.pipeline_mode<synchronous>, transform_indices = @transform_2, window_bounds = array<i64: 1, 32>}, {pipeline_mode = #tpu.pipeline_mode<synchronous>, transform_indices = @transform_3, window_bounds = array<i64: 1, 32>}, {pipeline_mode = #tpu.pipeline_mode<synchronous>, transform_indices = @transform_4, window_bounds = array<i64: 32, 96>}, {pipeline_mode = #tpu.pipeline_mode<synchronous>, transform_indices = @transform_5, window_bounds = array<i64: 1, 96>}, {pipeline_mode = #tpu.pipeline_mode<synchronous>, transform_indices = @transform_6, window_bounds = array<i64: 32, 32>}, {pipeline_mode = #tpu.pipeline_mode<synchronous>, transform_indices = @transform_7, window_bounds = array<i64: 1, 32>}, {transform_indices = @transform_8, window_bounds = array<i64: 1, 8, 32>}]} {
    %c0 = arith.constant 0 : index
    %c0_0 = arith.constant 0 : index
    %c0_1 = arith.constant 0 : index
    %0 = vector.load %arg1[%c0, %c0_0, %c0_1] : memref<1x8x32xbf16, #tpu.memory_space<vmem>>, vector<1x8x32xbf16>
    %1 = vector.shape_cast %0 : vector<1x8x32xbf16> to vector<8x32xbf16>
    %2 = arith.extf %1 : vector<8x32xbf16> to vector<8x32xf32>
    %c0_2 = arith.constant 0 : index
    %c0_3 = arith.constant 0 : index
    %c0_4 = arith.constant 0 : index
    %3 = vector.load %arg2[%c0_2, %c0_3, %c0_4] : memref<1x1x8xf32, #tpu.memory_space<vmem>>, vector<1x1x8xf32>
    %4 = vector.shape_cast %3 : vector<1x1x8xf32> to vector<1x8xf32>
    %c0_5 = arith.constant 0 : index
    %c0_6 = arith.constant 0 : index
    %5 = vector.load %arg3[%c0_5, %c0_6] : memref<1x32xf32, #tpu.memory_space<vmem>>, vector<1x32xf32>
    %c0_7 = arith.constant 0 : index
    %c0_8 = arith.constant 0 : index
    %6 = vector.load %arg4[%c0_7, %c0_8] : memref<1x32xf32, #tpu.memory_space<vmem>>, vector<1x32xf32>
    %cst = arith.constant dense<0.000000e+00> : vector<8xf32>
    %7 = vector.multi_reduction <add>, %2, %cst [1] : vector<8x32xf32> to vector<8xf32>
    %8 = vector.shape_cast %7 : vector<8xf32> to vector<8x1xf32>
    %cst_9 = arith.constant 3.200000e+01 : f32
    %9 = vector.broadcast %cst_9 : f32 to vector<8x1xf32>
    %10 = arith.divf %8, %9 : vector<8x1xf32>
    %11 = vector.broadcast %10 : vector<8x1xf32> to vector<8x32xf32>
    %12 = arith.subf %2, %11 : vector<8x32xf32>
    %13 = arith.mulf %12, %12 : vector<8x32xf32>
    %cst_10 = arith.constant dense<0.000000e+00> : vector<8xf32>
    %14 = vector.multi_reduction <add>, %13, %cst_10 [1] : vector<8x32xf32> to vector<8xf32>
    %15 = vector.shape_cast %14 : vector<8xf32> to vector<8x1xf32>
    %cst_11 = arith.constant 3.200000e+01 : f32
    %16 = vector.broadcast %cst_11 : f32 to vector<8x1xf32>
    %17 = arith.divf %15, %16 : vector<8x1xf32>
    %cst_12 = arith.constant 9.99999974E-6 : f32
    %18 = vector.broadcast %cst_12 : f32 to vector<8x1xf32>
    %19 = arith.addf %17, %18 : vector<8x1xf32>
    %20 = math.rsqrt %19 : vector<8x1xf32>
    %21 = vector.broadcast %20 : vector<8x1xf32> to vector<8x32xf32>
    %22 = arith.mulf %12, %21 : vector<8x32xf32>
    %23 = vector.broadcast %5 : vector<1x32xf32> to vector<8x32xf32>
    %24 = arith.mulf %22, %23 : vector<8x32xf32>
    %25 = vector.broadcast %6 : vector<1x32xf32> to vector<8x32xf32>
    %26 = arith.addf %24, %25 : vector<8x32xf32>
    %27 = arith.truncf %26 : vector<8x32xf32> to vector<8x32xbf16>
    %c0_13 = arith.constant 0 : index
    %c0_14 = arith.constant 0 : index
    %28 = vector.load %arg5[%c0_13, %c0_14] : memref<32x96xbf16, #tpu.memory_space<vmem>>, vector<32x96xbf16>
    %cst_15 = arith.constant dense<0.000000e+00> : vector<8x96xf32>
    %29 = tpu.matmul %27, %28, %cst_15 {dimension_numbers = #tpu.dot_dimension_numbers<[1], [0], [0], [1], [0, 0, 1, 1], [], []>} : vector<8x32xbf16>, vector<32x96xbf16>, vector<8x96xf32> -> vector<8x96xf32>
    %c0_16 = arith.constant 0 : index
    %c0_17 = arith.constant 0 : index
    %30 = vector.load %arg6[%c0_16, %c0_17] : memref<1x96xf32, #tpu.memory_space<vmem>>, vector<1x96xf32>
    %31 = vector.broadcast %30 : vector<1x96xf32> to vector<8x96xf32>
    %32 = arith.addf %29, %31 : vector<8x96xf32>
    %cst_18 = arith.constant 0.000000e+00 : f32
    %33 = vector.broadcast %cst_18 : f32 to vector<8x32xf32>
    %34 = vector.extract_strided_slice %32 {offsets = [0, 0], sizes = [8, 8], strides = [1, 1]} : vector<8x96xf32> to vector<8x8xf32>
    %35 = arith.truncf %34 : vector<8x8xf32> to vector<8x8xbf16>
    %36 = vector.extract_strided_slice %32 {offsets = [0, 32], sizes = [8, 8], strides = [1, 1]} : vector<8x96xf32> to vector<8x8xf32>
    %37 = arith.truncf %36 : vector<8x8xf32> to vector<8x8xbf16>
    %38 = vector.extract_strided_slice %32 {offsets = [0, 64], sizes = [8, 8], strides = [1, 1]} : vector<8x96xf32> to vector<8x8xf32>
    %39 = arith.truncf %38 : vector<8x8xf32> to vector<8x8xbf16>
    %cst_19 = arith.constant dense<0.000000e+00> : vector<8x8xf32>
    %40 = tpu.matmul %35, %37, %cst_19 {dimension_numbers = #tpu.dot_dimension_numbers<[1], [1], [0], [0], [0, 0, 1, 0], [], []>} : vector<8x8xbf16>, vector<8x8xbf16>, vector<8x8xf32> -> vector<8x8xf32>
    %cst_20 = arith.constant 0.353553385 : f32
    %41 = vector.broadcast %cst_20 : f32 to vector<8x8xf32>
    %42 = arith.mulf %40, %41 : vector<8x8xf32>
    %43 = vector.broadcast %4 : vector<1x8xf32> to vector<8x8xf32>
    %44 = arith.addf %42, %43 : vector<8x8xf32>
    %cst_21 = arith.constant dense<0xFF800000> : vector<8xf32>
    %45 = vector.multi_reduction <maximumf>, %44, %cst_21 [1] : vector<8x8xf32> to vector<8xf32>
    %46 = vector.shape_cast %45 : vector<8xf32> to vector<8x1xf32>
    %47 = vector.broadcast %46 : vector<8x1xf32> to vector<8x8xf32>
    %48 = arith.subf %44, %47 : vector<8x8xf32>
    %49 = math.exp %48 : vector<8x8xf32>
    %cst_22 = arith.constant dense<0.000000e+00> : vector<8xf32>
    %50 = vector.multi_reduction <add>, %49, %cst_22 [1] : vector<8x8xf32> to vector<8xf32>
    %51 = vector.shape_cast %50 : vector<8xf32> to vector<8x1xf32>
    %52 = tpu.reciprocal %51 {approx = true} : vector<8x1xf32> -> vector<8x1xf32>
    %53 = vector.broadcast %52 : vector<8x1xf32> to vector<8x8xf32>
    %54 = arith.mulf %49, %53 : vector<8x8xf32>
    %55 = arith.truncf %54 : vector<8x8xf32> to vector<8x8xbf16>
    %cst_23 = arith.constant dense<0.000000e+00> : vector<8x8xf32>
    %56 = tpu.matmul %55, %39, %cst_23 {dimension_numbers = #tpu.dot_dimension_numbers<[1], [0], [0], [1], [0, 0, 1, 1], [], []>} : vector<8x8xbf16>, vector<8x8xbf16>, vector<8x8xf32> -> vector<8x8xf32>
    %57 = arith.truncf %56 : vector<8x8xf32> to vector<8x8xbf16>
    %c0_24 = arith.constant 0 : index
    %c0_25 = arith.constant 0 : index
    %58 = vector.load %arg7[%c0_24, %c0_25] : memref<32x32xbf16, #tpu.memory_space<vmem>>, vector<8x32xbf16>
    %cst_26 = arith.constant dense<0.000000e+00> : vector<8x32xf32>
    %59 = tpu.matmul %57, %58, %cst_26 {dimension_numbers = #tpu.dot_dimension_numbers<[1], [0], [0], [1], [0, 0, 1, 1], [], []>} : vector<8x8xbf16>, vector<8x32xbf16>, vector<8x32xf32> -> vector<8x32xf32>
    %60 = arith.addf %33, %59 : vector<8x32xf32>
    %61 = vector.extract_strided_slice %32 {offsets = [0, 8], sizes = [8, 8], strides = [1, 1]} : vector<8x96xf32> to vector<8x8xf32>
    %62 = arith.truncf %61 : vector<8x8xf32> to vector<8x8xbf16>
    %63 = vector.extract_strided_slice %32 {offsets = [0, 40], sizes = [8, 8], strides = [1, 1]} : vector<8x96xf32> to vector<8x8xf32>
    %64 = arith.truncf %63 : vector<8x8xf32> to vector<8x8xbf16>
    %65 = vector.extract_strided_slice %32 {offsets = [0, 72], sizes = [8, 8], strides = [1, 1]} : vector<8x96xf32> to vector<8x8xf32>
    %66 = arith.truncf %65 : vector<8x8xf32> to vector<8x8xbf16>
    %cst_27 = arith.constant dense<0.000000e+00> : vector<8x8xf32>
    %67 = tpu.matmul %62, %64, %cst_27 {dimension_numbers = #tpu.dot_dimension_numbers<[1], [1], [0], [0], [0, 0, 1, 0], [], []>} : vector<8x8xbf16>, vector<8x8xbf16>, vector<8x8xf32> -> vector<8x8xf32>
    %cst_28 = arith.constant 0.353553385 : f32
    %68 = vector.broadcast %cst_28 : f32 to vector<8x8xf32>
    %69 = arith.mulf %67, %68 : vector<8x8xf32>
    %70 = vector.broadcast %4 : vector<1x8xf32> to vector<8x8xf32>
    %71 = arith.addf %69, %70 : vector<8x8xf32>
    %cst_29 = arith.constant dense<0xFF800000> : vector<8xf32>
    %72 = vector.multi_reduction <maximumf>, %71, %cst_29 [1] : vector<8x8xf32> to vector<8xf32>
    %73 = vector.shape_cast %72 : vector<8xf32> to vector<8x1xf32>
    %74 = vector.broadcast %73 : vector<8x1xf32> to vector<8x8xf32>
    %75 = arith.subf %71, %74 : vector<8x8xf32>
    %76 = math.exp %75 : vector<8x8xf32>
    %cst_30 = arith.constant dense<0.000000e+00> : vector<8xf32>
    %77 = vector.multi_reduction <add>, %76, %cst_30 [1] : vector<8x8xf32> to vector<8xf32>
    %78 = vector.shape_cast %77 : vector<8xf32> to vector<8x1xf32>
    %79 = tpu.reciprocal %78 {approx = true} : vector<8x1xf32> -> vector<8x1xf32>
    %80 = vector.broadcast %79 : vector<8x1xf32> to vector<8x8xf32>
    %81 = arith.mulf %76, %80 : vector<8x8xf32>
    %82 = arith.truncf %81 : vector<8x8xf32> to vector<8x8xbf16>
    %cst_31 = arith.constant dense<0.000000e+00> : vector<8x8xf32>
    %83 = tpu.matmul %82, %66, %cst_31 {dimension_numbers = #tpu.dot_dimension_numbers<[1], [0], [0], [1], [0, 0, 1, 1], [], []>} : vector<8x8xbf16>, vector<8x8xbf16>, vector<8x8xf32> -> vector<8x8xf32>
    %84 = arith.truncf %83 : vector<8x8xf32> to vector<8x8xbf16>
    %c8 = arith.constant 8 : index
    %c0_32 = arith.constant 0 : index
    %85 = vector.load %arg7[%c8, %c0_32] : memref<32x32xbf16, #tpu.memory_space<vmem>>, vector<8x32xbf16>
    %cst_33 = arith.constant dense<0.000000e+00> : vector<8x32xf32>
    %86 = tpu.matmul %84, %85, %cst_33 {dimension_numbers = #tpu.dot_dimension_numbers<[1], [0], [0], [1], [0, 0, 1, 1], [], []>} : vector<8x8xbf16>, vector<8x32xbf16>, vector<8x32xf32> -> vector<8x32xf32>
    %87 = arith.addf %60, %86 : vector<8x32xf32>
    %88 = vector.extract_strided_slice %32 {offsets = [0, 16], sizes = [8, 8], strides = [1, 1]} : vector<8x96xf32> to vector<8x8xf32>
    %89 = arith.truncf %88 : vector<8x8xf32> to vector<8x8xbf16>
    %90 = vector.extract_strided_slice %32 {offsets = [0, 48], sizes = [8, 8], strides = [1, 1]} : vector<8x96xf32> to vector<8x8xf32>
    %91 = arith.truncf %90 : vector<8x8xf32> to vector<8x8xbf16>
    %92 = vector.extract_strided_slice %32 {offsets = [0, 80], sizes = [8, 8], strides = [1, 1]} : vector<8x96xf32> to vector<8x8xf32>
    %93 = arith.truncf %92 : vector<8x8xf32> to vector<8x8xbf16>
    %cst_34 = arith.constant dense<0.000000e+00> : vector<8x8xf32>
    %94 = tpu.matmul %89, %91, %cst_34 {dimension_numbers = #tpu.dot_dimension_numbers<[1], [1], [0], [0], [0, 0, 1, 0], [], []>} : vector<8x8xbf16>, vector<8x8xbf16>, vector<8x8xf32> -> vector<8x8xf32>
    %cst_35 = arith.constant 0.353553385 : f32
    %95 = vector.broadcast %cst_35 : f32 to vector<8x8xf32>
    %96 = arith.mulf %94, %95 : vector<8x8xf32>
    %97 = vector.broadcast %4 : vector<1x8xf32> to vector<8x8xf32>
    %98 = arith.addf %96, %97 : vector<8x8xf32>
    %cst_36 = arith.constant dense<0xFF800000> : vector<8xf32>
    %99 = vector.multi_reduction <maximumf>, %98, %cst_36 [1] : vector<8x8xf32> to vector<8xf32>
    %100 = vector.shape_cast %99 : vector<8xf32> to vector<8x1xf32>
    %101 = vector.broadcast %100 : vector<8x1xf32> to vector<8x8xf32>
    %102 = arith.subf %98, %101 : vector<8x8xf32>
    %103 = math.exp %102 : vector<8x8xf32>
    %cst_37 = arith.constant dense<0.000000e+00> : vector<8xf32>
    %104 = vector.multi_reduction <add>, %103, %cst_37 [1] : vector<8x8xf32> to vector<8xf32>
    %105 = vector.shape_cast %104 : vector<8xf32> to vector<8x1xf32>
    %106 = tpu.reciprocal %105 {approx = true} : vector<8x1xf32> -> vector<8x1xf32>
    %107 = vector.broadcast %106 : vector<8x1xf32> to vector<8x8xf32>
    %108 = arith.mulf %103, %107 : vector<8x8xf32>
    %109 = arith.truncf %108 : vector<8x8xf32> to vector<8x8xbf16>
    %cst_38 = arith.constant dense<0.000000e+00> : vector<8x8xf32>
    %110 = tpu.matmul %109, %93, %cst_38 {dimension_numbers = #tpu.dot_dimension_numbers<[1], [0], [0], [1], [0, 0, 1, 1], [], []>} : vector<8x8xbf16>, vector<8x8xbf16>, vector<8x8xf32> -> vector<8x8xf32>
    %111 = arith.truncf %110 : vector<8x8xf32> to vector<8x8xbf16>
    %c16 = arith.constant 16 : index
    %c0_39 = arith.constant 0 : index
    %112 = vector.load %arg7[%c16, %c0_39] : memref<32x32xbf16, #tpu.memory_space<vmem>>, vector<8x32xbf16>
    %cst_40 = arith.constant dense<0.000000e+00> : vector<8x32xf32>
    %113 = tpu.matmul %111, %112, %cst_40 {dimension_numbers = #tpu.dot_dimension_numbers<[1], [0], [0], [1], [0, 0, 1, 1], [], []>} : vector<8x8xbf16>, vector<8x32xbf16>, vector<8x32xf32> -> vector<8x32xf32>
    %114 = arith.addf %87, %113 : vector<8x32xf32>
    %115 = vector.extract_strided_slice %32 {offsets = [0, 24], sizes = [8, 8], strides = [1, 1]} : vector<8x96xf32> to vector<8x8xf32>
    %116 = arith.truncf %115 : vector<8x8xf32> to vector<8x8xbf16>
    %117 = vector.extract_strided_slice %32 {offsets = [0, 56], sizes = [8, 8], strides = [1, 1]} : vector<8x96xf32> to vector<8x8xf32>
    %118 = arith.truncf %117 : vector<8x8xf32> to vector<8x8xbf16>
    %119 = vector.extract_strided_slice %32 {offsets = [0, 88], sizes = [8, 8], strides = [1, 1]} : vector<8x96xf32> to vector<8x8xf32>
    %120 = arith.truncf %119 : vector<8x8xf32> to vector<8x8xbf16>
    %cst_41 = arith.constant dense<0.000000e+00> : vector<8x8xf32>
    %121 = tpu.matmul %116, %118, %cst_41 {dimension_numbers = #tpu.dot_dimension_numbers<[1], [1], [0], [0], [0, 0, 1, 0], [], []>} : vector<8x8xbf16>, vector<8x8xbf16>, vector<8x8xf32> -> vector<8x8xf32>
    %cst_42 = arith.constant 0.353553385 : f32
    %122 = vector.broadcast %cst_42 : f32 to vector<8x8xf32>
    %123 = arith.mulf %121, %122 : vector<8x8xf32>
    %124 = vector.broadcast %4 : vector<1x8xf32> to vector<8x8xf32>
    %125 = arith.addf %123, %124 : vector<8x8xf32>
    %cst_43 = arith.constant dense<0xFF800000> : vector<8xf32>
    %126 = vector.multi_reduction <maximumf>, %125, %cst_43 [1] : vector<8x8xf32> to vector<8xf32>
    %127 = vector.shape_cast %126 : vector<8xf32> to vector<8x1xf32>
    %128 = vector.broadcast %127 : vector<8x1xf32> to vector<8x8xf32>
    %129 = arith.subf %125, %128 : vector<8x8xf32>
    %130 = math.exp %129 : vector<8x8xf32>
    %cst_44 = arith.constant dense<0.000000e+00> : vector<8xf32>
    %131 = vector.multi_reduction <add>, %130, %cst_44 [1] : vector<8x8xf32> to vector<8xf32>
    %132 = vector.shape_cast %131 : vector<8xf32> to vector<8x1xf32>
    %133 = tpu.reciprocal %132 {approx = true} : vector<8x1xf32> -> vector<8x1xf32>
    %134 = vector.broadcast %133 : vector<8x1xf32> to vector<8x8xf32>
    %135 = arith.mulf %130, %134 : vector<8x8xf32>
    %136 = arith.truncf %135 : vector<8x8xf32> to vector<8x8xbf16>
    %cst_45 = arith.constant dense<0.000000e+00> : vector<8x8xf32>
    %137 = tpu.matmul %136, %120, %cst_45 {dimension_numbers = #tpu.dot_dimension_numbers<[1], [0], [0], [1], [0, 0, 1, 1], [], []>} : vector<8x8xbf16>, vector<8x8xbf16>, vector<8x8xf32> -> vector<8x8xf32>
    %138 = arith.truncf %137 : vector<8x8xf32> to vector<8x8xbf16>
    %c24 = arith.constant 24 : index
    %c0_46 = arith.constant 0 : index
    %139 = vector.load %arg7[%c24, %c0_46] : memref<32x32xbf16, #tpu.memory_space<vmem>>, vector<8x32xbf16>
    %cst_47 = arith.constant dense<0.000000e+00> : vector<8x32xf32>
    %140 = tpu.matmul %138, %139, %cst_47 {dimension_numbers = #tpu.dot_dimension_numbers<[1], [0], [0], [1], [0, 0, 1, 1], [], []>} : vector<8x8xbf16>, vector<8x32xbf16>, vector<8x32xf32> -> vector<8x32xf32>
    %141 = arith.addf %114, %140 : vector<8x32xf32>
    %142 = arith.addf %2, %141 : vector<8x32xf32>
    %c0_48 = arith.constant 0 : index
    %c0_49 = arith.constant 0 : index
    %143 = vector.load %arg8[%c0_48, %c0_49] : memref<1x32xf32, #tpu.memory_space<vmem>>, vector<1x32xf32>
    %144 = vector.broadcast %143 : vector<1x32xf32> to vector<8x32xf32>
    %145 = arith.addf %142, %144 : vector<8x32xf32>
    %146 = arith.truncf %145 : vector<8x32xf32> to vector<8x32xbf16>
    %c0_50 = arith.constant 0 : index
    %c0_51 = arith.constant 0 : index
    %c0_52 = arith.constant 0 : index
    %147 = vector.load %arg9[%c0_50, %c0_51, %c0_52] : memref<1x8x32xbf16, #tpu.memory_space<vmem>>, vector<1x8x32xbf16>
    %148 = vector.shape_cast %147 : vector<1x8x32xbf16> to vector<8x32xbf16>
    %149 = vector.shape_cast %146 : vector<8x32xbf16> to vector<1x8x32xbf16>
    tpu.vector_store %arg9[%c0_50, %c0_51, %c0_52], %149 {strides = array<i32>} : memref<1x8x32xbf16, #tpu.memory_space<vmem>>, vector<1x8x32xbf16>,
    return
  }
  func.func @transform_0(%arg0: i32) -> (i32, i32, i32) {
    %c0_i32 = arith.constant 0 : i32
    %c0_i32_0 = arith.constant 0 : i32
    %c0_i32_1 = arith.constant 0 : i32
    return %arg0, %c0_i32, %c0_i32_0 : i32, i32, i32
  }
  func.func @transform_1(%arg0: i32) -> (i32, i32, i32) {
    %c0_i32 = arith.constant 0 : i32
    %c0_i32_0 = arith.constant 0 : i32
    %c0_i32_1 = arith.constant 0 : i32
    return %arg0, %c0_i32, %c0_i32_0 : i32, i32, i32
  }
  func.func @transform_2(%arg0: i32) -> (i32, i32) {
    %c0_i32 = arith.constant 0 : i32
    %c0_i32_0 = arith.constant 0 : i32
    %c0_i32_1 = arith.constant 0 : i32
    return %c0_i32, %c0_i32_0 : i32, i32
  }
  func.func @transform_3(%arg0: i32) -> (i32, i32) {
    %c0_i32 = arith.constant 0 : i32
    %c0_i32_0 = arith.constant 0 : i32
    %c0_i32_1 = arith.constant 0 : i32
    return %c0_i32, %c0_i32_0 : i32, i32
  }
  func.func @transform_4(%arg0: i32) -> (i32, i32) {
    %c0_i32 = arith.constant 0 : i32
    %c0_i32_0 = arith.constant 0 : i32
    %c0_i32_1 = arith.constant 0 : i32
    return %c0_i32, %c0_i32_0 : i32, i32
  }
  func.func @transform_5(%arg0: i32) -> (i32, i32) {
    %c0_i32 = arith.constant 0 : i32
    %c0_i32_0 = arith.constant 0 : i32
    %c0_i32_1 = arith.constant 0 : i32
    return %c0_i32, %c0_i32_0 : i32, i32
  }
  func.func @transform_6(%arg0: i32) -> (i32, i32) {
    %c0_i32 = arith.constant 0 : i32
    %c0_i32_0 = arith.constant 0 : i32
    %c0_i32_1 = arith.constant 0 : i32
    return %c0_i32, %c0_i32_0 : i32, i32
  }
  func.func @transform_7(%arg0: i32) -> (i32, i32) {
    %c0_i32 = arith.constant 0 : i32
    %c0_i32_0 = arith.constant 0 : i32
    %c0_i32_1 = arith.constant 0 : i32
    return %c0_i32, %c0_i32_0 : i32, i32
  }
  func.func @transform_8(%arg0: i32) -> (i32, i32, i32) {
    %c0_i32 = arith.constant 0 : i32
    %c0_i32_0 = arith.constant 0 : i32
    %c0_i32_1 = arith.constant 0 : i32
    return %arg0, %c0_i32, %c0_i32_0 : i32, i32, i32
  }
}

module attributes {stable_mosaic.version = 11 : i64} {
  func.func @_conv_block_kernel(%arg0: i32, %arg1: memref<1x8x32xbf16, #tpu.memory_space<vmem>>, %arg2: memref<1x32xf32, #tpu.memory_space<vmem>>, %arg3: memref<1x32xf32, #tpu.memory_space<vmem>>, %arg4: memref<32x64xbf16, #tpu.memory_space<vmem>>, %arg5: memref<1x64xf32, #tpu.memory_space<vmem>>, %arg6: memref<3x32xf32, #tpu.memory_space<vmem>>, %arg7: memref<1x32xf32, #tpu.memory_space<vmem>>, %arg8: memref<1x32xf32, #tpu.memory_space<vmem>>, %arg9: memref<32x32xbf16, #tpu.memory_space<vmem>>, %arg10: memref<1x32xf32, #tpu.memory_space<vmem>>, %arg11: memref<1x8x32xbf16, #tpu.memory_space<vmem>>) attributes {dimension_semantics = [#tpu.dimension_semantics<parallel>], iteration_bounds = array<i64: 2>, scalar_prefetch = 0 : i64, scratch_operands = 0 : i64, tpu.core_type = #tpu.core_type<tc>, window_params = [{transform_indices = @transform_0, window_bounds = array<i64: 1, 8, 32>}, {pipeline_mode = #tpu.pipeline_mode<synchronous>, transform_indices = @transform_1, window_bounds = array<i64: 1, 32>}, {pipeline_mode = #tpu.pipeline_mode<synchronous>, transform_indices = @transform_2, window_bounds = array<i64: 1, 32>}, {pipeline_mode = #tpu.pipeline_mode<synchronous>, transform_indices = @transform_3, window_bounds = array<i64: 32, 64>}, {pipeline_mode = #tpu.pipeline_mode<synchronous>, transform_indices = @transform_4, window_bounds = array<i64: 1, 64>}, {pipeline_mode = #tpu.pipeline_mode<synchronous>, transform_indices = @transform_5, window_bounds = array<i64: 3, 32>}, {pipeline_mode = #tpu.pipeline_mode<synchronous>, transform_indices = @transform_6, window_bounds = array<i64: 1, 32>}, {pipeline_mode = #tpu.pipeline_mode<synchronous>, transform_indices = @transform_7, window_bounds = array<i64: 1, 32>}, {pipeline_mode = #tpu.pipeline_mode<synchronous>, transform_indices = @transform_8, window_bounds = array<i64: 32, 32>}, {pipeline_mode = #tpu.pipeline_mode<synchronous>, transform_indices = @transform_9, window_bounds = array<i64: 1, 32>}, {transform_indices = @transform_10, window_bounds = array<i64: 1, 8, 32>}]} {
    %c0 = arith.constant 0 : index
    %c0_0 = arith.constant 0 : index
    %c0_1 = arith.constant 0 : index
    %0 = vector.load %arg1[%c0, %c0_0, %c0_1] : memref<1x8x32xbf16, #tpu.memory_space<vmem>>, vector<1x8x32xbf16>
    %1 = vector.shape_cast %0 : vector<1x8x32xbf16> to vector<8x32xbf16>
    %2 = arith.extf %1 : vector<8x32xbf16> to vector<8x32xf32>
    %c0_2 = arith.constant 0 : index
    %c0_3 = arith.constant 0 : index
    %3 = vector.load %arg2[%c0_2, %c0_3] : memref<1x32xf32, #tpu.memory_space<vmem>>, vector<1x32xf32>
    %c0_4 = arith.constant 0 : index
    %c0_5 = arith.constant 0 : index
    %4 = vector.load %arg3[%c0_4, %c0_5] : memref<1x32xf32, #tpu.memory_space<vmem>>, vector<1x32xf32>
    %cst = arith.constant dense<0.000000e+00> : vector<8xf32>
    %5 = vector.multi_reduction <add>, %2, %cst [1] : vector<8x32xf32> to vector<8xf32>
    %6 = vector.shape_cast %5 : vector<8xf32> to vector<8x1xf32>
    %cst_6 = arith.constant 3.200000e+01 : f32
    %7 = vector.broadcast %cst_6 : f32 to vector<8x1xf32>
    %8 = arith.divf %6, %7 : vector<8x1xf32>
    %9 = vector.broadcast %8 : vector<8x1xf32> to vector<8x32xf32>
    %10 = arith.subf %2, %9 : vector<8x32xf32>
    %11 = arith.mulf %10, %10 : vector<8x32xf32>
    %cst_7 = arith.constant dense<0.000000e+00> : vector<8xf32>
    %12 = vector.multi_reduction <add>, %11, %cst_7 [1] : vector<8x32xf32> to vector<8xf32>
    %13 = vector.shape_cast %12 : vector<8xf32> to vector<8x1xf32>
    %cst_8 = arith.constant 3.200000e+01 : f32
    %14 = vector.broadcast %cst_8 : f32 to vector<8x1xf32>
    %15 = arith.divf %13, %14 : vector<8x1xf32>
    %cst_9 = arith.constant 9.99999974E-6 : f32
    %16 = vector.broadcast %cst_9 : f32 to vector<8x1xf32>
    %17 = arith.addf %15, %16 : vector<8x1xf32>
    %18 = math.rsqrt %17 : vector<8x1xf32>
    %19 = vector.broadcast %18 : vector<8x1xf32> to vector<8x32xf32>
    %20 = arith.mulf %10, %19 : vector<8x32xf32>
    %21 = vector.broadcast %3 : vector<1x32xf32> to vector<8x32xf32>
    %22 = arith.mulf %20, %21 : vector<8x32xf32>
    %23 = vector.broadcast %4 : vector<1x32xf32> to vector<8x32xf32>
    %24 = arith.addf %22, %23 : vector<8x32xf32>
    %25 = arith.truncf %24 : vector<8x32xf32> to vector<8x32xbf16>
    %c0_10 = arith.constant 0 : index
    %c0_11 = arith.constant 0 : index
    %26 = vector.load %arg4[%c0_10, %c0_11] : memref<32x64xbf16, #tpu.memory_space<vmem>>, vector<32x64xbf16>
    %cst_12 = arith.constant dense<0.000000e+00> : vector<8x64xf32>
    %27 = tpu.matmul %25, %26, %cst_12 {dimension_numbers = #tpu.dot_dimension_numbers<[1], [0], [0], [1], [0, 0, 1, 1], [], []>} : vector<8x32xbf16>, vector<32x64xbf16>, vector<8x64xf32> -> vector<8x64xf32>
    %c0_13 = arith.constant 0 : index
    %c0_14 = arith.constant 0 : index
    %28 = vector.load %arg5[%c0_13, %c0_14] : memref<1x64xf32, #tpu.memory_space<vmem>>, vector<1x64xf32>
    %29 = vector.broadcast %28 : vector<1x64xf32> to vector<8x64xf32>
    %30 = arith.addf %27, %29 : vector<8x64xf32>
    %31 = vector.extract_strided_slice %30 {offsets = [0, 0], sizes = [8, 32], strides = [1, 1]} : vector<8x64xf32> to vector<8x32xf32>
    %32 = vector.extract_strided_slice %30 {offsets = [0, 32], sizes = [8, 32], strides = [1, 1]} : vector<8x64xf32> to vector<8x32xf32>
    %33 = arith.negf %32 : vector<8x32xf32>
    %34 = math.exp %33 : vector<8x32xf32>
    %cst_15 = arith.constant 1.000000e+00 : f32
    %35 = vector.broadcast %cst_15 : f32 to vector<8x32xf32>
    %36 = arith.addf %35, %34 : vector<8x32xf32>
    %37 = arith.divf %35, %36 : vector<8x32xf32>
    %38 = arith.mulf %31, %37 : vector<8x32xf32>
    %39 = tpu.iota {dimensions = array<i32: 0>} : vector<8x1xi32>
    %cst_16 = arith.constant 0.000000e+00 : f32
    %40 = vector.broadcast %cst_16 : f32 to vector<8x32xf32>
    %c1_i32 = arith.constant 1 : i32
    %41 = tpu.dynamic_rotate %38 by %c1_i32 dim 0 : vector<8x32xf32>, i32 -> vector<8x32xf32>
    %c-1_i32 = arith.constant -1 : i32
    %42 = vector.broadcast %c-1_i32 : i32 to vector<8x1xi32>
    %43 = arith.addi %39, %42 : vector<8x1xi32>
    %c0_i32 = arith.constant 0 : i32
    %44 = vector.broadcast %c0_i32 : i32 to vector<8x1xi32>
    %45 = arith.cmpi sge, %43, %44 : vector<8x1xi32>
    %c-1_i32_17 = arith.constant -1 : i32
    %46 = vector.broadcast %c-1_i32_17 : i32 to vector<8x1xi32>
    %47 = arith.addi %39, %46 : vector<8x1xi32>
    %c8_i32 = arith.constant 8 : i32
    %48 = vector.broadcast %c8_i32 : i32 to vector<8x1xi32>
    %49 = arith.cmpi slt, %47, %48 : vector<8x1xi32>
    %50 = arith.andi %45, %49 : vector<8x1xi1>
    %51 = arith.extui %50 : vector<8x1xi1> to vector<8x1xi32>
    %52 = arith.sitofp %51 : vector<8x1xi32> to vector<8x1xf32>
    %53 = vector.broadcast %52 : vector<8x1xf32> to vector<8x32xf32>
    %54 = arith.mulf %41, %53 : vector<8x32xf32>
    %c0_18 = arith.constant 0 : index
    %c0_19 = arith.constant 0 : index
    %55 = vector.load %arg6[%c0_18, %c0_19] : memref<3x32xf32, #tpu.memory_space<vmem>>, vector<1x32xf32>
    %56 = vector.broadcast %55 : vector<1x32xf32> to vector<8x32xf32>
    %57 = arith.mulf %54, %56 : vector<8x32xf32>
    %58 = arith.addf %40, %57 : vector<8x32xf32>
    %c0_i32_20 = arith.constant 0 : i32
    %59 = vector.broadcast %c0_i32_20 : i32 to vector<8x1xi32>
    %60 = arith.addi %39, %59 : vector<8x1xi32>
    %c0_i32_21 = arith.constant 0 : i32
    %61 = vector.broadcast %c0_i32_21 : i32 to vector<8x1xi32>
    %62 = arith.cmpi sge, %60, %61 : vector<8x1xi32>
    %c0_i32_22 = arith.constant 0 : i32
    %63 = vector.broadcast %c0_i32_22 : i32 to vector<8x1xi32>
    %64 = arith.addi %39, %63 : vector<8x1xi32>
    %c8_i32_23 = arith.constant 8 : i32
    %65 = vector.broadcast %c8_i32_23 : i32 to vector<8x1xi32>
    %66 = arith.cmpi slt, %64, %65 : vector<8x1xi32>
    %67 = arith.andi %62, %66 : vector<8x1xi1>
    %68 = arith.extui %67 : vector<8x1xi1> to vector<8x1xi32>
    %69 = arith.sitofp %68 : vector<8x1xi32> to vector<8x1xf32>
    %70 = vector.broadcast %69 : vector<8x1xf32> to vector<8x32xf32>
    %71 = arith.mulf %38, %70 : vector<8x32xf32>
    %c1 = arith.constant 1 : index
    %c0_24 = arith.constant 0 : index
    %72 = vector.load %arg6[%c1, %c0_24] : memref<3x32xf32, #tpu.memory_space<vmem>>, vector<1x32xf32>
    %73 = vector.broadcast %72 : vector<1x32xf32> to vector<8x32xf32>
    %74 = arith.mulf %71, %73 : vector<8x32xf32>
    %75 = arith.addf %58, %74 : vector<8x32xf32>
    %c7_i32 = arith.constant 7 : i32
    %76 = tpu.dynamic_rotate %38 by %c7_i32 dim 0 : vector<8x32xf32>, i32 -> vector<8x32xf32>
    %c1_i32_25 = arith.constant 1 : i32
    %77 = vector.broadcast %c1_i32_25 : i32 to vector<8x1xi32>
    %78 = arith.addi %39, %77 : vector<8x1xi32>
    %c0_i32_26 = arith.constant 0 : i32
    %79 = vector.broadcast %c0_i32_26 : i32 to vector<8x1xi32>
    %80 = arith.cmpi sge, %78, %79 : vector<8x1xi32>
    %c1_i32_27 = arith.constant 1 : i32
    %81 = vector.broadcast %c1_i32_27 : i32 to vector<8x1xi32>
    %82 = arith.addi %39, %81 : vector<8x1xi32>
    %c8_i32_28 = arith.constant 8 : i32
    %83 = vector.broadcast %c8_i32_28 : i32 to vector<8x1xi32>
    %84 = arith.cmpi slt, %82, %83 : vector<8x1xi32>
    %85 = arith.andi %80, %84 : vector<8x1xi1>
    %86 = arith.extui %85 : vector<8x1xi1> to vector<8x1xi32>
    %87 = arith.sitofp %86 : vector<8x1xi32> to vector<8x1xf32>
    %88 = vector.broadcast %87 : vector<8x1xf32> to vector<8x32xf32>
    %89 = arith.mulf %76, %88 : vector<8x32xf32>
    %c2 = arith.constant 2 : index
    %c0_29 = arith.constant 0 : index
    %90 = vector.load %arg6[%c2, %c0_29] : memref<3x32xf32, #tpu.memory_space<vmem>>, vector<1x32xf32>
    %91 = vector.broadcast %90 : vector<1x32xf32> to vector<8x32xf32>
    %92 = arith.mulf %89, %91 : vector<8x32xf32>
    %93 = arith.addf %75, %92 : vector<8x32xf32>
    %c0_30 = arith.constant 0 : index
    %c0_31 = arith.constant 0 : index
    %94 = vector.load %arg7[%c0_30, %c0_31] : memref<1x32xf32, #tpu.memory_space<vmem>>, vector<1x32xf32>
    %95 = vector.broadcast %94 : vector<1x32xf32> to vector<8x32xf32>
    %96 = arith.mulf %93, %95 : vector<8x32xf32>
    %c0_32 = arith.constant 0 : index
    %c0_33 = arith.constant 0 : index
    %97 = vector.load %arg8[%c0_32, %c0_33] : memref<1x32xf32, #tpu.memory_space<vmem>>, vector<1x32xf32>
    %98 = vector.broadcast %97 : vector<1x32xf32> to vector<8x32xf32>
    %99 = arith.addf %96, %98 : vector<8x32xf32>
    %100 = arith.negf %99 : vector<8x32xf32>
    %101 = math.exp %100 : vector<8x32xf32>
    %cst_34 = arith.constant 1.000000e+00 : f32
    %102 = vector.broadcast %cst_34 : f32 to vector<8x32xf32>
    %103 = arith.addf %102, %101 : vector<8x32xf32>
    %104 = arith.divf %102, %103 : vector<8x32xf32>
    %105 = arith.mulf %99, %104 : vector<8x32xf32>
    %106 = arith.truncf %105 : vector<8x32xf32> to vector<8x32xbf16>
    %c0_35 = arith.constant 0 : index
    %c0_36 = arith.constant 0 : index
    %107 = vector.load %arg9[%c0_35, %c0_36] : memref<32x32xbf16, #tpu.memory_space<vmem>>, vector<32x32xbf16>
    %cst_37 = arith.constant dense<0.000000e+00> : vector<8x32xf32>
    %108 = tpu.matmul %106, %107, %cst_37 {dimension_numbers = #tpu.dot_dimension_numbers<[1], [0], [0], [1], [0, 0, 1, 1], [], []>} : vector<8x32xbf16>, vector<32x32xbf16>, vector<8x32xf32> -> vector<8x32xf32>
    %c0_38 = arith.constant 0 : index
    %c0_39 = arith.constant 0 : index
    %109 = vector.load %arg10[%c0_38, %c0_39] : memref<1x32xf32, #tpu.memory_space<vmem>>, vector<1x32xf32>
    %110 = vector.broadcast %109 : vector<1x32xf32> to vector<8x32xf32>
    %111 = arith.addf %108, %110 : vector<8x32xf32>
    %112 = arith.addf %2, %111 : vector<8x32xf32>
    %113 = arith.truncf %112 : vector<8x32xf32> to vector<8x32xbf16>
    %c0_40 = arith.constant 0 : index
    %c0_41 = arith.constant 0 : index
    %c0_42 = arith.constant 0 : index
    %114 = vector.load %arg11[%c0_40, %c0_41, %c0_42] : memref<1x8x32xbf16, #tpu.memory_space<vmem>>, vector<1x8x32xbf16>
    %115 = vector.shape_cast %114 : vector<1x8x32xbf16> to vector<8x32xbf16>
    %116 = vector.shape_cast %113 : vector<8x32xbf16> to vector<1x8x32xbf16>
    tpu.vector_store %arg11[%c0_40, %c0_41, %c0_42], %116 {strides = array<i32>} : memref<1x8x32xbf16, #tpu.memory_space<vmem>>, vector<1x8x32xbf16>,
    return
  }
  func.func @transform_0(%arg0: i32) -> (i32, i32, i32) {
    %c0_i32 = arith.constant 0 : i32
    %c0_i32_0 = arith.constant 0 : i32
    %c0_i32_1 = arith.constant 0 : i32
    return %arg0, %c0_i32, %c0_i32_0 : i32, i32, i32
  }
  func.func @transform_1(%arg0: i32) -> (i32, i32) {
    %c0_i32 = arith.constant 0 : i32
    %c0_i32_0 = arith.constant 0 : i32
    %c0_i32_1 = arith.constant 0 : i32
    return %c0_i32, %c0_i32_0 : i32, i32
  }
  func.func @transform_2(%arg0: i32) -> (i32, i32) {
    %c0_i32 = arith.constant 0 : i32
    %c0_i32_0 = arith.constant 0 : i32
    %c0_i32_1 = arith.constant 0 : i32
    return %c0_i32, %c0_i32_0 : i32, i32
  }
  func.func @transform_3(%arg0: i32) -> (i32, i32) {
    %c0_i32 = arith.constant 0 : i32
    %c0_i32_0 = arith.constant 0 : i32
    %c0_i32_1 = arith.constant 0 : i32
    return %c0_i32, %c0_i32_0 : i32, i32
  }
  func.func @transform_4(%arg0: i32) -> (i32, i32) {
    %c0_i32 = arith.constant 0 : i32
    %c0_i32_0 = arith.constant 0 : i32
    %c0_i32_1 = arith.constant 0 : i32
    return %c0_i32, %c0_i32_0 : i32, i32
  }
  func.func @transform_5(%arg0: i32) -> (i32, i32) {
    %c0_i32 = arith.constant 0 : i32
    %c0_i32_0 = arith.constant 0 : i32
    %c0_i32_1 = arith.constant 0 : i32
    return %c0_i32, %c0_i32_0 : i32, i32
  }
  func.func @transform_6(%arg0: i32) -> (i32, i32) {
    %c0_i32 = arith.constant 0 : i32
    %c0_i32_0 = arith.constant 0 : i32
    %c0_i32_1 = arith.constant 0 : i32
    return %c0_i32, %c0_i32_0 : i32, i32
  }
  func.func @transform_7(%arg0: i32) -> (i32, i32) {
    %c0_i32 = arith.constant 0 : i32
    %c0_i32_0 = arith.constant 0 : i32
    %c0_i32_1 = arith.constant 0 : i32
    return %c0_i32, %c0_i32_0 : i32, i32
  }
  func.func @transform_8(%arg0: i32) -> (i32, i32) {
    %c0_i32 = arith.constant 0 : i32
    %c0_i32_0 = arith.constant 0 : i32
    %c0_i32_1 = arith.constant 0 : i32
    return %c0_i32, %c0_i32_0 : i32, i32
  }
  func.func @transform_9(%arg0: i32) -> (i32, i32) {
    %c0_i32 = arith.constant 0 : i32
    %c0_i32_0 = arith.constant 0 : i32
    %c0_i32_1 = arith.constant 0 : i32
    return %c0_i32, %c0_i32_0 : i32, i32
  }
  func.func @transform_10(%arg0: i32) -> (i32, i32, i32) {
    %c0_i32 = arith.constant 0 : i32
    %c0_i32_0 = arith.constant 0 : i32
    %c0_i32_1 = arith.constant 0 : i32
    return %arg0, %c0_i32, %c0_i32_0 : i32, i32, i32
  }
}

module attributes {stable_mosaic.version = 11 : i64} {
  func.func @kernel(%arg0: i32, %arg1: memref<16x32xbf16, #tpu.memory_space<vmem>>, %arg2: memref<1x32xf32, #tpu.memory_space<vmem>>, %arg3: memref<1x32xf32, #tpu.memory_space<vmem>>, %arg4: memref<32x64xbf16, #tpu.memory_space<vmem>>, %arg5: memref<1x64xf32, #tpu.memory_space<vmem>>, %arg6: memref<64x32xbf16, #tpu.memory_space<vmem>>, %arg7: memref<1x32xf32, #tpu.memory_space<vmem>>, %arg8: memref<1x32xf32, #tpu.memory_space<vmem>>, %arg9: memref<1x32xf32, #tpu.memory_space<vmem>>, %arg10: memref<16x32xbf16, #tpu.memory_space<vmem>>) attributes {dimension_semantics = [#tpu.dimension_semantics<parallel>], iteration_bounds = array<i64: 1>, scalar_prefetch = 0 : i64, scratch_operands = 0 : i64, tpu.core_type = #tpu.core_type<tc>, window_params = [{transform_indices = @transform_0, window_bounds = array<i64: 16, 32>}, {pipeline_mode = #tpu.pipeline_mode<synchronous>, transform_indices = @transform_1, window_bounds = array<i64: 1, 32>}, {pipeline_mode = #tpu.pipeline_mode<synchronous>, transform_indices = @transform_2, window_bounds = array<i64: 1, 32>}, {pipeline_mode = #tpu.pipeline_mode<synchronous>, transform_indices = @transform_3, window_bounds = array<i64: 32, 64>}, {pipeline_mode = #tpu.pipeline_mode<synchronous>, transform_indices = @transform_4, window_bounds = array<i64: 1, 64>}, {pipeline_mode = #tpu.pipeline_mode<synchronous>, transform_indices = @transform_5, window_bounds = array<i64: 64, 32>}, {pipeline_mode = #tpu.pipeline_mode<synchronous>, transform_indices = @transform_6, window_bounds = array<i64: 1, 32>}, {pipeline_mode = #tpu.pipeline_mode<synchronous>, transform_indices = @transform_7, window_bounds = array<i64: 1, 32>}, {pipeline_mode = #tpu.pipeline_mode<synchronous>, transform_indices = @transform_8, window_bounds = array<i64: 1, 32>}, {transform_indices = @transform_9, window_bounds = array<i64: 16, 32>}]} {
    %c0 = arith.constant 0 : index
    %c0_0 = arith.constant 0 : index
    %0 = vector.load %arg1[%c0, %c0_0] : memref<16x32xbf16, #tpu.memory_space<vmem>>, vector<16x32xbf16>
    %1 = arith.extf %0 : vector<16x32xbf16> to vector<16x32xf32>
    %c0_1 = arith.constant 0 : index
    %c0_2 = arith.constant 0 : index
    %2 = vector.load %arg2[%c0_1, %c0_2] : memref<1x32xf32, #tpu.memory_space<vmem>>, vector<1x32xf32>
    %c0_3 = arith.constant 0 : index
    %c0_4 = arith.constant 0 : index
    %3 = vector.load %arg3[%c0_3, %c0_4] : memref<1x32xf32, #tpu.memory_space<vmem>>, vector<1x32xf32>
    %cst = arith.constant dense<0.000000e+00> : vector<16xf32>
    %4 = vector.multi_reduction <add>, %1, %cst [1] : vector<16x32xf32> to vector<16xf32>
    %5 = vector.shape_cast %4 : vector<16xf32> to vector<16x1xf32>
    %cst_5 = arith.constant 3.200000e+01 : f32
    %6 = vector.broadcast %cst_5 : f32 to vector<16x1xf32>
    %7 = arith.divf %5, %6 : vector<16x1xf32>
    %8 = vector.broadcast %7 : vector<16x1xf32> to vector<16x32xf32>
    %9 = arith.subf %1, %8 : vector<16x32xf32>
    %10 = arith.mulf %9, %9 : vector<16x32xf32>
    %cst_6 = arith.constant dense<0.000000e+00> : vector<16xf32>
    %11 = vector.multi_reduction <add>, %10, %cst_6 [1] : vector<16x32xf32> to vector<16xf32>
    %12 = vector.shape_cast %11 : vector<16xf32> to vector<16x1xf32>
    %cst_7 = arith.constant 3.200000e+01 : f32
    %13 = vector.broadcast %cst_7 : f32 to vector<16x1xf32>
    %14 = arith.divf %12, %13 : vector<16x1xf32>
    %cst_8 = arith.constant 9.99999974E-6 : f32
    %15 = vector.broadcast %cst_8 : f32 to vector<16x1xf32>
    %16 = arith.addf %14, %15 : vector<16x1xf32>
    %17 = math.rsqrt %16 : vector<16x1xf32>
    %18 = vector.broadcast %17 : vector<16x1xf32> to vector<16x32xf32>
    %19 = arith.mulf %9, %18 : vector<16x32xf32>
    %20 = vector.broadcast %2 : vector<1x32xf32> to vector<16x32xf32>
    %21 = arith.mulf %19, %20 : vector<16x32xf32>
    %22 = vector.broadcast %3 : vector<1x32xf32> to vector<16x32xf32>
    %23 = arith.addf %21, %22 : vector<16x32xf32>
    %24 = arith.truncf %23 : vector<16x32xf32> to vector<16x32xbf16>
    %c0_9 = arith.constant 0 : index
    %c0_10 = arith.constant 0 : index
    %25 = vector.load %arg4[%c0_9, %c0_10] : memref<32x64xbf16, #tpu.memory_space<vmem>>, vector<32x64xbf16>
    %cst_11 = arith.constant dense<0.000000e+00> : vector<16x64xf32>
    %26 = tpu.matmul %24, %25, %cst_11 {dimension_numbers = #tpu.dot_dimension_numbers<[1], [0], [0], [1], [0, 0, 1, 1], [], []>} : vector<16x32xbf16>, vector<32x64xbf16>, vector<16x64xf32> -> vector<16x64xf32>
    %c0_12 = arith.constant 0 : index
    %c0_13 = arith.constant 0 : index
    %27 = vector.load %arg5[%c0_12, %c0_13] : memref<1x64xf32, #tpu.memory_space<vmem>>, vector<1x64xf32>
    %28 = vector.broadcast %27 : vector<1x64xf32> to vector<16x64xf32>
    %29 = arith.addf %26, %28 : vector<16x64xf32>
    %30 = arith.negf %29 : vector<16x64xf32>
    %31 = math.exp %30 : vector<16x64xf32>
    %cst_14 = arith.constant 1.000000e+00 : f32
    %32 = vector.broadcast %cst_14 : f32 to vector<16x64xf32>
    %33 = arith.addf %32, %31 : vector<16x64xf32>
    %34 = arith.divf %32, %33 : vector<16x64xf32>
    %35 = arith.mulf %29, %34 : vector<16x64xf32>
    %36 = arith.truncf %35 : vector<16x64xf32> to vector<16x64xbf16>
    %c0_15 = arith.constant 0 : index
    %c0_16 = arith.constant 0 : index
    %37 = vector.load %arg6[%c0_15, %c0_16] : memref<64x32xbf16, #tpu.memory_space<vmem>>, vector<64x32xbf16>
    %cst_17 = arith.constant dense<0.000000e+00> : vector<16x32xf32>
    %38 = tpu.matmul %36, %37, %cst_17 {dimension_numbers = #tpu.dot_dimension_numbers<[1], [0], [0], [1], [0, 0, 1, 1], [], []>} : vector<16x64xbf16>, vector<64x32xbf16>, vector<16x32xf32> -> vector<16x32xf32>
    %c0_18 = arith.constant 0 : index
    %c0_19 = arith.constant 0 : index
    %39 = vector.load %arg7[%c0_18, %c0_19] : memref<1x32xf32, #tpu.memory_space<vmem>>, vector<1x32xf32>
    %40 = vector.broadcast %39 : vector<1x32xf32> to vector<16x32xf32>
    %41 = arith.addf %38, %40 : vector<16x32xf32>
    %cst_20 = arith.constant 5.000000e-01 : f32
    %42 = vector.broadcast %cst_20 : f32 to vector<16x32xf32>
    %43 = arith.mulf %42, %41 : vector<16x32xf32>
    %44 = arith.addf %1, %43 : vector<16x32xf32>
    %c0_21 = arith.constant 0 : index
    %c0_22 = arith.constant 0 : index
    %45 = vector.load %arg8[%c0_21, %c0_22] : memref<1x32xf32, #tpu.memory_space<vmem>>, vector<1x32xf32>
    %c0_23 = arith.constant 0 : index
    %c0_24 = arith.constant 0 : index
    %46 = vector.load %arg9[%c0_23, %c0_24] : memref<1x32xf32, #tpu.memory_space<vmem>>, vector<1x32xf32>
    %cst_25 = arith.constant dense<0.000000e+00> : vector<16xf32>
    %47 = vector.multi_reduction <add>, %44, %cst_25 [1] : vector<16x32xf32> to vector<16xf32>
    %48 = vector.shape_cast %47 : vector<16xf32> to vector<16x1xf32>
    %cst_26 = arith.constant 3.200000e+01 : f32
    %49 = vector.broadcast %cst_26 : f32 to vector<16x1xf32>
    %50 = arith.divf %48, %49 : vector<16x1xf32>
    %51 = vector.broadcast %50 : vector<16x1xf32> to vector<16x32xf32>
    %52 = arith.subf %44, %51 : vector<16x32xf32>
    %53 = arith.mulf %52, %52 : vector<16x32xf32>
    %cst_27 = arith.constant dense<0.000000e+00> : vector<16xf32>
    %54 = vector.multi_reduction <add>, %53, %cst_27 [1] : vector<16x32xf32> to vector<16xf32>
    %55 = vector.shape_cast %54 : vector<16xf32> to vector<16x1xf32>
    %cst_28 = arith.constant 3.200000e+01 : f32
    %56 = vector.broadcast %cst_28 : f32 to vector<16x1xf32>
    %57 = arith.divf %55, %56 : vector<16x1xf32>
    %cst_29 = arith.constant 9.99999974E-6 : f32
    %58 = vector.broadcast %cst_29 : f32 to vector<16x1xf32>
    %59 = arith.addf %57, %58 : vector<16x1xf32>
    %60 = math.rsqrt %59 : vector<16x1xf32>
    %61 = vector.broadcast %60 : vector<16x1xf32> to vector<16x32xf32>
    %62 = arith.mulf %52, %61 : vector<16x32xf32>
    %63 = vector.broadcast %45 : vector<1x32xf32> to vector<16x32xf32>
    %64 = arith.mulf %62, %63 : vector<16x32xf32>
    %65 = vector.broadcast %46 : vector<1x32xf32> to vector<16x32xf32>
    %66 = arith.addf %64, %65 : vector<16x32xf32>
    %67 = arith.truncf %66 : vector<16x32xf32> to vector<16x32xbf16>
    %c0_30 = arith.constant 0 : index
    %c0_31 = arith.constant 0 : index
    %68 = vector.load %arg10[%c0_30, %c0_31] : memref<16x32xbf16, #tpu.memory_space<vmem>>, vector<16x32xbf16>
    tpu.vector_store %arg10[%c0_30, %c0_31], %67 {strides = array<i32>} : memref<16x32xbf16, #tpu.memory_space<vmem>>, vector<16x32xbf16>,
    return
  }
  func.func @transform_0(%arg0: i32) -> (i32, i32) {
    %c0_i32 = arith.constant 0 : i32
    %c0_i32_0 = arith.constant 0 : i32
    return %arg0, %c0_i32 : i32, i32
  }
  func.func @transform_1(%arg0: i32) -> (i32, i32) {
    %c0_i32 = arith.constant 0 : i32
    %c0_i32_0 = arith.constant 0 : i32
    %c0_i32_1 = arith.constant 0 : i32
    return %c0_i32, %c0_i32_0 : i32, i32
  }
  func.func @transform_2(%arg0: i32) -> (i32, i32) {
    %c0_i32 = arith.constant 0 : i32
    %c0_i32_0 = arith.constant 0 : i32
    %c0_i32_1 = arith.constant 0 : i32
    return %c0_i32, %c0_i32_0 : i32, i32
  }
  func.func @transform_3(%arg0: i32) -> (i32, i32) {
    %c0_i32 = arith.constant 0 : i32
    %c0_i32_0 = arith.constant 0 : i32
    %c0_i32_1 = arith.constant 0 : i32
    return %c0_i32, %c0_i32_0 : i32, i32
  }
  func.func @transform_4(%arg0: i32) -> (i32, i32) {
    %c0_i32 = arith.constant 0 : i32
    %c0_i32_0 = arith.constant 0 : i32
    %c0_i32_1 = arith.constant 0 : i32
    return %c0_i32, %c0_i32_0 : i32, i32
  }
  func.func @transform_5(%arg0: i32) -> (i32, i32) {
    %c0_i32 = arith.constant 0 : i32
    %c0_i32_0 = arith.constant 0 : i32
    %c0_i32_1 = arith.constant 0 : i32
    return %c0_i32, %c0_i32_0 : i32, i32
  }
  func.func @transform_6(%arg0: i32) -> (i32, i32) {
    %c0_i32 = arith.constant 0 : i32
    %c0_i32_0 = arith.constant 0 : i32
    %c0_i32_1 = arith.constant 0 : i32
    return %c0_i32, %c0_i32_0 : i32, i32
  }
  func.func @transform_7(%arg0: i32) -> (i32, i32) {
    %c0_i32 = arith.constant 0 : i32
    %c0_i32_0 = arith.constant 0 : i32
    %c0_i32_1 = arith.constant 0 : i32
    return %c0_i32, %c0_i32_0 : i32, i32
  }
  func.func @transform_8(%arg0: i32) -> (i32, i32) {
    %c0_i32 = arith.constant 0 : i32
    %c0_i32_0 = arith.constant 0 : i32
    %c0_i32_1 = arith.constant 0 : i32
    return %c0_i32, %c0_i32_0 : i32, i32
  }
  func.func @transform_9(%arg0: i32) -> (i32, i32) {
    %c0_i32 = arith.constant 0 : i32
    %c0_i32_0 = arith.constant 0 : i32
    return %arg0, %c0_i32 : i32, i32
  }
}

module attributes {stable_mosaic.version = 11 : i64} {
  func.func @kernel(%arg0: i32, %arg1: memref<16x32xbf16, #tpu.memory_space<vmem>>, %arg2: memref<1x32xf32, #tpu.memory_space<vmem>>, %arg3: memref<1x32xf32, #tpu.memory_space<vmem>>, %arg4: memref<32x64xbf16, #tpu.memory_space<vmem>>, %arg5: memref<1x64xf32, #tpu.memory_space<vmem>>, %arg6: memref<64x32xbf16, #tpu.memory_space<vmem>>, %arg7: memref<1x32xf32, #tpu.memory_space<vmem>>, %arg8: memref<16x32xbf16, #tpu.memory_space<vmem>>) attributes {dimension_semantics = [#tpu.dimension_semantics<parallel>], iteration_bounds = array<i64: 1>, scalar_prefetch = 0 : i64, scratch_operands = 0 : i64, tpu.core_type = #tpu.core_type<tc>, window_params = [{transform_indices = @transform_0, window_bounds = array<i64: 16, 32>}, {pipeline_mode = #tpu.pipeline_mode<synchronous>, transform_indices = @transform_1, window_bounds = array<i64: 1, 32>}, {pipeline_mode = #tpu.pipeline_mode<synchronous>, transform_indices = @transform_2, window_bounds = array<i64: 1, 32>}, {pipeline_mode = #tpu.pipeline_mode<synchronous>, transform_indices = @transform_3, window_bounds = array<i64: 32, 64>}, {pipeline_mode = #tpu.pipeline_mode<synchronous>, transform_indices = @transform_4, window_bounds = array<i64: 1, 64>}, {pipeline_mode = #tpu.pipeline_mode<synchronous>, transform_indices = @transform_5, window_bounds = array<i64: 64, 32>}, {pipeline_mode = #tpu.pipeline_mode<synchronous>, transform_indices = @transform_6, window_bounds = array<i64: 1, 32>}, {transform_indices = @transform_7, window_bounds = array<i64: 16, 32>}]} {
    %c0 = arith.constant 0 : index
    %c0_0 = arith.constant 0 : index
    %0 = vector.load %arg1[%c0, %c0_0] : memref<16x32xbf16, #tpu.memory_space<vmem>>, vector<16x32xbf16>
    %1 = arith.extf %0 : vector<16x32xbf16> to vector<16x32xf32>
    %c0_1 = arith.constant 0 : index
    %c0_2 = arith.constant 0 : index
    %2 = vector.load %arg2[%c0_1, %c0_2] : memref<1x32xf32, #tpu.memory_space<vmem>>, vector<1x32xf32>
    %c0_3 = arith.constant 0 : index
    %c0_4 = arith.constant 0 : index
    %3 = vector.load %arg3[%c0_3, %c0_4] : memref<1x32xf32, #tpu.memory_space<vmem>>, vector<1x32xf32>
    %cst = arith.constant dense<0.000000e+00> : vector<16xf32>
    %4 = vector.multi_reduction <add>, %1, %cst [1] : vector<16x32xf32> to vector<16xf32>
    %5 = vector.shape_cast %4 : vector<16xf32> to vector<16x1xf32>
    %cst_5 = arith.constant 3.200000e+01 : f32
    %6 = vector.broadcast %cst_5 : f32 to vector<16x1xf32>
    %7 = arith.divf %5, %6 : vector<16x1xf32>
    %8 = vector.broadcast %7 : vector<16x1xf32> to vector<16x32xf32>
    %9 = arith.subf %1, %8 : vector<16x32xf32>
    %10 = arith.mulf %9, %9 : vector<16x32xf32>
    %cst_6 = arith.constant dense<0.000000e+00> : vector<16xf32>
    %11 = vector.multi_reduction <add>, %10, %cst_6 [1] : vector<16x32xf32> to vector<16xf32>
    %12 = vector.shape_cast %11 : vector<16xf32> to vector<16x1xf32>
    %cst_7 = arith.constant 3.200000e+01 : f32
    %13 = vector.broadcast %cst_7 : f32 to vector<16x1xf32>
    %14 = arith.divf %12, %13 : vector<16x1xf32>
    %cst_8 = arith.constant 9.99999974E-6 : f32
    %15 = vector.broadcast %cst_8 : f32 to vector<16x1xf32>
    %16 = arith.addf %14, %15 : vector<16x1xf32>
    %17 = math.rsqrt %16 : vector<16x1xf32>
    %18 = vector.broadcast %17 : vector<16x1xf32> to vector<16x32xf32>
    %19 = arith.mulf %9, %18 : vector<16x32xf32>
    %20 = vector.broadcast %2 : vector<1x32xf32> to vector<16x32xf32>
    %21 = arith.mulf %19, %20 : vector<16x32xf32>
    %22 = vector.broadcast %3 : vector<1x32xf32> to vector<16x32xf32>
    %23 = arith.addf %21, %22 : vector<16x32xf32>
    %24 = arith.truncf %23 : vector<16x32xf32> to vector<16x32xbf16>
    %c0_9 = arith.constant 0 : index
    %c0_10 = arith.constant 0 : index
    %25 = vector.load %arg4[%c0_9, %c0_10] : memref<32x64xbf16, #tpu.memory_space<vmem>>, vector<32x64xbf16>
    %cst_11 = arith.constant dense<0.000000e+00> : vector<16x64xf32>
    %26 = tpu.matmul %24, %25, %cst_11 {dimension_numbers = #tpu.dot_dimension_numbers<[1], [0], [0], [1], [0, 0, 1, 1], [], []>} : vector<16x32xbf16>, vector<32x64xbf16>, vector<16x64xf32> -> vector<16x64xf32>
    %c0_12 = arith.constant 0 : index
    %c0_13 = arith.constant 0 : index
    %27 = vector.load %arg5[%c0_12, %c0_13] : memref<1x64xf32, #tpu.memory_space<vmem>>, vector<1x64xf32>
    %28 = vector.broadcast %27 : vector<1x64xf32> to vector<16x64xf32>
    %29 = arith.addf %26, %28 : vector<16x64xf32>
    %30 = arith.negf %29 : vector<16x64xf32>
    %31 = math.exp %30 : vector<16x64xf32>
    %cst_14 = arith.constant 1.000000e+00 : f32
    %32 = vector.broadcast %cst_14 : f32 to vector<16x64xf32>
    %33 = arith.addf %32, %31 : vector<16x64xf32>
    %34 = arith.divf %32, %33 : vector<16x64xf32>
    %35 = arith.mulf %29, %34 : vector<16x64xf32>
    %36 = arith.truncf %35 : vector<16x64xf32> to vector<16x64xbf16>
    %c0_15 = arith.constant 0 : index
    %c0_16 = arith.constant 0 : index
    %37 = vector.load %arg6[%c0_15, %c0_16] : memref<64x32xbf16, #tpu.memory_space<vmem>>, vector<64x32xbf16>
    %cst_17 = arith.constant dense<0.000000e+00> : vector<16x32xf32>
    %38 = tpu.matmul %36, %37, %cst_17 {dimension_numbers = #tpu.dot_dimension_numbers<[1], [0], [0], [1], [0, 0, 1, 1], [], []>} : vector<16x64xbf16>, vector<64x32xbf16>, vector<16x32xf32> -> vector<16x32xf32>
    %c0_18 = arith.constant 0 : index
    %c0_19 = arith.constant 0 : index
    %39 = vector.load %arg7[%c0_18, %c0_19] : memref<1x32xf32, #tpu.memory_space<vmem>>, vector<1x32xf32>
    %40 = vector.broadcast %39 : vector<1x32xf32> to vector<16x32xf32>
    %41 = arith.addf %38, %40 : vector<16x32xf32>
    %cst_20 = arith.constant 5.000000e-01 : f32
    %42 = vector.broadcast %cst_20 : f32 to vector<16x32xf32>
    %43 = arith.mulf %42, %41 : vector<16x32xf32>
    %44 = arith.addf %1, %43 : vector<16x32xf32>
    %45 = arith.truncf %44 : vector<16x32xf32> to vector<16x32xbf16>
    %c0_21 = arith.constant 0 : index
    %c0_22 = arith.constant 0 : index
    %46 = vector.load %arg8[%c0_21, %c0_22] : memref<16x32xbf16, #tpu.memory_space<vmem>>, vector<16x32xbf16>
    tpu.vector_store %arg8[%c0_21, %c0_22], %45 {strides = array<i32>} : memref<16x32xbf16, #tpu.memory_space<vmem>>, vector<16x32xbf16>,
    return
  }
  func.func @transform_0(%arg0: i32) -> (i32, i32) {
    %c0_i32 = arith.constant 0 : i32
    %c0_i32_0 = arith.constant 0 : i32
    return %arg0, %c0_i32 : i32, i32
  }
  func.func @transform_1(%arg0: i32) -> (i32, i32) {
    %c0_i32 = arith.constant 0 : i32
    %c0_i32_0 = arith.constant 0 : i32
    %c0_i32_1 = arith.constant 0 : i32
    return %c0_i32, %c0_i32_0 : i32, i32
  }
  func.func @transform_2(%arg0: i32) -> (i32, i32) {
    %c0_i32 = arith.constant 0 : i32
    %c0_i32_0 = arith.constant 0 : i32
    %c0_i32_1 = arith.constant 0 : i32
    return %c0_i32, %c0_i32_0 : i32, i32
  }
  func.func @transform_3(%arg0: i32) -> (i32, i32) {
    %c0_i32 = arith.constant 0 : i32
    %c0_i32_0 = arith.constant 0 : i32
    %c0_i32_1 = arith.constant 0 : i32
    return %c0_i32, %c0_i32_0 : i32, i32
  }
  func.func @transform_4(%arg0: i32) -> (i32, i32) {
    %c0_i32 = arith.constant 0 : i32
    %c0_i32_0 = arith.constant 0 : i32
    %c0_i32_1 = arith.constant 0 : i32
    return %c0_i32, %c0_i32_0 : i32, i32
  }
  func.func @transform_5(%arg0: i32) -> (i32, i32) {
    %c0_i32 = arith.constant 0 : i32
    %c0_i32_0 = arith.constant 0 : i32
    %c0_i32_1 = arith.constant 0 : i32
    return %c0_i32, %c0_i32_0 : i32, i32
  }
  func.func @transform_6(%arg0: i32) -> (i32, i32) {
    %c0_i32 = arith.constant 0 : i32
    %c0_i32_0 = arith.constant 0 : i32
    %c0_i32_1 = arith.constant 0 : i32
    return %c0_i32, %c0_i32_0 : i32, i32
  }
  func.func @transform_7(%arg0: i32) -> (i32, i32) {
    %c0_i32 = arith.constant 0 : i32
    %c0_i32_0 = arith.constant 0 : i32
    return %arg0, %c0_i32 : i32, i32
  }
}

module attributes {stable_mosaic.version = 11 : i64} {
  func.func @kernel(%arg0: i32, %arg1: memref<16x32xbf16, #tpu.memory_space<vmem>>, %arg2: memref<1x32xf32, #tpu.memory_space<vmem>>, %arg3: memref<1x32xf32, #tpu.memory_space<vmem>>, %arg4: memref<32x64xbf16, #tpu.memory_space<vmem>>, %arg5: memref<1x64xf32, #tpu.memory_space<vmem>>, %arg6: memref<64x32xbf16, #tpu.memory_space<vmem>>, %arg7: memref<1x32xf32, #tpu.memory_space<vmem>>, %arg8: memref<1x32xf32, #tpu.memory_space<vmem>>, %arg9: memref<1x32xf32, #tpu.memory_space<vmem>>, %arg10: memref<16x32xbf16, #tpu.memory_space<vmem>>) attributes {dimension_semantics = [#tpu.dimension_semantics<parallel>], iteration_bounds = array<i64: 1>, scalar_prefetch = 0 : i64, scratch_operands = 0 : i64, tpu.core_type = #tpu.core_type<tc>, window_params = [{transform_indices = @transform_0, window_bounds = array<i64: 16, 32>}, {pipeline_mode = #tpu.pipeline_mode<synchronous>, transform_indices = @transform_1, window_bounds = array<i64: 1, 32>}, {pipeline_mode = #tpu.pipeline_mode<synchronous>, transform_indices = @transform_2, window_bounds = array<i64: 1, 32>}, {pipeline_mode = #tpu.pipeline_mode<synchronous>, transform_indices = @transform_3, window_bounds = array<i64: 32, 64>}, {pipeline_mode = #tpu.pipeline_mode<synchronous>, transform_indices = @transform_4, window_bounds = array<i64: 1, 64>}, {pipeline_mode = #tpu.pipeline_mode<synchronous>, transform_indices = @transform_5, window_bounds = array<i64: 64, 32>}, {pipeline_mode = #tpu.pipeline_mode<synchronous>, transform_indices = @transform_6, window_bounds = array<i64: 1, 32>}, {pipeline_mode = #tpu.pipeline_mode<synchronous>, transform_indices = @transform_7, window_bounds = array<i64: 1, 32>}, {pipeline_mode = #tpu.pipeline_mode<synchronous>, transform_indices = @transform_8, window_bounds = array<i64: 1, 32>}, {transform_indices = @transform_9, window_bounds = array<i64: 16, 32>}]} {
    %c0 = arith.constant 0 : index
    %c0_0 = arith.constant 0 : index
    %0 = vector.load %arg1[%c0, %c0_0] : memref<16x32xbf16, #tpu.memory_space<vmem>>, vector<16x32xbf16>
    %1 = arith.extf %0 : vector<16x32xbf16> to vector<16x32xf32>
    %c0_1 = arith.constant 0 : index
    %c0_2 = arith.constant 0 : index
    %2 = vector.load %arg2[%c0_1, %c0_2] : memref<1x32xf32, #tpu.memory_space<vmem>>, vector<1x32xf32>
    %c0_3 = arith.constant 0 : index
    %c0_4 = arith.constant 0 : index
    %3 = vector.load %arg3[%c0_3, %c0_4] : memref<1x32xf32, #tpu.memory_space<vmem>>, vector<1x32xf32>
    %cst = arith.constant dense<0.000000e+00> : vector<16xf32>
    %4 = vector.multi_reduction <add>, %1, %cst [1] : vector<16x32xf32> to vector<16xf32>
    %5 = vector.shape_cast %4 : vector<16xf32> to vector<16x1xf32>
    %cst_5 = arith.constant 3.200000e+01 : f32
    %6 = vector.broadcast %cst_5 : f32 to vector<16x1xf32>
    %7 = arith.divf %5, %6 : vector<16x1xf32>
    %8 = vector.broadcast %7 : vector<16x1xf32> to vector<16x32xf32>
    %9 = arith.subf %1, %8 : vector<16x32xf32>
    %10 = arith.mulf %9, %9 : vector<16x32xf32>
    %cst_6 = arith.constant dense<0.000000e+00> : vector<16xf32>
    %11 = vector.multi_reduction <add>, %10, %cst_6 [1] : vector<16x32xf32> to vector<16xf32>
    %12 = vector.shape_cast %11 : vector<16xf32> to vector<16x1xf32>
    %cst_7 = arith.constant 3.200000e+01 : f32
    %13 = vector.broadcast %cst_7 : f32 to vector<16x1xf32>
    %14 = arith.divf %12, %13 : vector<16x1xf32>
    %cst_8 = arith.constant 9.99999974E-6 : f32
    %15 = vector.broadcast %cst_8 : f32 to vector<16x1xf32>
    %16 = arith.addf %14, %15 : vector<16x1xf32>
    %17 = math.rsqrt %16 : vector<16x1xf32>
    %18 = vector.broadcast %17 : vector<16x1xf32> to vector<16x32xf32>
    %19 = arith.mulf %9, %18 : vector<16x32xf32>
    %20 = vector.broadcast %2 : vector<1x32xf32> to vector<16x32xf32>
    %21 = arith.mulf %19, %20 : vector<16x32xf32>
    %22 = vector.broadcast %3 : vector<1x32xf32> to vector<16x32xf32>
    %23 = arith.addf %21, %22 : vector<16x32xf32>
    %24 = arith.truncf %23 : vector<16x32xf32> to vector<16x32xbf16>
    %c0_9 = arith.constant 0 : index
    %c0_10 = arith.constant 0 : index
    %25 = vector.load %arg4[%c0_9, %c0_10] : memref<32x64xbf16, #tpu.memory_space<vmem>>, vector<32x64xbf16>
    %cst_11 = arith.constant dense<0.000000e+00> : vector<16x64xf32>
    %26 = tpu.matmul %24, %25, %cst_11 {dimension_numbers = #tpu.dot_dimension_numbers<[1], [0], [0], [1], [0, 0, 1, 1], [], []>} : vector<16x32xbf16>, vector<32x64xbf16>, vector<16x64xf32> -> vector<16x64xf32>
    %c0_12 = arith.constant 0 : index
    %c0_13 = arith.constant 0 : index
    %27 = vector.load %arg5[%c0_12, %c0_13] : memref<1x64xf32, #tpu.memory_space<vmem>>, vector<1x64xf32>
    %28 = vector.broadcast %27 : vector<1x64xf32> to vector<16x64xf32>
    %29 = arith.addf %26, %28 : vector<16x64xf32>
    %30 = arith.negf %29 : vector<16x64xf32>
    %31 = math.exp %30 : vector<16x64xf32>
    %cst_14 = arith.constant 1.000000e+00 : f32
    %32 = vector.broadcast %cst_14 : f32 to vector<16x64xf32>
    %33 = arith.addf %32, %31 : vector<16x64xf32>
    %34 = arith.divf %32, %33 : vector<16x64xf32>
    %35 = arith.mulf %29, %34 : vector<16x64xf32>
    %36 = arith.truncf %35 : vector<16x64xf32> to vector<16x64xbf16>
    %c0_15 = arith.constant 0 : index
    %c0_16 = arith.constant 0 : index
    %37 = vector.load %arg6[%c0_15, %c0_16] : memref<64x32xbf16, #tpu.memory_space<vmem>>, vector<64x32xbf16>
    %cst_17 = arith.constant dense<0.000000e+00> : vector<16x32xf32>
    %38 = tpu.matmul %36, %37, %cst_17 {dimension_numbers = #tpu.dot_dimension_numbers<[1], [0], [0], [1], [0, 0, 1, 1], [], []>} : vector<16x64xbf16>, vector<64x32xbf16>, vector<16x32xf32> -> vector<16x32xf32>
    %c0_18 = arith.constant 0 : index
    %c0_19 = arith.constant 0 : index
    %39 = vector.load %arg7[%c0_18, %c0_19] : memref<1x32xf32, #tpu.memory_space<vmem>>, vector<1x32xf32>
    %40 = vector.broadcast %39 : vector<1x32xf32> to vector<16x32xf32>
    %41 = arith.addf %38, %40 : vector<16x32xf32>
    %cst_20 = arith.constant 5.000000e-01 : f32
    %42 = vector.broadcast %cst_20 : f32 to vector<16x32xf32>
    %43 = arith.mulf %42, %41 : vector<16x32xf32>
    %44 = arith.addf %1, %43 : vector<16x32xf32>
    %c0_21 = arith.constant 0 : index
    %c0_22 = arith.constant 0 : index
    %45 = vector.load %arg8[%c0_21, %c0_22] : memref<1x32xf32, #tpu.memory_space<vmem>>, vector<1x32xf32>
    %c0_23 = arith.constant 0 : index
    %c0_24 = arith.constant 0 : index
    %46 = vector.load %arg9[%c0_23, %c0_24] : memref<1x32xf32, #tpu.memory_space<vmem>>, vector<1x32xf32>
    %cst_25 = arith.constant dense<0.000000e+00> : vector<16xf32>
    %47 = vector.multi_reduction <add>, %44, %cst_25 [1] : vector<16x32xf32> to vector<16xf32>
    %48 = vector.shape_cast %47 : vector<16xf32> to vector<16x1xf32>
    %cst_26 = arith.constant 3.200000e+01 : f32
    %49 = vector.broadcast %cst_26 : f32 to vector<16x1xf32>
    %50 = arith.divf %48, %49 : vector<16x1xf32>
    %51 = vector.broadcast %50 : vector<16x1xf32> to vector<16x32xf32>
    %52 = arith.subf %44, %51 : vector<16x32xf32>
    %53 = arith.mulf %52, %52 : vector<16x32xf32>
    %cst_27 = arith.constant dense<0.000000e+00> : vector<16xf32>
    %54 = vector.multi_reduction <add>, %53, %cst_27 [1] : vector<16x32xf32> to vector<16xf32>
    %55 = vector.shape_cast %54 : vector<16xf32> to vector<16x1xf32>
    %cst_28 = arith.constant 3.200000e+01 : f32
    %56 = vector.broadcast %cst_28 : f32 to vector<16x1xf32>
    %57 = arith.divf %55, %56 : vector<16x1xf32>
    %cst_29 = arith.constant 9.99999974E-6 : f32
    %58 = vector.broadcast %cst_29 : f32 to vector<16x1xf32>
    %59 = arith.addf %57, %58 : vector<16x1xf32>
    %60 = math.rsqrt %59 : vector<16x1xf32>
    %61 = vector.broadcast %60 : vector<16x1xf32> to vector<16x32xf32>
    %62 = arith.mulf %52, %61 : vector<16x32xf32>
    %63 = vector.broadcast %45 : vector<1x32xf32> to vector<16x32xf32>
    %64 = arith.mulf %62, %63 : vector<16x32xf32>
    %65 = vector.broadcast %46 : vector<1x32xf32> to vector<16x32xf32>
    %66 = arith.addf %64, %65 : vector<16x32xf32>
    %67 = arith.truncf %66 : vector<16x32xf32> to vector<16x32xbf16>
    %c0_30 = arith.constant 0 : index
    %c0_31 = arith.constant 0 : index
    %68 = vector.load %arg10[%c0_30, %c0_31] : memref<16x32xbf16, #tpu.memory_space<vmem>>, vector<16x32xbf16>
    tpu.vector_store %arg10[%c0_30, %c0_31], %67 {strides = array<i32>} : memref<16x32xbf16, #tpu.memory_space<vmem>>, vector<16x32xbf16>,
    return
  }
  func.func @transform_0(%arg0: i32) -> (i32, i32) {
    %c0_i32 = arith.constant 0 : i32
    %c0_i32_0 = arith.constant 0 : i32
    return %arg0, %c0_i32 : i32, i32
  }
  func.func @transform_1(%arg0: i32) -> (i32, i32) {
    %c0_i32 = arith.constant 0 : i32
    %c0_i32_0 = arith.constant 0 : i32
    %c0_i32_1 = arith.constant 0 : i32
    return %c0_i32, %c0_i32_0 : i32, i32
  }
  func.func @transform_2(%arg0: i32) -> (i32, i32) {
    %c0_i32 = arith.constant 0 : i32
    %c0_i32_0 = arith.constant 0 : i32
    %c0_i32_1 = arith.constant 0 : i32
    return %c0_i32, %c0_i32_0 : i32, i32
  }
  func.func @transform_3(%arg0: i32) -> (i32, i32) {
    %c0_i32 = arith.constant 0 : i32
    %c0_i32_0 = arith.constant 0 : i32
    %c0_i32_1 = arith.constant 0 : i32
    return %c0_i32, %c0_i32_0 : i32, i32
  }
  func.func @transform_4(%arg0: i32) -> (i32, i32) {
    %c0_i32 = arith.constant 0 : i32
    %c0_i32_0 = arith.constant 0 : i32
    %c0_i32_1 = arith.constant 0 : i32
    return %c0_i32, %c0_i32_0 : i32, i32
  }
  func.func @transform_5(%arg0: i32) -> (i32, i32) {
    %c0_i32 = arith.constant 0 : i32
    %c0_i32_0 = arith.constant 0 : i32
    %c0_i32_1 = arith.constant 0 : i32
    return %c0_i32, %c0_i32_0 : i32, i32
  }
  func.func @transform_6(%arg0: i32) -> (i32, i32) {
    %c0_i32 = arith.constant 0 : i32
    %c0_i32_0 = arith.constant 0 : i32
    %c0_i32_1 = arith.constant 0 : i32
    return %c0_i32, %c0_i32_0 : i32, i32
  }
  func.func @transform_7(%arg0: i32) -> (i32, i32) {
    %c0_i32 = arith.constant 0 : i32
    %c0_i32_0 = arith.constant 0 : i32
    %c0_i32_1 = arith.constant 0 : i32
    return %c0_i32, %c0_i32_0 : i32, i32
  }
  func.func @transform_8(%arg0: i32) -> (i32, i32) {
    %c0_i32 = arith.constant 0 : i32
    %c0_i32_0 = arith.constant 0 : i32
    %c0_i32_1 = arith.constant 0 : i32
    return %c0_i32, %c0_i32_0 : i32, i32
  }
  func.func @transform_9(%arg0: i32) -> (i32, i32) {
    %c0_i32 = arith.constant 0 : i32
    %c0_i32_0 = arith.constant 0 : i32
    return %arg0, %c0_i32 : i32, i32
  }
}

module attributes {stable_mosaic.version = 11 : i64} {
  func.func @_classifier_kernel(%arg0: i32, %arg1: memref<8x32xbf16, #tpu.memory_space<vmem>>, %arg2: memref<32x128xbf16, #tpu.memory_space<vmem>>, %arg3: memref<1x128xf32, #tpu.memory_space<vmem>>, %arg4: memref<8x128xf32, #tpu.memory_space<vmem>>) attributes {dimension_semantics = [#tpu.dimension_semantics<parallel>], iteration_bounds = array<i64: 1>, scalar_prefetch = 0 : i64, scratch_operands = 0 : i64, tpu.core_type = #tpu.core_type<tc>, window_params = [{pipeline_mode = #tpu.pipeline_mode<synchronous>, transform_indices = @transform_0, window_bounds = array<i64: 8, 32>}, {pipeline_mode = #tpu.pipeline_mode<synchronous>, transform_indices = @transform_1, window_bounds = array<i64: 32, 128>}, {pipeline_mode = #tpu.pipeline_mode<synchronous>, transform_indices = @transform_2, window_bounds = array<i64: 1, 128>}, {pipeline_mode = #tpu.pipeline_mode<synchronous>, transform_indices = @transform_3, window_bounds = array<i64: 8, 128>}]} {
    %c0 = arith.constant 0 : index
    %c0_0 = arith.constant 0 : index
    %0 = vector.load %arg1[%c0, %c0_0] : memref<8x32xbf16, #tpu.memory_space<vmem>>, vector<8x32xbf16>
    %c0_1 = arith.constant 0 : index
    %c0_2 = arith.constant 0 : index
    %1 = vector.load %arg2[%c0_1, %c0_2] : memref<32x128xbf16, #tpu.memory_space<vmem>>, vector<32x128xbf16>
    %cst = arith.constant dense<0.000000e+00> : vector<8x128xf32>
    %2 = tpu.matmul %0, %1, %cst {dimension_numbers = #tpu.dot_dimension_numbers<[1], [0], [0], [1], [0, 0, 1, 1], [], []>} : vector<8x32xbf16>, vector<32x128xbf16>, vector<8x128xf32> -> vector<8x128xf32>
    %c0_3 = arith.constant 0 : index
    %c0_4 = arith.constant 0 : index
    %3 = vector.load %arg3[%c0_3, %c0_4] : memref<1x128xf32, #tpu.memory_space<vmem>>, vector<1x128xf32>
    %4 = vector.broadcast %3 : vector<1x128xf32> to vector<8x128xf32>
    %5 = arith.addf %2, %4 : vector<8x128xf32>
    %cst_5 = arith.constant dense<0xFF800000> : vector<8xf32>
    %6 = vector.multi_reduction <maximumf>, %5, %cst_5 [1] : vector<8x128xf32> to vector<8xf32>
    %7 = vector.shape_cast %6 : vector<8xf32> to vector<8x1xf32>
    %8 = vector.broadcast %7 : vector<8x1xf32> to vector<8x128xf32>
    %9 = arith.subf %5, %8 : vector<8x128xf32>
    %10 = math.exp %9 : vector<8x128xf32>
    %cst_6 = arith.constant dense<0.000000e+00> : vector<8xf32>
    %11 = vector.multi_reduction <add>, %10, %cst_6 [1] : vector<8x128xf32> to vector<8xf32>
    %12 = vector.shape_cast %11 : vector<8xf32> to vector<8x1xf32>
    %13 = tpu.reciprocal %12 {approx = true} : vector<8x1xf32> -> vector<8x1xf32>
    %14 = vector.broadcast %13 : vector<8x1xf32> to vector<8x128xf32>
    %15 = arith.mulf %10, %14 : vector<8x128xf32>
    %c0_7 = arith.constant 0 : index
    %c0_8 = arith.constant 0 : index
    %16 = vector.load %arg4[%c0_7, %c0_8] : memref<8x128xf32, #tpu.memory_space<vmem>>, vector<8x128xf32>
    tpu.vector_store %arg4[%c0_7, %c0_8], %15 {strides = array<i32>} : memref<8x128xf32, #tpu.memory_space<vmem>>, vector<8x128xf32>,
    return
  }
  func.func @transform_0(%arg0: i32) -> (i32, i32) {
    %c0_i32 = arith.constant 0 : i32
    %c0_i32_0 = arith.constant 0 : i32
    %c0_i32_1 = arith.constant 0 : i32
    return %c0_i32, %c0_i32_0 : i32, i32
  }
  func.func @transform_1(%arg0: i32) -> (i32, i32) {
    %c0_i32 = arith.constant 0 : i32
    %c0_i32_0 = arith.constant 0 : i32
    %c0_i32_1 = arith.constant 0 : i32
    return %c0_i32, %c0_i32_0 : i32, i32
  }
  func.func @transform_2(%arg0: i32) -> (i32, i32) {
    %c0_i32 = arith.constant 0 : i32
    %c0_i32_0 = arith.constant 0 : i32
    %c0_i32_1 = arith.constant 0 : i32
    return %c0_i32, %c0_i32_0 : i32, i32
  }
  func.func @transform_3(%arg0: i32) -> (i32, i32) {
    %c0_i32 = arith.constant 0 : i32
    %c0_i32_0 = arith.constant 0 : i32
    %c0_i32_1 = arith.constant 0 : i32
    return %c0_i32, %c0_i32_0 : i32, i32
  }
}

module attributes {stable_mosaic.version = 11 : i64} {
  func.func @_conv_block_kernel(%arg0: i32, %arg1: memref<1x8x32xbf16, #tpu.memory_space<vmem>>, %arg2: memref<1x32xf32, #tpu.memory_space<vmem>>, %arg3: memref<1x32xf32, #tpu.memory_space<vmem>>, %arg4: memref<32x64xbf16, #tpu.memory_space<vmem>>, %arg5: memref<1x64xf32, #tpu.memory_space<vmem>>, %arg6: memref<3x32xf32, #tpu.memory_space<vmem>>, %arg7: memref<1x32xf32, #tpu.memory_space<vmem>>, %arg8: memref<1x32xf32, #tpu.memory_space<vmem>>, %arg9: memref<32x32xbf16, #tpu.memory_space<vmem>>, %arg10: memref<1x32xf32, #tpu.memory_space<vmem>>, %arg11: memref<1x8x32xbf16, #tpu.memory_space<vmem>>) attributes {dimension_semantics = [#tpu.dimension_semantics<parallel>], iteration_bounds = array<i64: 2>, scalar_prefetch = 0 : i64, scratch_operands = 0 : i64, tpu.core_type = #tpu.core_type<tc>, window_params = [{transform_indices = @transform_0, window_bounds = array<i64: 1, 8, 32>}, {pipeline_mode = #tpu.pipeline_mode<synchronous>, transform_indices = @transform_1, window_bounds = array<i64: 1, 32>}, {pipeline_mode = #tpu.pipeline_mode<synchronous>, transform_indices = @transform_2, window_bounds = array<i64: 1, 32>}, {pipeline_mode = #tpu.pipeline_mode<synchronous>, transform_indices = @transform_3, window_bounds = array<i64: 32, 64>}, {pipeline_mode = #tpu.pipeline_mode<synchronous>, transform_indices = @transform_4, window_bounds = array<i64: 1, 64>}, {pipeline_mode = #tpu.pipeline_mode<synchronous>, transform_indices = @transform_5, window_bounds = array<i64: 3, 32>}, {pipeline_mode = #tpu.pipeline_mode<synchronous>, transform_indices = @transform_6, window_bounds = array<i64: 1, 32>}, {pipeline_mode = #tpu.pipeline_mode<synchronous>, transform_indices = @transform_7, window_bounds = array<i64: 1, 32>}, {pipeline_mode = #tpu.pipeline_mode<synchronous>, transform_indices = @transform_8, window_bounds = array<i64: 32, 32>}, {pipeline_mode = #tpu.pipeline_mode<synchronous>, transform_indices = @transform_9, window_bounds = array<i64: 1, 32>}, {transform_indices = @transform_10, window_bounds = array<i64: 1, 8, 32>}]} {
    %c0 = arith.constant 0 : index
    %c0_0 = arith.constant 0 : index
    %c0_1 = arith.constant 0 : index
    %0 = vector.load %arg1[%c0, %c0_0, %c0_1] : memref<1x8x32xbf16, #tpu.memory_space<vmem>>, vector<1x8x32xbf16>
    %1 = vector.shape_cast %0 : vector<1x8x32xbf16> to vector<8x32xbf16>
    %2 = arith.extf %1 : vector<8x32xbf16> to vector<8x32xf32>
    %c0_2 = arith.constant 0 : index
    %c0_3 = arith.constant 0 : index
    %3 = vector.load %arg2[%c0_2, %c0_3] : memref<1x32xf32, #tpu.memory_space<vmem>>, vector<1x32xf32>
    %c0_4 = arith.constant 0 : index
    %c0_5 = arith.constant 0 : index
    %4 = vector.load %arg3[%c0_4, %c0_5] : memref<1x32xf32, #tpu.memory_space<vmem>>, vector<1x32xf32>
    %cst = arith.constant dense<0.000000e+00> : vector<8xf32>
    %5 = vector.multi_reduction <add>, %2, %cst [1] : vector<8x32xf32> to vector<8xf32>
    %6 = vector.shape_cast %5 : vector<8xf32> to vector<8x1xf32>
    %cst_6 = arith.constant 3.200000e+01 : f32
    %7 = vector.broadcast %cst_6 : f32 to vector<8x1xf32>
    %8 = arith.divf %6, %7 : vector<8x1xf32>
    %9 = vector.broadcast %8 : vector<8x1xf32> to vector<8x32xf32>
    %10 = arith.subf %2, %9 : vector<8x32xf32>
    %11 = arith.mulf %10, %10 : vector<8x32xf32>
    %cst_7 = arith.constant dense<0.000000e+00> : vector<8xf32>
    %12 = vector.multi_reduction <add>, %11, %cst_7 [1] : vector<8x32xf32> to vector<8xf32>
    %13 = vector.shape_cast %12 : vector<8xf32> to vector<8x1xf32>
    %cst_8 = arith.constant 3.200000e+01 : f32
    %14 = vector.broadcast %cst_8 : f32 to vector<8x1xf32>
    %15 = arith.divf %13, %14 : vector<8x1xf32>
    %cst_9 = arith.constant 9.99999974E-6 : f32
    %16 = vector.broadcast %cst_9 : f32 to vector<8x1xf32>
    %17 = arith.addf %15, %16 : vector<8x1xf32>
    %18 = math.rsqrt %17 : vector<8x1xf32>
    %19 = vector.broadcast %18 : vector<8x1xf32> to vector<8x32xf32>
    %20 = arith.mulf %10, %19 : vector<8x32xf32>
    %21 = vector.broadcast %3 : vector<1x32xf32> to vector<8x32xf32>
    %22 = arith.mulf %20, %21 : vector<8x32xf32>
    %23 = vector.broadcast %4 : vector<1x32xf32> to vector<8x32xf32>
    %24 = arith.addf %22, %23 : vector<8x32xf32>
    %25 = arith.truncf %24 : vector<8x32xf32> to vector<8x32xbf16>
    %c0_10 = arith.constant 0 : index
    %c0_11 = arith.constant 0 : index
    %26 = vector.load %arg4[%c0_10, %c0_11] : memref<32x64xbf16, #tpu.memory_space<vmem>>, vector<32x64xbf16>
    %cst_12 = arith.constant dense<0.000000e+00> : vector<8x64xf32>
    %27 = tpu.matmul %25, %26, %cst_12 {dimension_numbers = #tpu.dot_dimension_numbers<[1], [0], [0], [1], [0, 0, 1, 1], [], []>} : vector<8x32xbf16>, vector<32x64xbf16>, vector<8x64xf32> -> vector<8x64xf32>
    %c0_13 = arith.constant 0 : index
    %c0_14 = arith.constant 0 : index
    %28 = vector.load %arg5[%c0_13, %c0_14] : memref<1x64xf32, #tpu.memory_space<vmem>>, vector<1x64xf32>
    %29 = vector.broadcast %28 : vector<1x64xf32> to vector<8x64xf32>
    %30 = arith.addf %27, %29 : vector<8x64xf32>
    %31 = vector.extract_strided_slice %30 {offsets = [0, 0], sizes = [8, 32], strides = [1, 1]} : vector<8x64xf32> to vector<8x32xf32>
    %32 = vector.extract_strided_slice %30 {offsets = [0, 32], sizes = [8, 32], strides = [1, 1]} : vector<8x64xf32> to vector<8x32xf32>
    %33 = arith.negf %32 : vector<8x32xf32>
    %34 = math.exp %33 : vector<8x32xf32>
    %cst_15 = arith.constant 1.000000e+00 : f32
    %35 = vector.broadcast %cst_15 : f32 to vector<8x32xf32>
    %36 = arith.addf %35, %34 : vector<8x32xf32>
    %37 = arith.divf %35, %36 : vector<8x32xf32>
    %38 = arith.mulf %31, %37 : vector<8x32xf32>
    %39 = tpu.iota {dimensions = array<i32: 0>} : vector<8x1xi32>
    %cst_16 = arith.constant 0.000000e+00 : f32
    %40 = vector.broadcast %cst_16 : f32 to vector<8x32xf32>
    %c1_i32 = arith.constant 1 : i32
    %41 = tpu.dynamic_rotate %38 by %c1_i32 dim 0 : vector<8x32xf32>, i32 -> vector<8x32xf32>
    %c-1_i32 = arith.constant -1 : i32
    %42 = vector.broadcast %c-1_i32 : i32 to vector<8x1xi32>
    %43 = arith.addi %39, %42 : vector<8x1xi32>
    %c0_i32 = arith.constant 0 : i32
    %44 = vector.broadcast %c0_i32 : i32 to vector<8x1xi32>
    %45 = arith.cmpi sge, %43, %44 : vector<8x1xi32>
    %c-1_i32_17 = arith.constant -1 : i32
    %46 = vector.broadcast %c-1_i32_17 : i32 to vector<8x1xi32>
    %47 = arith.addi %39, %46 : vector<8x1xi32>
    %c8_i32 = arith.constant 8 : i32
    %48 = vector.broadcast %c8_i32 : i32 to vector<8x1xi32>
    %49 = arith.cmpi slt, %47, %48 : vector<8x1xi32>
    %50 = arith.andi %45, %49 : vector<8x1xi1>
    %51 = arith.extui %50 : vector<8x1xi1> to vector<8x1xi32>
    %52 = arith.sitofp %51 : vector<8x1xi32> to vector<8x1xf32>
    %53 = vector.broadcast %52 : vector<8x1xf32> to vector<8x32xf32>
    %54 = arith.mulf %41, %53 : vector<8x32xf32>
    %c0_18 = arith.constant 0 : index
    %c0_19 = arith.constant 0 : index
    %55 = vector.load %arg6[%c0_18, %c0_19] : memref<3x32xf32, #tpu.memory_space<vmem>>, vector<1x32xf32>
    %56 = vector.broadcast %55 : vector<1x32xf32> to vector<8x32xf32>
    %57 = arith.mulf %54, %56 : vector<8x32xf32>
    %58 = arith.addf %40, %57 : vector<8x32xf32>
    %c0_i32_20 = arith.constant 0 : i32
    %59 = vector.broadcast %c0_i32_20 : i32 to vector<8x1xi32>
    %60 = arith.addi %39, %59 : vector<8x1xi32>
    %c0_i32_21 = arith.constant 0 : i32
    %61 = vector.broadcast %c0_i32_21 : i32 to vector<8x1xi32>
    %62 = arith.cmpi sge, %60, %61 : vector<8x1xi32>
    %c0_i32_22 = arith.constant 0 : i32
    %63 = vector.broadcast %c0_i32_22 : i32 to vector<8x1xi32>
    %64 = arith.addi %39, %63 : vector<8x1xi32>
    %c8_i32_23 = arith.constant 8 : i32
    %65 = vector.broadcast %c8_i32_23 : i32 to vector<8x1xi32>
    %66 = arith.cmpi slt, %64, %65 : vector<8x1xi32>
    %67 = arith.andi %62, %66 : vector<8x1xi1>
    %68 = arith.extui %67 : vector<8x1xi1> to vector<8x1xi32>
    %69 = arith.sitofp %68 : vector<8x1xi32> to vector<8x1xf32>
    %70 = vector.broadcast %69 : vector<8x1xf32> to vector<8x32xf32>
    %71 = arith.mulf %38, %70 : vector<8x32xf32>
    %c1 = arith.constant 1 : index
    %c0_24 = arith.constant 0 : index
    %72 = vector.load %arg6[%c1, %c0_24] : memref<3x32xf32, #tpu.memory_space<vmem>>, vector<1x32xf32>
    %73 = vector.broadcast %72 : vector<1x32xf32> to vector<8x32xf32>
    %74 = arith.mulf %71, %73 : vector<8x32xf32>
    %75 = arith.addf %58, %74 : vector<8x32xf32>
    %c7_i32 = arith.constant 7 : i32
    %76 = tpu.dynamic_rotate %38 by %c7_i32 dim 0 : vector<8x32xf32>, i32 -> vector<8x32xf32>
    %c1_i32_25 = arith.constant 1 : i32
    %77 = vector.broadcast %c1_i32_25 : i32 to vector<8x1xi32>
    %78 = arith.addi %39, %77 : vector<8x1xi32>
    %c0_i32_26 = arith.constant 0 : i32
    %79 = vector.broadcast %c0_i32_26 : i32 to vector<8x1xi32>
    %80 = arith.cmpi sge, %78, %79 : vector<8x1xi32>
    %c1_i32_27 = arith.constant 1 : i32
    %81 = vector.broadcast %c1_i32_27 : i32 to vector<8x1xi32>
    %82 = arith.addi %39, %81 : vector<8x1xi32>
    %c8_i32_28 = arith.constant 8 : i32
    %83 = vector.broadcast %c8_i32_28 : i32 to vector<8x1xi32>
    %84 = arith.cmpi slt, %82, %83 : vector<8x1xi32>
    %85 = arith.andi %80, %84 : vector<8x1xi1>
    %86 = arith.extui %85 : vector<8x1xi1> to vector<8x1xi32>
    %87 = arith.sitofp %86 : vector<8x1xi32> to vector<8x1xf32>
    %88 = vector.broadcast %87 : vector<8x1xf32> to vector<8x32xf32>
    %89 = arith.mulf %76, %88 : vector<8x32xf32>
    %c2 = arith.constant 2 : index
    %c0_29 = arith.constant 0 : index
    %90 = vector.load %arg6[%c2, %c0_29] : memref<3x32xf32, #tpu.memory_space<vmem>>, vector<1x32xf32>
    %91 = vector.broadcast %90 : vector<1x32xf32> to vector<8x32xf32>
    %92 = arith.mulf %89, %91 : vector<8x32xf32>
    %93 = arith.addf %75, %92 : vector<8x32xf32>
    %c0_30 = arith.constant 0 : index
    %c0_31 = arith.constant 0 : index
    %94 = vector.load %arg7[%c0_30, %c0_31] : memref<1x32xf32, #tpu.memory_space<vmem>>, vector<1x32xf32>
    %95 = vector.broadcast %94 : vector<1x32xf32> to vector<8x32xf32>
    %96 = arith.mulf %93, %95 : vector<8x32xf32>
    %c0_32 = arith.constant 0 : index
    %c0_33 = arith.constant 0 : index
    %97 = vector.load %arg8[%c0_32, %c0_33] : memref<1x32xf32, #tpu.memory_space<vmem>>, vector<1x32xf32>
    %98 = vector.broadcast %97 : vector<1x32xf32> to vector<8x32xf32>
    %99 = arith.addf %96, %98 : vector<8x32xf32>
    %100 = arith.negf %99 : vector<8x32xf32>
    %101 = math.exp %100 : vector<8x32xf32>
    %cst_34 = arith.constant 1.000000e+00 : f32
    %102 = vector.broadcast %cst_34 : f32 to vector<8x32xf32>
    %103 = arith.addf %102, %101 : vector<8x32xf32>
    %104 = arith.divf %102, %103 : vector<8x32xf32>
    %105 = arith.mulf %99, %104 : vector<8x32xf32>
    %106 = arith.truncf %105 : vector<8x32xf32> to vector<8x32xbf16>
    %c0_35 = arith.constant 0 : index
    %c0_36 = arith.constant 0 : index
    %107 = vector.load %arg9[%c0_35, %c0_36] : memref<32x32xbf16, #tpu.memory_space<vmem>>, vector<32x32xbf16>
    %cst_37 = arith.constant dense<0.000000e+00> : vector<8x32xf32>
    %108 = tpu.matmul %106, %107, %cst_37 {dimension_numbers = #tpu.dot_dimension_numbers<[1], [0], [0], [1], [0, 0, 1, 1], [], []>} : vector<8x32xbf16>, vector<32x32xbf16>, vector<8x32xf32> -> vector<8x32xf32>
    %c0_38 = arith.constant 0 : index
    %c0_39 = arith.constant 0 : index
    %109 = vector.load %arg10[%c0_38, %c0_39] : memref<1x32xf32, #tpu.memory_space<vmem>>, vector<1x32xf32>
    %110 = vector.broadcast %109 : vector<1x32xf32> to vector<8x32xf32>
    %111 = arith.addf %108, %110 : vector<8x32xf32>
    %112 = arith.addf %2, %111 : vector<8x32xf32>
    %113 = arith.truncf %112 : vector<8x32xf32> to vector<8x32xbf16>
    %c0_40 = arith.constant 0 : index
    %c0_41 = arith.constant 0 : index
    %c0_42 = arith.constant 0 : index
    %114 = vector.load %arg11[%c0_40, %c0_41, %c0_42] : memref<1x8x32xbf16, #tpu.memory_space<vmem>>, vector<1x8x32xbf16>
    %115 = vector.shape_cast %114 : vector<1x8x32xbf16> to vector<8x32xbf16>
    %116 = vector.shape_cast %113 : vector<8x32xbf16> to vector<1x8x32xbf16>
    tpu.vector_store %arg11[%c0_40, %c0_41, %c0_42], %116 {strides = array<i32>} : memref<1x8x32xbf16, #tpu.memory_space<vmem>>, vector<1x8x32xbf16>,
    return
  }
  func.func @transform_0(%arg0: i32) -> (i32, i32, i32) {
    %c0_i32 = arith.constant 0 : i32
    %c0_i32_0 = arith.constant 0 : i32
    %c0_i32_1 = arith.constant 0 : i32
    return %arg0, %c0_i32, %c0_i32_0 : i32, i32, i32
  }
  func.func @transform_1(%arg0: i32) -> (i32, i32) {
    %c0_i32 = arith.constant 0 : i32
    %c0_i32_0 = arith.constant 0 : i32
    %c0_i32_1 = arith.constant 0 : i32
    return %c0_i32, %c0_i32_0 : i32, i32
  }
  func.func @transform_2(%arg0: i32) -> (i32, i32) {
    %c0_i32 = arith.constant 0 : i32
    %c0_i32_0 = arith.constant 0 : i32
    %c0_i32_1 = arith.constant 0 : i32
    return %c0_i32, %c0_i32_0 : i32, i32
  }
  func.func @transform_3(%arg0: i32) -> (i32, i32) {
    %c0_i32 = arith.constant 0 : i32
    %c0_i32_0 = arith.constant 0 : i32
    %c0_i32_1 = arith.constant 0 : i32
    return %c0_i32, %c0_i32_0 : i32, i32
  }
  func.func @transform_4(%arg0: i32) -> (i32, i32) {
    %c0_i32 = arith.constant 0 : i32
    %c0_i32_0 = arith.constant 0 : i32
    %c0_i32_1 = arith.constant 0 : i32
    return %c0_i32, %c0_i32_0 : i32, i32
  }
  func.func @transform_5(%arg0: i32) -> (i32, i32) {
    %c0_i32 = arith.constant 0 : i32
    %c0_i32_0 = arith.constant 0 : i32
    %c0_i32_1 = arith.constant 0 : i32
    return %c0_i32, %c0_i32_0 : i32, i32
  }
  func.func @transform_6(%arg0: i32) -> (i32, i32) {
    %c0_i32 = arith.constant 0 : i32
    %c0_i32_0 = arith.constant 0 : i32
    %c0_i32_1 = arith.constant 0 : i32
    return %c0_i32, %c0_i32_0 : i32, i32
  }
  func.func @transform_7(%arg0: i32) -> (i32, i32) {
    %c0_i32 = arith.constant 0 : i32
    %c0_i32_0 = arith.constant 0 : i32
    %c0_i32_1 = arith.constant 0 : i32
    return %c0_i32, %c0_i32_0 : i32, i32
  }
  func.func @transform_8(%arg0: i32) -> (i32, i32) {
    %c0_i32 = arith.constant 0 : i32
    %c0_i32_0 = arith.constant 0 : i32
    %c0_i32_1 = arith.constant 0 : i32
    return %c0_i32, %c0_i32_0 : i32, i32
  }
  func.func @transform_9(%arg0: i32) -> (i32, i32) {
    %c0_i32 = arith.constant 0 : i32
    %c0_i32_0 = arith.constant 0 : i32
    %c0_i32_1 = arith.constant 0 : i32
    return %c0_i32, %c0_i32_0 : i32, i32
  }
  func.func @transform_10(%arg0: i32) -> (i32, i32, i32) {
    %c0_i32 = arith.constant 0 : i32
    %c0_i32_0 = arith.constant 0 : i32
    %c0_i32_1 = arith.constant 0 : i32
    return %arg0, %c0_i32, %c0_i32_0 : i32, i32, i32
  }
}

</mosaic_0001>

<llo_original>
// kernel: predictor_forward.9
$region0: #{predictor_forward.9}
  #allocation0 [shape = 'u32[]', space=smem, size = 0x4, offset = 0x4, fixed_abs, tag = 'smem constant byte address 0x4 - core index']
  #allocation1 [shape = 'u32[72,128]{1,0:T(1,128)}', space=vmem, size = 0x9000, scoped, tag = 'internal scratch']
  %s0 = inlined_call_operand.vmem [shape: bf16[16,32], index: 0, kind: input, shape index: {}]
  %s1 = inlined_call_operand.hbm [shape: f32[1,32], index: 1, kind: input, shape index: {}]
  %s2 = inlined_call_operand.hbm [shape: f32[1,32], index: 2, kind: input, shape index: {}]
  %s3 = inlined_call_operand.vmem [shape: bf16[32,64], index: 3, kind: input, shape index: {}]
  %s4 = inlined_call_operand.hbm [shape: f32[1,64], index: 4, kind: input, shape index: {}]
  %s5 = inlined_call_operand.vmem [shape: bf16[64,32], index: 5, kind: input, shape index: {}]
  %s6 = inlined_call_operand.hbm [shape: f32[1,32], index: 6, kind: input, shape index: {}]
  %s7 = inlined_call_operand.vmem [shape: bf16[16,32], index: 7, kind: output, shape index: {}]
  %s8 = sld [smem:[#allocation0]]
  $region54: #{predictor_forward.9} parent=0
    _
  %s10 = ssub.s32 1, %s8
  %s11 = scalar_select 0, %s10, %s8
  $region1: #{predictor_forward.9} parent=0
    #allocation2 [shape = 'u8[512]{0}', space=vmem, size = 0x400, scoped, tag = 'input window, operand 1, single buffered']
    #allocation3 [shape = 's32[1]{0}', space=sflag, size = 0x4, scoped, tag = 'scoped memory for predictor_forward.9']
    #allocation4 [shape = 'u8[512]{0}', space=vmem, size = 0x400, scoped, tag = 'input window, operand 2, single buffered']
    #allocation5 [shape = 's32[1]{0}', space=sflag, size = 0x4, scoped, tag = 'scoped memory for predictor_forward.9']
    #allocation6 [shape = 'u8[512]{0}', space=vmem, size = 0x400, scoped, tag = 'input window, operand 4, single buffered']
    #allocation7 [shape = 'u8[512]{0}', space=vmem, size = 0x400, scoped, tag = 'input window, operand 6, single buffered']
    #allocation8 [shape = 's32[1]{0}', space=sflag, size = 0x4, scoped, tag = 'scoped memory for predictor_forward.9']
    %12 = vsyncpa [#allocation3], 0
    %13 = vsyncpa [#allocation5], 0
    %14 = vsyncpa [#allocation8], 0
    // Predicated region
    $region2: #{predictor_forward.9} parent=1 // pred_check
      _
    $region3: #{predictor_forward.9} parent=1 // pred_check_branch
      %16 = sbr.rel (0) target = $region5
    $region4: #{predictor_forward.9} parent=1 // pred_region
      _
    $region5: #{predictor_forward.9} parent=1 // pred_fallthru
      _
    // Predicated region
    $region6: #{predictor_forward.9} parent=1 // pred_check
      _
    $region7: #{predictor_forward.9} parent=1 // pred_check_branch
      %18 = sbr.rel (0) target = $region9
    $region8: #{predictor_forward.9} parent=1 // pred_region
      %20 = vsyncadd [#allocation3], 0
      %s22 = sshll.u32 %s1, 4
      %s23 = int_to_ptr.hbm [resolvable:$true] %s22
      %s24 = sshll.u32 [#allocation2], 4
      %s25 = int_to_ptr.vmem [resolvable:$true] %s24
      %27 = dma.hbm_to_vmem [thread:$0]  %s23, 16, %s25, [#allocation3]
    $region9: #{predictor_forward.9} parent=1 // pred_fallthru
      _
    // Predicated region
    $region10: #{predictor_forward.9} parent=1 // pred_check
      _
    $region11: #{predictor_forward.9} parent=1 // pred_check_branch
      %29 = sbr.rel (0) target = $region13
    $region12: #{predictor_forward.9} parent=1 // pred_region
      %31 = vsyncadd [#allocation5], 0
      %s33 = sshll.u32 %s2, 4
      %s34 = int_to_ptr.hbm [resolvable:$true] %s33
      %s35 = sshll.u32 [#allocation4], 4
      %s36 = int_to_ptr.vmem [resolvable:$true] %s35
      %38 = dma.hbm_to_vmem [thread:$0]  %s34, 16, %s36, [#allocation5]
    $region13: #{predictor_forward.9} parent=1 // pred_fallthru
      _
    // Predicated region
    $region14: #{predictor_forward.9} parent=1 // pred_check
      _
    $region15: #{predictor_forward.9} parent=1 // pred_check_branch
      %40 = sbr.rel (0) target = $region17
    $region16: #{predictor_forward.9} parent=1 // pred_region
      _
    $region17: #{predictor_forward.9} parent=1 // pred_fallthru
      _
    // Predicated region
    $region18: #{predictor_forward.9} parent=1 // pred_check
      _
    $region19: #{predictor_forward.9} parent=1 // pred_check_branch
      %42 = sbr.rel (0) target = $region21
    $region20: #{predictor_forward.9} parent=1 // pred_region
      %44 = vsyncadd [#allocation5], 0
      %s46 = sshll.u32 %s4, 4
      %s47 = int_to_ptr.hbm [resolvable:$true] %s46
      %s48 = sshll.u32 [#allocation6], 4
      %s49 = int_to_ptr.vmem [resolvable:$true] %s48
      %51 = dma.hbm_to_vmem [thread:$0]  %s47, 16, %s49, [#allocation5]
    $region21: #{predictor_forward.9} parent=1 // pred_fallthru
      _
    // Predicated region
    $region22: #{predictor_forward.9} parent=1 // pred_check
      _
    $region23: #{predictor_forward.9} parent=1 // pred_check_branch
      %53 = sbr.rel (0) target = $region25
    $region24: #{predictor_forward.9} parent=1 // pred_region
      _
    $region25: #{predictor_forward.9} parent=1 // pred_fallthru
      _
    // Predicated region
    $region26: #{predictor_forward.9} parent=1 // pred_check
      _
    $region27: #{predictor_forward.9} parent=1 // pred_check_branch
      %55 = sbr.rel (0) target = $region29
    $region28: #{predictor_forward.9} parent=1 // pred_region
      %57 = vsyncadd [#allocation8], 0
      %s59 = sshll.u32 %s6, 4
      %s60 = int_to_ptr.hbm [resolvable:$true] %s59
      %s61 = sshll.u32 [#allocation7], 4
      %s62 = int_to_ptr.vmem [resolvable:$true] %s61
      %64 = dma.hbm_to_vmem [thread:$0]  %s60, 16, %s62, [#allocation8]
    $region29: #{predictor_forward.9} parent=1 // pred_fallthru
      _
    // Predicated region
    $region30: #{predictor_forward.9} parent=1 // pred_check
      _
    $region31: #{predictor_forward.9} parent=1 // pred_check_branch
      %66 = sbr.rel (0) target = $region33
    $region32: #{predictor_forward.9} parent=1 // pred_region
      %68 = dma.done [#allocation3], 16
    $region33: #{predictor_forward.9} parent=1 // pred_fallthru
      _
    // Predicated region
    $region34: #{predictor_forward.9} parent=1 // pred_check
      _
    $region35: #{predictor_forward.9} parent=1 // pred_check_branch
      %70 = sbr.rel (0) target = $region37
    $region36: #{predictor_forward.9} parent=1 // pred_region
      %72 = dma.done [#allocation5], 16
    $region37: #{predictor_forward.9} parent=1 // pred_fallthru
      _
    // Predicated region
    $region38: #{predictor_forward.9} parent=1 // pred_check
      _
    $region39: #{predictor_forward.9} parent=1 // pred_check_branch
      %74 = sbr.rel (0) target = $region41
    $region40: #{predictor_forward.9} parent=1 // pred_region
      %76 = dma.done [#allocation5], 16
    $region41: #{predictor_forward.9} parent=1 // pred_fallthru
      _
    // Predicated region
    $region42: #{predictor_forward.9} parent=1 // pred_check
      _
    $region43: #{predictor_forward.9} parent=1 // pred_check_branch
      %78 = sbr.rel (0) target = $region45
    $region44: #{predictor_forward.9} parent=1 // pred_region
      %80 = dma.done [#allocation8], 16
    $region45: #{predictor_forward.9} parent=1 // pred_fallthru
      _
    %v82 = vld [vmem:[%s0] sm:$0xf]
    %v83 = vld [vmem:[%s0 + $0x4] sm:$0xf]
    %v84 = vunpack.c.l.bf16 %v82
    %v85 = vunpack.c.l.bf16 %v83
    %v86 = vld [vmem:[#allocation2] sm:$0x1]
    %v87 = vld [vmem:[#allocation4] sm:$0x1]
    %vm88 = vcmask 261120
    %v89 = vsel %vm88, %v84, 0.0
    %90 = vadd.xlane.f32.xlu0 %v89
    %v91 = vpop.xlane.xlu0 %90
    %v92 = vsel %vm88, %v85, 0.0
    %93 = vadd.xlane.f32.xlu0 %v92
    %v94 = vpop.xlane.xlu0 %93
    %v95 = vrcp.pop 32.0
    %v96 = vmul.f32 32.0, %v95
    %v97 = vsub.f32 1.0, %v96
    %v98 = vmul.f32 %v95, %v97
    %v99 = vadd.f32 %v95, %v98
    %vm100 = vweird.f32 %v95
    %v101 = vsel %vm100, %v95, %v99
    %v102 = vmul.f32 %v91, %v101
    %v103 = vmul.f32 %v94, %v101
    %v104 = vsub.f32 %v84, %v102
    %v105 = vsub.f32 %v85, %v103
    %v106 = vmul.f32 %v104, %v104
    %v107 = vmul.f32 %v105, %v105
    %v108 = vsel %vm88, %v106, 0.0
    %109 = vadd.xlane.f32.xlu0 %v108
    %v110 = vpop.xlane.xlu0 %109
    %v111 = vsel %vm88, %v107, 0.0
    %112 = vadd.xlane.f32.xlu0 %v111
    %v113 = vpop.xlane.xlu0 %112
    %v114 = vmul.f32 %v110, %v101
    %v115 = vmul.f32 %v113, %v101
    %v116 = vadd.f32 %v114, 1e-05
    %v117 = vadd.f32 %v115, 1e-05
    %v118 = vrsqrt.pop %v116
    %v119 = vmul.f32 %v118, %v116
    %v120 = vmul.f32 %v119, %v118
    %v121 = vmul.f32 0.5, %v120
    %v122 = vsub.f32 1.5, %v121
    %v123 = vmul.f32 %v118, %v122
    %vm124 = vweird.f32 %v116
    %vm125 = vweird.f32 %v118
    %vm126 = vmor %vm124, %vm125
    %v127 = vsel %vm126, %v118, %v123
    %v128 = vrsqrt.pop %v117
    %v129 = vmul.f32 %v128, %v117
    %v130 = vmul.f32 %v129, %v128
    %v131 = vmul.f32 0.5, %v130
    %v132 = vsub.f32 1.5, %v131
    %v133 = vmul.f32 %v128, %v132
    %vm134 = vweird.f32 %v117
    %vm135 = vweird.f32 %v128
    %vm136 = vmor %vm134, %vm135
    %v137 = vsel %vm136, %v128, %v133
    %v138 = vmul.f32 %v104, %v127
    %v139 = vmul.f32 %v105, %v137
    %v141 = vperm.slane %v86, 0
    %v143 = vmul.f32 %v138, %v141
    %v144 = vmul.f32 %v139, %v141
    %v146 = vperm.slane %v87, 0
    %v148 = vadd.f32 %v143, %v146
    %v149 = vadd.f32 %v144, %v146
    %v150 = vpack.c.bf16 %v149, %v148
    %v151 = vld [vmem:[%s3] sm:$0xf]
    %v152 = vld [vmem:[%s3 + $0x4] sm:$0xf]
    %v153 = vld [vmem:[%s3 + $0x8] sm:$0xf]
    %v154 = vld [vmem:[%s3 + $0xc] sm:$0xf]
    %v155 = vld [vmem:[#allocation6] sm:$0x1]
    %v157 = vperm.slane %v155, 0
    %v163 = vunpack.c.l.b16 %v151
    %v164 = vunpack.c.l.b16 %v152
    %v165 = vunpack.c.l.b16 %v153
    %v166 = vunpack.c.l.b16 %v154
    %v167 = vpack.c.b16 %v164, %v163
    %v168 = vpack.c.b16 %v166, %v165
    %v172 = vsel %vm88, %v150, 0
    %174 = vmatpush.bf16.msra.mxu0 0
    %175 = vmatpush.bf16.msra.mxu0 0
    %176 = vmatpush.bf16.msra.mxu0 0
    %177 = vmatpush.bf16.msra.mxu0 0
    %178 = vmatpush.bf16.msra.mxu0 0
    %179 = vmatpush.bf16.msra.mxu0 0
    %180 = vmatpush.bf16.msra.mxu0 %v168
    %181 = vmatpush.bf16.msra.mxu0 %v167
    %182 = vmatmul.bf16.gmra.mxu0 %v172
    %v183 = vpop.f32.mrf.mxu0
    %v184 = vadd.f32 %v157, %v183
    %v185 = vpop.f32.mrf.mxu0
    %v186 = vadd.f32 %v157, %v185
    %187 = vdwg.mxu0
    %v188 = vxor.u32 %v184, 2147483648
    %v189 = vxor.u32 %v186, 2147483648
    %v190 = vmul.f32 %v188, 1.442695
    %v191 = vpow.pop %v190
    %v192 = vmul.f32 %v189, 1.442695
    %v193 = vpow.pop %v192
    %v194 = vadd.f32 %v191, 1.0
    %v195 = vadd.f32 %v193, 1.0
    %v196 = vrcp.pop %v194
    %v197 = vmul.f32 %v194, %v196
    %v198 = vsub.f32 1.0, %v197
    %v199 = vmul.f32 %v196, %v198
    %v200 = vadd.f32 %v196, %v199
    %vm201 = vweird.f32 %v194
    %vm202 = vweird.f32 %v196
    %vm203 = vmor %vm201, %vm202
    %v204 = vsel %vm203, %v196, %v200
    %v205 = vand.u32 2147483647, %v194
    %vm206 = vcmp.eq.f32.partialorder %v205, 8.507059e+37
    %v207 = vand.u32 %v194, 2147483648
    %v208 = vor.u32 1.1754944e-38, %v207
    %v209 = vsel %vm206, %v208, %v204
    %v210 = vmul.f32 1.0, %v209
    %v211 = vrcp.pop %v195
    %v212 = vmul.f32 %v195, %v211
    %v213 = vsub.f32 1.0, %v212
    %v214 = vmul.f32 %v211, %v213
    %v215 = vadd.f32 %v211, %v214
    %vm216 = vweird.f32 %v195
    %vm217 = vweird.f32 %v211
    %vm218 = vmor %vm216, %vm217
    %v219 = vsel %vm218, %v211, %v215
    %v220 = vand.u32 2147483647, %v195
    %vm221 = vcmp.eq.f32.partialorder %v220, 8.507059e+37
    %v222 = vand.u32 %v195, 2147483648
    %v223 = vor.u32 1.1754944e-38, %v222
    %v224 = vsel %vm221, %v223, %v219
    %v225 = vmul.f32 1.0, %v224
    %v226 = vmul.f32 %v184, %v210
    %v227 = vmul.f32 %v186, %v225
    %v228 = vpack.c.bf16 %v227, %v226
    %v229 = vld [vmem:[%s5] sm:$0xf]
    %v230 = vld [vmem:[%s5 + $0x4] sm:$0xf]
    %v231 = vld [vmem:[%s5 + $0x8] sm:$0xf]
    %v232 = vld [vmem:[%s5 + $0xc] sm:$0xf]
    %v233 = vld [vmem:[%s5 + $0x10] sm:$0xf]
    %v234 = vld [vmem:[%s5 + $0x14] sm:$0xf]
    %v235 = vld [vmem:[%s5 + $0x18] sm:$0xf]
    %v236 = vld [vmem:[%s5 + $0x1c] sm:$0xf]
    %v237 = vld [vmem:[#allocation7] sm:$0x1]
    %v239 = vperm.slane %v237, 0
    %v249 = vunpack.c.l.b16 %v229
    %v250 = vunpack.c.l.b16 %v230
    %v251 = vunpack.c.l.b16 %v231
    %v252 = vunpack.c.l.b16 %v232
    %v253 = vunpack.c.l.b16 %v233
    %v254 = vunpack.c.l.b16 %v234
    %v255 = vunpack.c.l.b16 %v235
    %v256 = vunpack.c.l.b16 %v236
    %v257 = vpack.c.b16 %v250, %v249
    %v258 = vpack.c.b16 %v252, %v251
    %v259 = vpack.c.b16 %v254, %v253
    %v260 = vpack.c.b16 %v256, %v255
    %vm265 = vcmask 523264
    %v267 = vsel %vm265, %v228, 0
    %269 = vmatpush.bf16.msra.mxu0 0
    %270 = vmatpush.bf16.msra.mxu0 0
    %271 = vmatpush.bf16.msra.mxu0 0
    %272 = vmatpush.bf16.msra.mxu0 0
    %273 = vmatpush.bf16.msra.mxu0 %v260
    %274 = vmatpush.bf16.msra.mxu0 %v259
    %275 = vmatpush.bf16.msra.mxu0 %v258
    %276 = vmatpush.bf16.msra.mxu0 %v257
    %277 = vmatmul.bf16.gmra.mxu0 %v267
    %v278 = vpop.f32.mrf.mxu0
    %v279 = vadd.f32 %v239, %v278
    %v280 = vpop.f32.mrf.mxu0
    %v281 = vadd.f32 %v239, %v280
    %282 = vdwg.mxu0
    %v283 = vmul.f32 %v279, 0.5
    %v284 = vmul.f32 %v281, 0.5
    %v285 = vadd.f32 %v84, %v283
    %v286 = vadd.f32 %v85, %v284
    %v287 = vpack.c.bf16 %v285, %v285
    %v288 = vpack.c.bf16 %v286, %v286
    %vm289 = vcmask 257024
    %290 = vst.msk [vmem:[%s7] sm:$0xf] %vm289, %v287
    %291 = vst.msk [vmem:[%s7 + $0x4] sm:$0xf] %vm289, %v288
    // Predicated region
    $region46: #{predictor_forward.9} parent=1 // pred_check
      _
    $region47: #{predictor_forward.9} parent=1 // pred_check_branch
      %293 = sbr.rel (0) target = $region49
    $region48: #{predictor_forward.9} parent=1 // pred_region
      _
    $region49: #{predictor_forward.9} parent=1 // pred_fallthru
      _
    // Predicated region
    $region50: #{predictor_forward.9} parent=1 // pred_check
      _
    $region51: #{predictor_forward.9} parent=1 // pred_check_branch
      %295 = sbr.rel (0) target = $region53
    $region52: #{predictor_forward.9} parent=1 // pred_region
      _
    $region53: #{predictor_forward.9} parent=1 // pred_fallthru
      _
    %296 = vsyncpa [#allocation3], 1
    %297 = vsyncpa [#allocation5], 1
    %298 = vsyncpa [#allocation8], 1

// kernel: predictor_forward.12
$region0: #{predictor_forward.12}
  #allocation0 [shape = 'u32[]', space=smem, size = 0x4, offset = 0x4, fixed_abs, tag = 'smem constant byte address 0x4 - core index']
  #allocation1 [shape = 'u32[72,128]{1,0:T(1,128)}', space=vmem, size = 0x9000, scoped, tag = 'internal scratch']
  %s0 = inlined_call_operand.vmem [shape: bf16[16,32], index: 0, kind: input, shape index: {}]
  %s1 = inlined_call_operand.vmem [shape: f32[1,32], index: 1, kind: input, shape index: {}]
  %s2 = inlined_call_operand.hbm [shape: f32[1,32], index: 2, kind: input, shape index: {}]
  %s3 = inlined_call_operand.vmem [shape: bf16[32,64], index: 3, kind: input, shape index: {}]
  %s4 = inlined_call_operand.hbm [shape: f32[1,64], index: 4, kind: input, shape index: {}]
  %s5 = inlined_call_operand.vmem [shape: bf16[64,32], index: 5, kind: input, shape index: {}]
  %s6 = inlined_call_operand.hbm [shape: f32[1,32], index: 6, kind: input, shape index: {}]
  %s7 = inlined_call_operand.hbm [shape: f32[1,32], index: 7, kind: input, shape index: {}]
  %s8 = inlined_call_operand.hbm [shape: f32[1,32], index: 8, kind: input, shape index: {}]
  %s9 = inlined_call_operand.vmem [shape: bf16[16,32], index: 9, kind: output, shape index: {}]
  %s10 = sld [smem:[#allocation0]]
  $region66: #{predictor_forward.12} parent=0
    _
  %s12 = ssub.s32 1, %s10
  %s13 = scalar_select 0, %s12, %s10
  $region1: #{predictor_forward.12} parent=0
    #allocation2 [shape = 'u8[512]{0}', space=vmem, size = 0x400, scoped, tag = 'input window, operand 2, single buffered']
    #allocation3 [shape = 's32[1]{0}', space=sflag, size = 0x4, scoped, tag = 'scoped memory for predictor_forward.12']
    #allocation4 [shape = 'u8[512]{0}', space=vmem, size = 0x400, scoped, tag = 'input window, operand 4, single buffered']
    #allocation5 [shape = 's32[1]{0}', space=sflag, size = 0x4, scoped, tag = 'scoped memory for predictor_forward.12']
    #allocation6 [shape = 'u8[512]{0}', space=vmem, size = 0x400, scoped, tag = 'input window, operand 6, single buffered']
    #allocation7 [shape = 'u8[512]{0}', space=vmem, size = 0x400, scoped, tag = 'input window, operand 7, single buffered']
    #allocation8 [shape = 's32[1]{0}', space=sflag, size = 0x4, scoped, tag = 'scoped memory for predictor_forward.12']
    #allocation9 [shape = 'u8[512]{0}', space=vmem, size = 0x400, scoped, tag = 'input window, operand 8, single buffered']
    %14 = vsyncpa [#allocation3], 0
    %15 = vsyncpa [#allocation5], 0
    %16 = vsyncpa [#allocation8], 0
    // Predicated region
    $region2: #{predictor_forward.12} parent=1 // pred_check
      _
    $region3: #{predictor_forward.12} parent=1 // pred_check_branch
      %18 = sbr.rel (0) target = $region5
    $region4: #{predictor_forward.12} parent=1 // pred_region
      _
    $region5: #{predictor_forward.12} parent=1 // pred_fallthru
      _
    // Predicated region
    $region6: #{predictor_forward.12} parent=1 // pred_check
      _
    $region7: #{predictor_forward.12} parent=1 // pred_check_branch
      %20 = sbr.rel (0) target = $region9
    $region8: #{predictor_forward.12} parent=1 // pred_region
      _
    $region9: #{predictor_forward.12} parent=1 // pred_fallthru
      _
    // Predicated region
    $region10: #{predictor_forward.12} parent=1 // pred_check
      _
    $region11: #{predictor_forward.12} parent=1 // pred_check_branch
      %22 = sbr.rel (0) target = $region13
    $region12: #{predictor_forward.12} parent=1 // pred_region
      %24 = vsyncadd [#allocation3], 0
      %s26 = sshll.u32 %s2, 4
      %s27 = int_to_ptr.hbm [resolvable:$true] %s26
      %s28 = sshll.u32 [#allocation2], 4
      %s29 = int_to_ptr.vmem [resolvable:$true] %s28
      %31 = dma.hbm_to_vmem [thread:$0]  %s27, 16, %s29, [#allocation3]
    $region13: #{predictor_forward.12} parent=1 // pred_fallthru
      _
    // Predicated region
    $region14: #{predictor_forward.12} parent=1 // pred_check
      _
    $region15: #{predictor_forward.12} parent=1 // pred_check_branch
      %33 = sbr.rel (0) target = $region17
    $region16: #{predictor_forward.12} parent=1 // pred_region
      _
    $region17: #{predictor_forward.12} parent=1 // pred_fallthru
      _
    // Predicated region
    $region18: #{predictor_forward.12} parent=1 // pred_check
      _
    $region19: #{predictor_forward.12} parent=1 // pred_check_branch
      %35 = sbr.rel (0) target = $region21
    $region20: #{predictor_forward.12} parent=1 // pred_region
      %37 = vsyncadd [#allocation5], 0
      %s39 = sshll.u32 %s4, 4
      %s40 = int_to_ptr.hbm [resolvable:$true] %s39
      %s41 = sshll.u32 [#allocation4], 4
      %s42 = int_to_ptr.vmem [resolvable:$true] %s41
      %44 = dma.hbm_to_vmem [thread:$0]  %s40, 16, %s42, [#allocation5]
    $region21: #{predictor_forward.12} parent=1 // pred_fallthru
      _
    // Predicated region
    $region22: #{predictor_forward.12} parent=1 // pred_check
      _
    $region23: #{predictor_forward.12} parent=1 // pred_check_branch
      %46 = sbr.rel (0) target = $region25
    $region24: #{predictor_forward.12} parent=1 // pred_region
      _
    $region25: #{predictor_forward.12} parent=1 // pred_fallthru
      _
    // Predicated region
    $region26: #{predictor_forward.12} parent=1 // pred_check
      _
    $region27: #{predictor_forward.12} parent=1 // pred_check_branch
      %48 = sbr.rel (0) target = $region29
    $region28: #{predictor_forward.12} parent=1 // pred_region
      %50 = vsyncadd [#allocation5], 0
      %s52 = sshll.u32 %s6, 4
      %s53 = int_to_ptr.hbm [resolvable:$true] %s52
      %s54 = sshll.u32 [#allocation6], 4
      %s55 = int_to_ptr.vmem [resolvable:$true] %s54
      %57 = dma.hbm_to_vmem [thread:$0]  %s53, 16, %s55, [#allocation5]
    $region29: #{predictor_forward.12} parent=1 // pred_fallthru
      _
    // Predicated region
    $region30: #{predictor_forward.12} parent=1 // pred_check
      _
    $region31: #{predictor_forward.12} parent=1 // pred_check_branch
      %59 = sbr.rel (0) target = $region33
    $region32: #{predictor_forward.12} parent=1 // pred_region
      %61 = vsyncadd [#allocation8], 0
      %s63 = sshll.u32 %s7, 4
      %s64 = int_to_ptr.hbm [resolvable:$true] %s63
      %s65 = sshll.u32 [#allocation7], 4
      %s66 = int_to_ptr.vmem [resolvable:$true] %s65
      %68 = dma.hbm_to_vmem [thread:$0]  %s64, 16, %s66, [#allocation8]
    $region33: #{predictor_forward.12} parent=1 // pred_fallthru
      _
    // Predicated region
    $region34: #{predictor_forward.12} parent=1 // pred_check
      _
    $region35: #{predictor_forward.12} parent=1 // pred_check_branch
      %70 = sbr.rel (0) target = $region37
    $region36: #{predictor_forward.12} parent=1 // pred_region
      %72 = vsyncadd [#allocation8], 0
      %s74 = sshll.u32 %s8, 4
      %s75 = int_to_ptr.hbm [resolvable:$true] %s74
      %s76 = sshll.u32 [#allocation9], 4
      %s77 = int_to_ptr.vmem [resolvable:$true] %s76
      %79 = dma.hbm_to_vmem [thread:$0]  %s75, 16, %s77, [#allocation8]
    $region37: #{predictor_forward.12} parent=1 // pred_fallthru
      _
    // Predicated region
    $region38: #{predictor_forward.12} parent=1 // pred_check
      _
    $region39: #{predictor_forward.12} parent=1 // pred_check_branch
      %81 = sbr.rel (0) target = $region41
    $region40: #{predictor_forward.12} parent=1 // pred_region
      %83 = dma.done [#allocation3], 16
    $region41: #{predictor_forward.12} parent=1 // pred_fallthru
      _
    // Predicated region
    $region42: #{predictor_forward.12} parent=1 // pred_check
      _
    $region43: #{predictor_forward.12} parent=1 // pred_check_branch
      %85 = sbr.rel (0) target = $region45
    $region44: #{predictor_forward.12} parent=1 // pred_region
      %87 = dma.done [#allocation5], 16
    $region45: #{predictor_forward.12} parent=1 // pred_fallthru
      _
    // Predicated region
    $region46: #{predictor_forward.12} parent=1 // pred_check
      _
    $region47: #{predictor_forward.12} parent=1 // pred_check_branch
      %89 = sbr.rel (0) target = $region49
    $region48: #{predictor_forward.12} parent=1 // pred_region
      %91 = dma.done [#allocation5], 16
    $region49: #{predictor_forward.12} parent=1 // pred_fallthru
      _
    // Predicated region
    $region50: #{predictor_forward.12} parent=1 // pred_check
      _
    $region51: #{predictor_forward.12} parent=1 // pred_check_branch
      %93 = sbr.rel (0) target = $region53
    $region52: #{predictor_forward.12} parent=1 // pred_region
      %95 = dma.done [#allocation8], 16
    $region53: #{predictor_forward.12} parent=1 // pred_fallthru
      _
    // Predicated region
    $region54: #{predictor_forward.12} parent=1 // pred_check
      _
    $region55: #{predictor_forward.12} parent=1 // pred_check_branch
      %97 = sbr.rel (0) target = $region57
    $region56: #{predictor_forward.12} parent=1 // pred_region
      %99 = dma.done [#allocation8], 16
    $region57: #{predictor_forward.12} parent=1 // pred_fallthru
      _
    %v101 = vld [vmem:[%s0] sm:$0xf]
    %v102 = vld [vmem:[%s0 + $0x4] sm:$0xf]
    %v103 = vunpack.c.l.bf16 %v101
    %v104 = vunpack.c.l.bf16 %v102
    %v105 = vld [vmem:[%s1] sm:$0x1]
    %v106 = vld [vmem:[#allocation2] sm:$0x1]
    %vm107 = vcmask 261120
    %v108 = vsel %vm107, %v103, 0.0
    %109 = vadd.xlane.f32.xlu0 %v108
    %v110 = vpop.xlane.xlu0 %109
    %v111 = vsel %vm107, %v104, 0.0
    %112 = vadd.xlane.f32.xlu0 %v111
    %v113 = vpop.xlane.xlu0 %112
    %v114 = vrcp.pop 32.0
    %v115 = vmul.f32 32.0, %v114
    %v116 = vsub.f32 1.0, %v115
    %v117 = vmul.f32 %v114, %v116
    %v118 = vadd.f32 %v114, %v117
    %vm119 = vweird.f32 %v114
    %v120 = vsel %vm119, %v114, %v118
    %v121 = vmul.f32 %v110, %v120
    %v122 = vmul.f32 %v113, %v120
    %v123 = vsub.f32 %v103, %v121
    %v124 = vsub.f32 %v104, %v122
    %v125 = vmul.f32 %v123, %v123
    %v126 = vmul.f32 %v124, %v124
    %v127 = vsel %vm107, %v125, 0.0
    %128 = vadd.xlane.f32.xlu0 %v127
    %v129 = vpop.xlane.xlu0 %128
    %v130 = vsel %vm107, %v126, 0.0
    %131 = vadd.xlane.f32.xlu0 %v130
    %v132 = vpop.xlane.xlu0 %131
    %v133 = vmul.f32 %v129, %v120
    %v134 = vmul.f32 %v132, %v120
    %v135 = vadd.f32 %v133, 1e-05
    %v136 = vadd.f32 %v134, 1e-05
    %v137 = vrsqrt.pop %v135
    %v138 = vmul.f32 %v137, %v135
    %v139 = vmul.f32 %v138, %v137
    %v140 = vmul.f32 0.5, %v139
    %v141 = vsub.f32 1.5, %v140
    %v142 = vmul.f32 %v137, %v141
    %vm143 = vweird.f32 %v135
    %vm144 = vweird.f32 %v137
    %vm145 = vmor %vm143, %vm144
    %v146 = vsel %vm145, %v137, %v142
    %v147 = vrsqrt.pop %v136
    %v148 = vmul.f32 %v147, %v136
    %v149 = vmul.f32 %v148, %v147
    %v150 = vmul.f32 0.5, %v149
    %v151 = vsub.f32 1.5, %v150
    %v152 = vmul.f32 %v147, %v151
    %vm153 = vweird.f32 %v136
    %vm154 = vweird.f32 %v147
    %vm155 = vmor %vm153, %vm154
    %v156 = vsel %vm155, %v147, %v152
    %v157 = vmul.f32 %v123, %v146
    %v158 = vmul.f32 %v124, %v156
    %v160 = vperm.slane %v105, 0
    %v162 = vmul.f32 %v157, %v160
    %v163 = vmul.f32 %v158, %v160
    %v165 = vperm.slane %v106, 0
    %v167 = vadd.f32 %v162, %v165
    %v168 = vadd.f32 %v163, %v165
    %v169 = vpack.c.bf16 %v168, %v167
    %v170 = vld [vmem:[%s3] sm:$0xf]
    %v171 = vld [vmem:[%s3 + $0x4] sm:$0xf]
    %v172 = vld [vmem:[%s3 + $0x8] sm:$0xf]
    %v173 = vld [vmem:[%s3 + $0xc] sm:$0xf]
    %v174 = vld [vmem:[#allocation4] sm:$0x1]
    %v176 = vperm.slane %v174, 0
    %v182 = vunpack.c.l.b16 %v170
    %v183 = vunpack.c.l.b16 %v171
    %v184 = vunpack.c.l.b16 %v172
    %v185 = vunpack.c.l.b16 %v173
    %v186 = vpack.c.b16 %v183, %v182
    %v187 = vpack.c.b16 %v185, %v184
    %v191 = vsel %vm107, %v169, 0
    %193 = vmatpush.bf16.msra.mxu0 0
    %194 = vmatpush.bf16.msra.mxu0 0
    %195 = vmatpush.bf16.msra.mxu0 0
    %196 = vmatpush.bf16.msra.mxu0 0
    %197 = vmatpush.bf16.msra.mxu0 0
    %198 = vmatpush.bf16.msra.mxu0 0
    %199 = vmatpush.bf16.msra.mxu0 %v187
    %200 = vmatpush.bf16.msra.mxu0 %v186
    %201 = vmatmul.bf16.gmra.mxu0 %v191
    %v202 = vpop.f32.mrf.mxu0
    %v203 = vadd.f32 %v176, %v202
    %v204 = vpop.f32.mrf.mxu0
    %v205 = vadd.f32 %v176, %v204
    %206 = vdwg.mxu0
    %v207 = vxor.u32 %v203, 2147483648
    %v208 = vxor.u32 %v205, 2147483648
    %v209 = vmul.f32 %v207, 1.442695
    %v210 = vpow.pop %v209
    %v211 = vmul.f32 %v208, 1.442695
    %v212 = vpow.pop %v211
    %v213 = vadd.f32 %v210, 1.0
    %v214 = vadd.f32 %v212, 1.0
    %v215 = vrcp.pop %v213
    %v216 = vmul.f32 %v213, %v215
    %v217 = vsub.f32 1.0, %v216
    %v218 = vmul.f32 %v215, %v217
    %v219 = vadd.f32 %v215, %v218
    %vm220 = vweird.f32 %v213
    %vm221 = vweird.f32 %v215
    %vm222 = vmor %vm220, %vm221
    %v223 = vsel %vm222, %v215, %v219
    %v224 = vand.u32 2147483647, %v213
    %vm225 = vcmp.eq.f32.partialorder %v224, 8.507059e+37
    %v226 = vand.u32 %v213, 2147483648
    %v227 = vor.u32 1.1754944e-38, %v226
    %v228 = vsel %vm225, %v227, %v223
    %v229 = vmul.f32 1.0, %v228
    %v230 = vrcp.pop %v214
    %v231 = vmul.f32 %v214, %v230
    %v232 = vsub.f32 1.0, %v231
    %v233 = vmul.f32 %v230, %v232
    %v234 = vadd.f32 %v230, %v233
    %vm235 = vweird.f32 %v214
    %vm236 = vweird.f32 %v230
    %vm237 = vmor %vm235, %vm236
    %v238 = vsel %vm237, %v230, %v234
    %v239 = vand.u32 2147483647, %v214
    %vm240 = vcmp.eq.f32.partialorder %v239, 8.507059e+37
    %v241 = vand.u32 %v214, 2147483648
    %v242 = vor.u32 1.1754944e-38, %v241
    %v243 = vsel %vm240, %v242, %v238
    %v244 = vmul.f32 1.0, %v243
    %v245 = vmul.f32 %v203, %v229
    %v246 = vmul.f32 %v205, %v244
    %v247 = vpack.c.bf16 %v246, %v245
    %v248 = vld [vmem:[%s5] sm:$0xf]
    %v249 = vld [vmem:[%s5 + $0x4] sm:$0xf]
    %v250 = vld [vmem:[%s5 + $0x8] sm:$0xf]
    %v251 = vld [vmem:[%s5 + $0xc] sm:$0xf]
    %v252 = vld [vmem:[%s5 + $0x10] sm:$0xf]
    %v253 = vld [vmem:[%s5 + $0x14] sm:$0xf]
    %v254 = vld [vmem:[%s5 + $0x18] sm:$0xf]
    %v255 = vld [vmem:[%s5 + $0x1c] sm:$0xf]
    %v256 = vld [vmem:[#allocation6] sm:$0x1]
    %v258 = vperm.slane %v256, 0
    %v268 = vunpack.c.l.b16 %v248
    %v269 = vunpack.c.l.b16 %v249
    %v270 = vunpack.c.l.b16 %v250
    %v271 = vunpack.c.l.b16 %v251
    %v272 = vunpack.c.l.b16 %v252
    %v273 = vunpack.c.l.b16 %v253
    %v274 = vunpack.c.l.b16 %v254
    %v275 = vunpack.c.l.b16 %v255
    %v276 = vpack.c.b16 %v269, %v268
    %v277 = vpack.c.b16 %v271, %v270
    %v278 = vpack.c.b16 %v273, %v272
    %v279 = vpack.c.b16 %v275, %v274
    %vm284 = vcmask 523264
    %v286 = vsel %vm284, %v247, 0
    %288 = vmatpush.bf16.msra.mxu0 0
    %289 = vmatpush.bf16.msra.mxu0 0
    %290 = vmatpush.bf16.msra.mxu0 0
    %291 = vmatpush.bf16.msra.mxu0 0
    %292 = vmatpush.bf16.msra.mxu0 %v279
    %293 = vmatpush.bf16.msra.mxu0 %v278
    %294 = vmatpush.bf16.msra.mxu0 %v277
    %295 = vmatpush.bf16.msra.mxu0 %v276
    %296 = vmatmul.bf16.gmra.mxu0 %v286
    %v297 = vpop.f32.mrf.mxu0
    %v298 = vadd.f32 %v258, %v297
    %v299 = vpop.f32.mrf.mxu0
    %v300 = vadd.f32 %v258, %v299
    %301 = vdwg.mxu0
    %v302 = vmul.f32 %v298, 0.5
    %v303 = vmul.f32 %v300, 0.5
    %v304 = vadd.f32 %v103, %v302
    %v305 = vadd.f32 %v104, %v303
    %v306 = vld [vmem:[#allocation7] sm:$0x1]
    %v307 = vld [vmem:[#allocation9] sm:$0x1]
    %v308 = vsel %vm107, %v304, 0.0
    %309 = vadd.xlane.f32.xlu0 %v308
    %v310 = vpop.xlane.xlu0 %309
    %v311 = vsel %vm107, %v305, 0.0
    %312 = vadd.xlane.f32.xlu0 %v311
    %v313 = vpop.xlane.xlu0 %312
    %v314 = vmul.f32 %v310, %v120
    %v315 = vmul.f32 %v313, %v120
    %v316 = vsub.f32 %v304, %v314
    %v317 = vsub.f32 %v305, %v315
    %v318 = vmul.f32 %v316, %v316
    %v319 = vmul.f32 %v317, %v317
    %v320 = vsel %vm107, %v318, 0.0
    %321 = vadd.xlane.f32.xlu0 %v320
    %v322 = vpop.xlane.xlu0 %321
    %v323 = vsel %vm107, %v319, 0.0
    %324 = vadd.xlane.f32.xlu0 %v323
    %v325 = vpop.xlane.xlu0 %324
    %v326 = vmul.f32 %v322, %v120
    %v327 = vmul.f32 %v325, %v120
    %v328 = vadd.f32 %v326, 1e-05
    %v329 = vadd.f32 %v327, 1e-05
    %v330 = vrsqrt.pop %v328
    %v331 = vmul.f32 %v330, %v328
    %v332 = vmul.f32 %v331, %v330
    %v333 = vmul.f32 0.5, %v332
    %v334 = vsub.f32 1.5, %v333
    %v335 = vmul.f32 %v330, %v334
    %vm336 = vweird.f32 %v328
    %vm337 = vweird.f32 %v330
    %vm338 = vmor %vm336, %vm337
    %v339 = vsel %vm338, %v330, %v335
    %v340 = vrsqrt.pop %v329
    %v341 = vmul.f32 %v340, %v329
    %v342 = vmul.f32 %v341, %v340
    %v343 = vmul.f32 0.5, %v342
    %v344 = vsub.f32 1.5, %v343
    %v345 = vmul.f32 %v340, %v344
    %vm346 = vweird.f32 %v329
    %vm347 = vweird.f32 %v340
    %vm348 = vmor %vm346, %vm347
    %v349 = vsel %vm348, %v340, %v345
    %v350 = vmul.f32 %v316, %v339
    %v351 = vmul.f32 %v317, %v349
    %v353 = vperm.slane %v306, 0
    %v355 = vmul.f32 %v350, %v353
    %v356 = vmul.f32 %v351, %v353
    %v358 = vperm.slane %v307, 0
    %v360 = vadd.f32 %v355, %v358
    %v361 = vadd.f32 %v356, %v358
    %v362 = vpack.c.bf16 %v360, %v360
    %v363 = vpack.c.bf16 %v361, %v361
    %vm364 = vcmask 257024
    %365 = vst.msk [vmem:[%s9] sm:$0xf] %vm364, %v362
    %366 = vst.msk [vmem:[%s9 + $0x4] sm:$0xf] %vm364, %v363
    // Predicated region
    $region58: #{predictor_forward.12} parent=1 // pred_check
      _
    $region59: #{predictor_forward.12} parent=1 // pred_check_branch
      %368 = sbr.rel (0) target = $region61
    $region60: #{predictor_forward.12} parent=1 // pred_region
      _
    $region61: #{predictor_forward.12} parent=1 // pred_fallthru
      _
    // Predicated region
    $region62: #{predictor_forward.12} parent=1 // pred_check
      _
    $region63: #{predictor_forward.12} parent=1 // pred_check_branch
      %370 = sbr.rel (0) target = $region65
    $region64: #{predictor_forward.12} parent=1 // pred_region
      _
    $region65: #{predictor_forward.12} parent=1 // pred_fallthru
      _
    %371 = vsyncpa [#allocation3], 1
    %372 = vsyncpa [#allocation5], 1
    %373 = vsyncpa [#allocation8], 1

// kernel: predictor_forward.11
$region0: #{predictor_forward.11}
  #allocation0 [shape = 'u32[]', space=smem, size = 0x4, offset = 0x4, fixed_abs, tag = 'smem constant byte address 0x4 - core index']
  #allocation1 [shape = 'u32[72,128]{1,0:T(1,128)}', space=vmem, size = 0x9000, scoped, tag = 'internal scratch']
  %s0 = inlined_call_operand.vmem [shape: bf16[2,8,32], index: 0, kind: input, shape index: {}]
  %s1 = inlined_call_operand.vmem [shape: f32[1,32], index: 1, kind: input, shape index: {}]
  %s2 = inlined_call_operand.hbm [shape: f32[1,32], index: 2, kind: input, shape index: {}]
  %s3 = inlined_call_operand.vmem [shape: bf16[32,64], index: 3, kind: input, shape index: {}]
  %s4 = inlined_call_operand.hbm [shape: f32[1,64], index: 4, kind: input, shape index: {}]
  %s5 = inlined_call_operand.hbm [shape: f32[3,32], index: 5, kind: input, shape index: {}]
  %s6 = inlined_call_operand.hbm [shape: f32[1,32], index: 6, kind: input, shape index: {}]
  %s7 = inlined_call_operand.hbm [shape: f32[1,32], index: 7, kind: input, shape index: {}]
  %s8 = inlined_call_operand.hbm [shape: bf16[32,32], index: 8, kind: input, shape index: {}]
  %s9 = inlined_call_operand.hbm [shape: f32[1,32], index: 9, kind: input, shape index: {}]
  %s10 = inlined_call_operand.vmem [shape: bf16[2,8,32], index: 10, kind: output, shape index: {}]
  %s11 = sld [smem:[#allocation0]]
  $region101: #{predictor_forward.11} parent=0
    _
  %s13 = ssub.s32 1, %s11
  %s14 = scalar_select 0, %s13, %s11
  $region1: #{predictor_forward.11} parent=0
    #allocation2 [shape = 'u8[512]{0}', space=vmem, size = 0x400, scoped, tag = 'input window, operand 2, single buffered']
    #allocation3 [shape = 's32[2]{0}', space=sflag, size = 0x8, scoped, tag = 'scoped memory for predictor_forward.11']
    #allocation4 [shape = 'u8[512]{0}', space=vmem, size = 0x400, scoped, tag = 'input window, operand 4, single buffered']
    #allocation5 [shape = 's32[1]{0}', space=sflag, size = 0x4, scoped, tag = 'scoped memory for predictor_forward.11']
    #allocation6 [shape = 'u8[2048]{0}', space=vmem, size = 0x800, scoped, tag = 'input window, operand 5, single buffered']
    #allocation7 [shape = 'u8[512]{0}', space=vmem, size = 0x400, scoped, tag = 'input window, operand 6, single buffered']
    #allocation8 [shape = 's32[1]{0}', space=sflag, size = 0x4, scoped, tag = 'scoped memory for predictor_forward.11']
    #allocation9 [shape = 'u8[512]{0}', space=vmem, size = 0x400, scoped, tag = 'input window, operand 7, single buffered']
    #allocation10 [shape = 'u8[8192]{0}', space=vmem, size = 0x2000, scoped, tag = 'input window, operand 8, single buffered']
    #allocation11 [shape = 's32[1]{0}', space=sflag, size = 0x4, scoped, tag = 'scoped memory for predictor_forward.11']
    #allocation12 [shape = 'u8[512]{0}', space=vmem, size = 0x400, scoped, tag = 'input window, operand 9, single buffered']
    %15 = vsyncpa [#allocation3], 0
    %16 = vsyncpa [#allocation5], 0
    %17 = vsyncpa [#allocation8], 0
    %18 = vsyncpa [#allocation11], 0
    loop: start=0, step=1, limit=4
    $region2: #{predictor_forward.11} parent=1 // loop_pre_header
      _
    $region3: #{predictor_forward.11} parent=1 // loop_header
      %s20 = sphi 0, %s24
      %p21 = scmp.ge.s32.totalorder %s20, 4
      %s30 = sphi 0, %s32
      %s33 = sphi 0, %s30
      %s34 = sphi 0, %s33
      %s50 = sphi 0, %s34
      %s54 = sphi 0, %s54
      %s56 = sphi 0, %s54
      %s57 = sphi 0, %s56
      %s71 = sphi 0, %s57
      %s75 = sphi 0, %s75
      %s77 = sphi 0, %s75
      %s78 = sphi 0, %s77
      %s92 = sphi 0, %s78
      %s96 = sphi 0, %s96
      %s98 = sphi 0, %s96
      %s99 = sphi 0, %s98
      %s113 = sphi 0, %s99
      %s117 = sphi 0, %s117
      %s119 = sphi 0, %s117
      %s120 = sphi 0, %s119
      %s134 = sphi 0, %s120
      %s138 = sphi 0, %s138
      %s140 = sphi 0, %s138
      %s141 = sphi 0, %s140
      %s155 = sphi 0, %s141
      %s159 = sphi 0, %s159
      %s161 = sphi 0, %s159
      %s162 = sphi 0, %s161
      %s176 = sphi 0, %s162
      %s180 = sphi 0, %s180
      %s182 = sphi 0, %s180
      %s183 = sphi 0, %s182
      %s197 = sphi 0, %s183
      %s201 = sphi 0, %s201
      %s203 = sphi 0, %s201
      %s204 = sphi 0, %s203
      %s218 = sphi 0, %s204
      %s222 = sphi 0, %s222
      %s224 = sphi 0, %s222
      %s225 = sphi 0, %s224
      %s239 = sphi 0, %s225
      %s245 = sphi 0, %s247
      %s248 = sphi 0, %s245
      %s249 = sphi 0, %s248
      %s265 = sphi 0, %s249
    $region4: #{predictor_forward.11} parent=1 // loop_header_branch
      %23 = sbr.rel (%p21) target = $region8
    $region5: #{predictor_forward.11} parent=1 // loop_body
      %s25 = ssub.s32 %s20, 1
      %s26 = ssub.s32 %s20, 2
      %s27 = sadd.s32 %s20, 1
      %s28 = ssub.s32 %s20, %s27
      %p29 = scmp.eq.s32.totalorder %s28, 0
      %s31 = sadd.s32 %s30, 1
      %s32 = scalar_select %p29, %s30, %s31
      %p35 = pneg %p29
      %p36 = scmp.eq.s32.totalorder %s20, 1
      %p37 = por %p35, %p36
      %p38 = scmp.ne.s32.totalorder %s30, %s33
      %p39 = scmp.eq.s32.totalorder %s20, 0
      %p40 = por %p38, %p39
      %p41 = scmp.ne.s32.totalorder %s30, %s33
      %p42 = scmp.eq.s32.totalorder %s25, 1
      %p43 = por %p41, %p42
      %p44 = scmp.ne.s32.totalorder %s33, %s34
      %p45 = scmp.eq.s32.totalorder %s25, 0
      %p46 = por %p44, %p45
      %p47 = scmp.ne.s32.totalorder %s33, %s34
      %p48 = scmp.eq.s32.totalorder %s26, 1
      %p49 = por %p47, %p48
      %p51 = scmp.ne.s32.totalorder %s34, %s50
      %p52 = scmp.eq.s32.totalorder %s26, 0
      %p53 = por %p51, %p52
      %s55 = sadd.s32 %s54, 1
      %p58 = scmp.eq.s32.totalorder %s20, 1
      %p59 = scmp.ne.s32.totalorder %s54, %s56
      %p60 = scmp.eq.s32.totalorder %s20, 0
      %p61 = por %p59, %p60
      %p62 = scmp.ne.s32.totalorder %s54, %s56
      %p63 = scmp.eq.s32.totalorder %s25, 1
      %p64 = por %p62, %p63
      %p65 = scmp.ne.s32.totalorder %s56, %s57
      %p66 = scmp.eq.s32.totalorder %s25, 0
      %p67 = por %p65, %p66
      %p68 = scmp.ne.s32.totalorder %s56, %s57
      %p69 = scmp.eq.s32.totalorder %s26, 1
      %p70 = por %p68, %p69
      %p72 = scmp.ne.s32.totalorder %s57, %s71
      %p73 = scmp.eq.s32.totalorder %s26, 0
      %p74 = por %p72, %p73
      %s76 = sadd.s32 %s75, 1
      %p79 = scmp.eq.s32.totalorder %s20, 1
      %p80 = scmp.ne.s32.totalorder %s75, %s77
      %p81 = scmp.eq.s32.totalorder %s20, 0
      %p82 = por %p80, %p81
      %p83 = scmp.ne.s32.totalorder %s75, %s77
      %p84 = scmp.eq.s32.totalorder %s25, 1
      %p85 = por %p83, %p84
      %p86 = scmp.ne.s32.totalorder %s77, %s78
      %p87 = scmp.eq.s32.totalorder %s25, 0
      %p88 = por %p86, %p87
      %p89 = scmp.ne.s32.totalorder %s77, %s78
      %p90 = scmp.eq.s32.totalorder %s26, 1
      %p91 = por %p89, %p90
      %p93 = scmp.ne.s32.totalorder %s78, %s92
      %p94 = scmp.eq.s32.totalorder %s26, 0
      %p95 = por %p93, %p94
      %s97 = sadd.s32 %s96, 1
      %p100 = scmp.eq.s32.totalorder %s20, 1
      %p101 = scmp.ne.s32.totalorder %s96, %s98
      %p102 = scmp.eq.s32.totalorder %s20, 0
      %p103 = por %p101, %p102
      %p104 = scmp.ne.s32.totalorder %s96, %s98
      %p105 = scmp.eq.s32.totalorder %s25, 1
      %p106 = por %p104, %p105
      %p107 = scmp.ne.s32.totalorder %s98, %s99
      %p108 = scmp.eq.s32.totalorder %s25, 0
      %p109 = por %p107, %p108
      %p110 = scmp.ne.s32.totalorder %s98, %s99
      %p111 = scmp.eq.s32.totalorder %s26, 1
      %p112 = por %p110, %p111
      %p114 = scmp.ne.s32.totalorder %s99, %s113
      %p115 = scmp.eq.s32.totalorder %s26, 0
      %p116 = por %p114, %p115
      %s118 = sadd.s32 %s117, 1
      %p121 = scmp.eq.s32.totalorder %s20, 1
      %p122 = scmp.ne.s32.totalorder %s117, %s119
      %p123 = scmp.eq.s32.totalorder %s20, 0
      %p124 = por %p122, %p123
      %p125 = scmp.ne.s32.totalorder %s117, %s119
      %p126 = scmp.eq.s32.totalorder %s25, 1
      %p127 = por %p125, %p126
      %p128 = scmp.ne.s32.totalorder %s119, %s120
      %p129 = scmp.eq.s32.totalorder %s25, 0
      %p130 = por %p128, %p129
      %p131 = scmp.ne.s32.totalorder %s119, %s120
      %p132 = scmp.eq.s32.totalorder %s26, 1
      %p133 = por %p131, %p132
      %p135 = scmp.ne.s32.totalorder %s120, %s134
      %p136 = scmp.eq.s32.totalorder %s26, 0
      %p137 = por %p135, %p136
      %s139 = sadd.s32 %s138, 1
      %p142 = scmp.eq.s32.totalorder %s20, 1
      %p143 = scmp.ne.s32.totalorder %s138, %s140
      %p144 = scmp.eq.s32.totalorder %s20, 0
      %p145 = por %p143, %p144
      %p146 = scmp.ne.s32.totalorder %s138, %s140
      %p147 = scmp.eq.s32.totalorder %s25, 1
      %p148 = por %p146, %p147
      %p149 = scmp.ne.s32.totalorder %s140, %s141
      %p150 = scmp.eq.s32.totalorder %s25, 0
      %p151 = por %p149, %p150
      %p152 = scmp.ne.s32.totalorder %s140, %s141
      %p153 = scmp.eq.s32.totalorder %s26, 1
      %p154 = por %p152, %p153
      %p156 = scmp.ne.s32.totalorder %s141, %s155
      %p157 = scmp.eq.s32.totalorder %s26, 0
      %p158 = por %p156, %p157
      %s160 = sadd.s32 %s159, 1
      %p163 = scmp.eq.s32.totalorder %s20, 1
      %p164 = scmp.ne.s32.totalorder %s159, %s161
      %p165 = scmp.eq.s32.totalorder %s20, 0
      %p166 = por %p164, %p165
      %p167 = scmp.ne.s32.totalorder %s159, %s161
      %p168 = scmp.eq.s32.totalorder %s25, 1
      %p169 = por %p167, %p168
      %p170 = scmp.ne.s32.totalorder %s161, %s162
      %p171 = scmp.eq.s32.totalorder %s25, 0
      %p172 = por %p170, %p171
      %p173 = scmp.ne.s32.totalorder %s161, %s162
      %p174 = scmp.eq.s32.totalorder %s26, 1
      %p175 = por %p173, %p174
      %p177 = scmp.ne.s32.totalorder %s162, %s176
      %p178 = scmp.eq.s32.totalorder %s26, 0
      %p179 = por %p177, %p178
      %s181 = sadd.s32 %s180, 1
      %p184 = scmp.eq.s32.totalorder %s20, 1
      %p185 = scmp.ne.s32.totalorder %s180, %s182
      %p186 = scmp.eq.s32.totalorder %s20, 0
      %p187 = por %p185, %p186
      %p188 = scmp.ne.s32.totalorder %s180, %s182
      %p189 = scmp.eq.s32.totalorder %s25, 1
      %p190 = por %p188, %p189
      %p191 = scmp.ne.s32.totalorder %s182, %s183
      %p192 = scmp.eq.s32.totalorder %s25, 0
      %p193 = por %p191, %p192
      %p194 = scmp.ne.s32.totalorder %s182, %s183
      %p195 = scmp.eq.s32.totalorder %s26, 1
      %p196 = por %p194, %p195
      %p198 = scmp.ne.s32.totalorder %s183, %s197
      %p199 = scmp.eq.s32.totalorder %s26, 0
      %p200 = por %p198, %p199
      %s202 = sadd.s32 %s201, 1
      %p205 = scmp.eq.s32.totalorder %s20, 1
      %p206 = scmp.ne.s32.totalorder %s201, %s203
      %p207 = scmp.eq.s32.totalorder %s20, 0
      %p208 = por %p206, %p207
      %p209 = scmp.ne.s32.totalorder %s201, %s203
      %p210 = scmp.eq.s32.totalorder %s25, 1
      %p211 = por %p209, %p210
      %p212 = scmp.ne.s32.totalorder %s203, %s204
      %p213 = scmp.eq.s32.totalorder %s25, 0
      %p214 = por %p212, %p213
      %p215 = scmp.ne.s32.totalorder %s203, %s204
      %p216 = scmp.eq.s32.totalorder %s26, 1
      %p217 = por %p215, %p216
      %p219 = scmp.ne.s32.totalorder %s204, %s218
      %p220 = scmp.eq.s32.totalorder %s26, 0
      %p221 = por %p219, %p220
      %s223 = sadd.s32 %s222, 1
      %p226 = scmp.eq.s32.totalorder %s20, 1
      %p227 = scmp.ne.s32.totalorder %s222, %s224
      %p228 = scmp.eq.s32.totalorder %s20, 0
      %p229 = por %p227, %p228
      %p230 = scmp.ne.s32.totalorder %s222, %s224
      %p231 = scmp.eq.s32.totalorder %s25, 1
      %p232 = por %p230, %p231
      %p233 = scmp.ne.s32.totalorder %s224, %s225
      %p234 = scmp.eq.s32.totalorder %s25, 0
      %p235 = por %p233, %p234
      %p236 = scmp.ne.s32.totalorder %s224, %s225
      %p237 = scmp.eq.s32.totalorder %s26, 1
      %p238 = por %p236, %p237
      %p240 = scmp.ne.s32.totalorder %s225, %s239
      %p241 = scmp.eq.s32.totalorder %s26, 0
      %p242 = por %p240, %p241
      %s243 = ssub.s32 %s20, %s27
      %p244 = scmp.eq.s32.totalorder %s243, 0
      %s246 = sadd.s32 %s245, 1
      %s247 = scalar_select %p244, %s245, %s246
      %p250 = pneg %p244
      %p251 = scmp.eq.s32.totalorder %s20, 1
      %p252 = por %p250, %p251
      %p253 = scmp.ne.s32.totalorder %s245, %s248
      %p254 = scmp.eq.s32.totalorder %s20, 0
      %p255 = por %p253, %p254
      %p256 = scmp.ne.s32.totalorder %s245, %s248
      %p257 = scmp.eq.s32.totalorder %s25, 1
      %p258 = por %p256, %p257
      %p259 = scmp.ne.s32.totalorder %s248, %s249
      %p260 = scmp.eq.s32.totalorder %s25, 0
      %p261 = por %p259, %p260
      %p262 = scmp.ne.s32.totalorder %s248, %s249
      %p263 = scmp.eq.s32.totalorder %s26, 1
      %p264 = por %p262, %p263
      %p266 = scmp.ne.s32.totalorder %s249, %s265
      %p267 = scmp.eq.s32.totalorder %s26, 0
      %p268 = por %p266, %p267
      %p269 = scmp.le.s32.totalorder 1, %s20
      %p270 = scmp.lt.s32.totalorder %s20, 3
      %p271 = pnand %p269, %p270
      %p272 = pneg %p271
      // Predicated region
      $region9: #{predictor_forward.11} parent=5 // pred_check
        _
      $region10: #{predictor_forward.11} parent=5 // pred_check_branch
        %274 = sbr.rel (%p271) target = $region12
      $region11: #{predictor_forward.11} parent=5 // pred_region
        %s275 = ssub.s32 %s20, 1
        // Predicated region
        $region13: #{predictor_forward.11} parent=11 // pred_check
          %p276 = pneg %p67
        $region14: #{predictor_forward.11} parent=11 // pred_check_branch
          %278 = sbr.rel (%p276) target = $region16
        $region15: #{predictor_forward.11} parent=11 // pred_region
          _
        $region16: #{predictor_forward.11} parent=11 // pred_fallthru
          _
        // Predicated region
        $region17: #{predictor_forward.11} parent=11 // pred_check
          %p279 = pneg %p88
        $region18: #{predictor_forward.11} parent=11 // pred_check_branch
          %281 = sbr.rel (%p279) target = $region20
        $region19: #{predictor_forward.11} parent=11 // pred_region
          %283 = vsyncadd [#allocation3], 0
          %s285 = sshll.u32 %s2, 4
          %s286 = int_to_ptr.hbm [resolvable:$true] %s285
          %s287 = sshll.u32 [#allocation2], 4
          %s288 = int_to_ptr.vmem [resolvable:$true] %s287
          %290 = dma.hbm_to_vmem [thread:$0]  %s286, 16, %s288, [#allocation3]
        $region20: #{predictor_forward.11} parent=11 // pred_fallthru
          _
        // Predicated region
        $region21: #{predictor_forward.11} parent=11 // pred_check
          %p291 = pneg %p109
        $region22: #{predictor_forward.11} parent=11 // pred_check_branch
          %293 = sbr.rel (%p291) target = $region24
        $region23: #{predictor_forward.11} parent=11 // pred_region
          _
        $region24: #{predictor_forward.11} parent=11 // pred_fallthru
          _
        // Predicated region
        $region25: #{predictor_forward.11} parent=11 // pred_check
          %p294 = pneg %p130
        $region26: #{predictor_forward.11} parent=11 // pred_check_branch
          %296 = sbr.rel (%p294) target = $region28
        $region27: #{predictor_forward.11} parent=11 // pred_region
          %298 = vsyncadd [#allocation5], 0
          %s300 = sshll.u32 %s4, 4
          %s301 = int_to_ptr.hbm [resolvable:$true] %s300
          %s302 = sshll.u32 [#allocation4], 4
          %s303 = int_to_ptr.vmem [resolvable:$true] %s302
          %305 = dma.hbm_to_vmem [thread:$0]  %s301, 16, %s303, [#allocation5]
        $region28: #{predictor_forward.11} parent=11 // pred_fallthru
          _
        // Predicated region
        $region29: #{predictor_forward.11} parent=11 // pred_check
          %p306 = pneg %p151
        $region30: #{predictor_forward.11} parent=11 // pred_check_branch
          %308 = sbr.rel (%p306) target = $region32
        $region31: #{predictor_forward.11} parent=11 // pred_region
          %310 = vsyncadd [#allocation5], 0
          %s312 = sshll.u32 %s5, 4
          %s313 = int_to_ptr.hbm [resolvable:$true] %s312
          %s314 = sshll.u32 [#allocation6], 4
          %s315 = int_to_ptr.vmem [resolvable:$true] %s314
          %317 = dma.hbm_to_vmem [thread:$0]  %s313, 64, %s315, [#allocation5]
        $region32: #{predictor_forward.11} parent=11 // pred_fallthru
          _
        // Predicated region
        $region33: #{predictor_forward.11} parent=11 // pred_check
          %p318 = pneg %p172
        $region34: #{predictor_forward.11} parent=11 // pred_check_branch
          %320 = sbr.rel (%p318) target = $region36
        $region35: #{predictor_forward.11} parent=11 // pred_region
          %322 = vsyncadd [#allocation8], 0
          %s324 = sshll.u32 %s6, 4
          %s325 = int_to_ptr.hbm [resolvable:$true] %s324
          %s326 = sshll.u32 [#allocation7], 4
          %s327 = int_to_ptr.vmem [resolvable:$true] %s326
          %329 = dma.hbm_to_vmem [thread:$0]  %s325, 16, %s327, [#allocation8]
        $region36: #{predictor_forward.11} parent=11 // pred_fallthru
          _
        // Predicated region
        $region37: #{predictor_forward.11} parent=11 // pred_check
          %p330 = pneg %p193
        $region38: #{predictor_forward.11} parent=11 // pred_check_branch
          %332 = sbr.rel (%p330) target = $region40
        $region39: #{predictor_forward.11} parent=11 // pred_region
          %334 = vsyncadd [#allocation8], 0
          %s336 = sshll.u32 %s7, 4
          %s337 = int_to_ptr.hbm [resolvable:$true] %s336
          %s338 = sshll.u32 [#allocation9], 4
          %s339 = int_to_ptr.vmem [resolvable:$true] %s338
          %341 = dma.hbm_to_vmem [thread:$0]  %s337, 16, %s339, [#allocation8]
        $region40: #{predictor_forward.11} parent=11 // pred_fallthru
          _
        // Predicated region
        $region41: #{predictor_forward.11} parent=11 // pred_check
          %p342 = pneg %p214
        $region42: #{predictor_forward.11} parent=11 // pred_check_branch
          %344 = sbr.rel (%p342) target = $region44
        $region43: #{predictor_forward.11} parent=11 // pred_region
          %346 = vsyncadd [#allocation11], 0
          %s347 = sshll.u32 %s8, 4
          %s348 = int_to_ptr.hbm [resolvable:$true] %s347
          %s349 = sshll.u32 [#allocation10], 4
          %s350 = int_to_ptr.vmem [resolvable:$true] %s349
          %355 = dma.hbm_to_vmem [thread:$0]  %s348, 256, %s350, [#allocation11], 64, 64, 4
        $region44: #{predictor_forward.11} parent=11 // pred_fallthru
          _
        // Predicated region
        $region45: #{predictor_forward.11} parent=11 // pred_check
          %p356 = pneg %p235
        $region46: #{predictor_forward.11} parent=11 // pred_check_branch
          %358 = sbr.rel (%p356) target = $region48
        $region47: #{predictor_forward.11} parent=11 // pred_region
          %360 = vsyncadd [#allocation11], 0
          %s362 = sshll.u32 %s9, 4
          %s363 = int_to_ptr.hbm [resolvable:$true] %s362
          %s364 = sshll.u32 [#allocation12], 4
          %s365 = int_to_ptr.vmem [resolvable:$true] %s364
          %367 = dma.hbm_to_vmem [thread:$0]  %s363, 16, %s365, [#allocation11]
        $region48: #{predictor_forward.11} parent=11 // pred_fallthru
          _
      $region12: #{predictor_forward.11} parent=5 // pred_fallthru
        _
      %p368 = scmp.lt.s32.totalorder %s20, 2
      // Predicated region
      $region49: #{predictor_forward.11} parent=5 // pred_check
        %p369 = pneg %p368
      $region50: #{predictor_forward.11} parent=5 // pred_check_branch
        %371 = sbr.rel (%p369) target = $region52
      $region51: #{predictor_forward.11} parent=5 // pred_region
        // Predicated region
        $region53: #{predictor_forward.11} parent=51 // pred_check
          %p372 = pneg %p40
        $region54: #{predictor_forward.11} parent=51 // pred_check_branch
          %374 = sbr.rel (%p372) target = $region56
        $region55: #{predictor_forward.11} parent=51 // pred_region
          %p375 = scmp.lt.s32.totalorder %s20, 1
          %s376 = scalar_select %p375, %s20, 1
          %s377 = smul.addr %s376, 4
          %s378 = scalar_lea.vmem %s0, %s377
        $region56: #{predictor_forward.11} parent=51 // pred_fallthru
          _
      $region52: #{predictor_forward.11} parent=5 // pred_fallthru
        _
      %p379 = scmp.le.s32.totalorder 1, %s20
      %p380 = scmp.lt.s32.totalorder %s20, 3
      %p381 = pnand %p379, %p380
      %p382 = pneg %p381
      // Predicated region
      $region57: #{predictor_forward.11} parent=5 // pred_check
        _
      $region58: #{predictor_forward.11} parent=5 // pred_check_branch
        %384 = sbr.rel (%p381) target = $region60
      $region59: #{predictor_forward.11} parent=5 // pred_region
        %s385 = ssub.s32 %s20, 1
        // Predicated region
        $region61: #{predictor_forward.11} parent=59 // pred_check
          %p386 = pneg %p88
        $region62: #{predictor_forward.11} parent=59 // pred_check_branch
          %388 = sbr.rel (%p386) target = $region64
        $region63: #{predictor_forward.11} parent=59 // pred_region
          %390 = dma.done [#allocation3], 16
        $region64: #{predictor_forward.11} parent=59 // pred_fallthru
          _
        // Predicated region
        $region65: #{predictor_forward.11} parent=59 // pred_check
          %p391 = pneg %p130
        $region66: #{predictor_forward.11} parent=59 // pred_check_branch
          %393 = sbr.rel (%p391) target = $region68
        $region67: #{predictor_forward.11} parent=59 // pred_region
          %395 = dma.done [#allocation5], 16
        $region68: #{predictor_forward.11} parent=59 // pred_fallthru
          _
        // Predicated region
        $region69: #{predictor_forward.11} parent=59 // pred_check
          %p396 = pneg %p151
        $region70: #{predictor_forward.11} parent=59 // pred_check_branch
          %398 = sbr.rel (%p396) target = $region72
        $region71: #{predictor_forward.11} parent=59 // pred_region
          %400 = dma.done [#allocation5], 64
        $region72: #{predictor_forward.11} parent=59 // pred_fallthru
          _
        // Predicated region
        $region73: #{predictor_forward.11} parent=59 // pred_check
          %p401 = pneg %p172
        $region74: #{predictor_forward.11} parent=59 // pred_check_branch
          %403 = sbr.rel (%p401) target = $region76
        $region75: #{predictor_forward.11} parent=59 // pred_region
          %405 = dma.done [#allocation8], 16
        $region76: #{predictor_forward.11} parent=59 // pred_fallthru
          _
        // Predicated region
        $region77: #{predictor_forward.11} parent=59 // pred_check
          %p406 = pneg %p193
        $region78: #{predictor_forward.11} parent=59 // pred_check_branch
          %408 = sbr.rel (%p406) target = $region80
        $region79: #{predictor_forward.11} parent=59 // pred_region
          %410 = dma.done [#allocation8], 16
        $region80: #{predictor_forward.11} parent=59 // pred_fallthru
          _
        // Predicated region
        $region81: #{predictor_forward.11} parent=59 // pred_check
          %p411 = pneg %p214
        $region82: #{predictor_forward.11} parent=59 // pred_check_branch
          %413 = sbr.rel (%p411) target = $region84
        $region83: #{predictor_forward.11} parent=59 // pred_region
          %415 = dma.done [#allocation11], 256
        $region84: #{predictor_forward.11} parent=59 // pred_fallthru
          _
        // Predicated region
        $region85: #{predictor_forward.11} parent=59 // pred_check
          %p416 = pneg %p235
        $region86: #{predictor_forward.11} parent=59 // pred_check_branch
          %418 = sbr.rel (%p416) target = $region88
        $region87: #{predictor_forward.11} parent=59 // pred_region
          %420 = dma.done [#allocation11], 16
        $region88: #{predictor_forward.11} parent=59 // pred_fallthru
          _
        %p421 = scmp.lt.s32.totalorder %s25, 1
        %s422 = scalar_select %p421, %s25, 1
        %s423 = smul.addr %s422, 4
        %s424 = scalar_lea.vmem %s0, %s423
        %p425 = pneg %p46
        %p426 = pneg %p43
        %p427 = pneg %p67
        %p428 = pneg %p64
        %p429 = pneg %p88
        %p430 = pneg %p85
        %p431 = pneg %p109
        %p432 = pneg %p106
        %p433 = pneg %p130
        %p434 = pneg %p127
        %p435 = pneg %p151
        %p436 = pneg %p148
        %p437 = pneg %p172
        %p438 = pneg %p169
        %p439 = pneg %p193
        %p440 = pneg %p190
        %p441 = pneg %p214
        %p442 = pneg %p211
        %p443 = pneg %p235
        %p444 = pneg %p232
        %p445 = pneg %p261
        %p446 = pneg %p258
        %p447 = scmp.lt.s32.totalorder %s25, 1
        %s448 = scalar_select %p447, %s25, 1
        %s449 = smul.addr %s448, 4
        %s450 = scalar_lea.vmem %s10, %s449
        %p451 = scmp.lt.s32.totalorder %s25, 1
        %s452 = scalar_select %p451, %s25, 1
        %s453 = smul.addr %s452, 4
        %s454 = scalar_lea.vmem %s0, %s453
        %p455 = scmp.lt.s32.totalorder %s25, 1
        %s456 = scalar_select %p455, %s25, 1
        %s457 = smul.addr %s456, 4
        %s458 = scalar_lea.vmem %s10, %s457
        %v460 = vld [vmem:[%s454] sm:$0xf]
        %v461 = vunpack.c.l.bf16 %v460
        %v462 = vld [vmem:[%s1] sm:$0x1]
        %v463 = vld [vmem:[#allocation2] sm:$0x1]
        %vm464 = vcmask 261120
        %v465 = vsel %vm464, %v461, 0.0
        %466 = vadd.xlane.f32.xlu0 %v465
        %v467 = vpop.xlane.xlu0 %466
        %v468 = vrcp.pop 32.0
        %v469 = vmul.f32 32.0, %v468
        %v470 = vsub.f32 1.0, %v469
        %v471 = vmul.f32 %v468, %v470
        %v472 = vadd.f32 %v468, %v471
        %vm473 = vweird.f32 %v468
        %v474 = vsel %vm473, %v468, %v472
        %v475 = vmul.f32 %v467, %v474
        %v476 = vsub.f32 %v461, %v475
        %v477 = vmul.f32 %v476, %v476
        %v478 = vsel %vm464, %v477, 0.0
        %479 = vadd.xlane.f32.xlu0 %v478
        %v480 = vpop.xlane.xlu0 %479
        %v481 = vmul.f32 %v480, %v474
        %v482 = vadd.f32 %v481, 1e-05
        %v483 = vrsqrt.pop %v482
        %v484 = vmul.f32 %v483, %v482
        %v485 = vmul.f32 %v484, %v483
        %v486 = vmul.f32 0.5, %v485
        %v487 = vsub.f32 1.5, %v486
        %v488 = vmul.f32 %v483, %v487
        %vm489 = vweird.f32 %v482
        %vm490 = vweird.f32 %v483
        %vm491 = vmor %vm489, %vm490
        %v492 = vsel %vm491, %v483, %v488
        %v493 = vmul.f32 %v476, %v492
        %v495 = vperm.slane %v462, 0
        %v497 = vmul.f32 %v493, %v495
        %v499 = vperm.slane %v463, 0
        %v501 = vadd.f32 %v497, %v499
        %v502 = vpack.c.bf16 %v501, %v501
        %v503 = vld [vmem:[%s3] sm:$0xf]
        %v504 = vld [vmem:[%s3 + $0x4] sm:$0xf]
        %v505 = vld [vmem:[%s3 + $0x8] sm:$0xf]
        %v506 = vld [vmem:[%s3 + $0xc] sm:$0xf]
        %v507 = vld [vmem:[#allocation4] sm:$0x1]
        %v509 = vperm.slane %v507, 0
        %v515 = vunpack.c.l.b16 %v503
        %v516 = vunpack.c.l.b16 %v504
        %v517 = vunpack.c.l.b16 %v505
        %v518 = vunpack.c.l.b16 %v506
        %v519 = vpack.c.b16 %v516, %v515
        %v520 = vpack.c.b16 %v518, %v517
        %v524 = vsel %vm464, %v502, 0
        %526 = vmatpush.bf16.msra.mxu0 0
        %527 = vmatpush.bf16.msra.mxu0 0
        %528 = vmatpush.bf16.msra.mxu0 0
        %529 = vmatpush.bf16.msra.mxu0 0
        %530 = vmatpush.bf16.msra.mxu0 0
        %531 = vmatpush.bf16.msra.mxu0 0
        %532 = vmatpush.bf16.msra.mxu0 %v520
        %533 = vmatpush.bf16.msra.mxu0 %v519
        %534 = vmatmul.bf16.gmra.mxu0 %v524
        %v535 = vpop.f32.mrf.mxu0
        %v536 = vadd.f32 %v509, %v535
        %v537 = vpop.f32.mrf.mxu0
        %538 = vdwg.mxu0
        %v539 = vxor.u32 %v536, 2147483648
        %v540 = vmul.f32 %v539, 1.442695
        %v541 = vpow.pop %v540
        %v542 = vadd.f32 %v541, 1.0
        %v543 = vrcp.pop %v542
        %v544 = vmul.f32 %v542, %v543
        %v545 = vsub.f32 1.0, %v544
        %v546 = vmul.f32 %v543, %v545
        %v547 = vadd.f32 %v543, %v546
        %vm548 = vweird.f32 %v542
        %vm549 = vweird.f32 %v543
        %vm550 = vmor %vm548, %vm549
        %v551 = vsel %vm550, %v543, %v547
        %v552 = vand.u32 2147483647, %v542
        %vm553 = vcmp.eq.f32.partialorder %v552, 8.507059e+37
        %v554 = vand.u32 %v542, 2147483648
        %v555 = vor.u32 1.1754944e-38, %v554
        %v556 = vsel %vm553, %v555, %v551
        %v557 = vmul.f32 1.0, %v556
        %559 = vrot.lane.b32.xlu0 %v557, 96
        %v560 = vpop.permute.xlu0 %559
        %v562 = vmul.f32 %v536, %v560
        %v563 = vlaneseq
        %v564 = vshrl.u32 %v563, 7
        %v565 = vrot.slane %v562, 7
        %v566 = vadd.s32 %v564, 4294967295
        %vm567 = vcmp.ge.s32.totalorder %v566, 0
        %vm568 = vcmp.lt.s32.totalorder %v566, 8
        %vm569 = vmand %vm567, %vm568
        %v570 = vsel %vm569, 1, 0
        %v571 = vcvt.s32.f32 %v570
        %v572 = vmul.f32 %v565, %v571
        %v573 = vld [vmem:[#allocation6] sm:$0x1]
        %v574 = vperm.slane %v573, 0
        %v575 = vmul.f32 %v572, %v574
        %v576 = vadd.f32 %v575, 0.0
        %vm577 = vcmp.ge.s32.totalorder %v564, 0
        %vm578 = vcmp.lt.s32.totalorder %v564, 8
        %vm579 = vmand %vm577, %vm578
        %v580 = vsel %vm579, 1, 0
        %v581 = vcvt.s32.f32 %v580
        %v582 = vmul.f32 %v562, %v581
        %v583 = vld [vmem:[#allocation6 + $0x1] sm:$0x1]
        %v584 = vperm.slane %v583, 0
        %v585 = vmul.f32 %v582, %v584
        %v586 = vadd.f32 %v576, %v585
        %v587 = vrot.slane %v562, 1
        %v588 = vadd.s32 %v564, 1
        %vm589 = vcmp.ge.s32.totalorder %v588, 0
        %vm590 = vcmp.lt.s32.totalorder %v588, 8
        %vm591 = vmand %vm589, %vm590
        %v592 = vsel %vm591, 1, 0
        %v593 = vcvt.s32.f32 %v592
        %v594 = vmul.f32 %v587, %v593
        %v595 = vld [vmem:[#allocation6 + $0x2] sm:$0x1]
        %v596 = vperm.slane %v595, 0
        %v597 = vmul.f32 %v594, %v596
        %v598 = vadd.f32 %v586, %v597
        %v599 = vld [vmem:[#allocation7] sm:$0x1]
        %v601 = vperm.slane %v599, 0
        %v603 = vmul.f32 %v598, %v601
        %v604 = vld [vmem:[#allocation9] sm:$0x1]
        %v606 = vperm.slane %v604, 0
        %v608 = vadd.f32 %v603, %v606
        %v609 = vxor.u32 %v608, 2147483648
        %v610 = vmul.f32 %v609, 1.442695
        %v611 = vpow.pop %v610
        %v612 = vadd.f32 %v611, 1.0
        %v613 = vrcp.pop %v612
        %v614 = vmul.f32 %v612, %v613
        %v615 = vsub.f32 1.0, %v614
        %v616 = vmul.f32 %v613, %v615
        %v617 = vadd.f32 %v613, %v616
        %vm618 = vweird.f32 %v612
        %vm619 = vweird.f32 %v613
        %vm620 = vmor %vm618, %vm619
        %v621 = vsel %vm620, %v613, %v617
        %v622 = vand.u32 2147483647, %v612
        %vm623 = vcmp.eq.f32.partialorder %v622, 8.507059e+37
        %v624 = vand.u32 %v612, 2147483648
        %v625 = vor.u32 1.1754944e-38, %v624
        %v626 = vsel %vm623, %v625, %v621
        %v627 = vmul.f32 1.0, %v626
        %v628 = vmul.f32 %v608, %v627
        %v629 = vpack.c.bf16 %v628, %v628
        %v630 = vld [vmem:[#allocation10] sm:$0xf]
        %v631 = vld [vmem:[#allocation10 + $0x4] sm:$0xf]
        %v632 = vld [vmem:[#allocation10 + $0x8] sm:$0xf]
        %v633 = vld [vmem:[#allocation10 + $0xc] sm:$0xf]
        %v634 = vld [vmem:[#allocation12] sm:$0x1]
        %v636 = vperm.slane %v634, 0
        %v642 = vunpack.c.l.b16 %v630
        %v643 = vunpack.c.l.b16 %v631
        %v644 = vunpack.c.l.b16 %v632
        %v645 = vunpack.c.l.b16 %v633
        %v646 = vpack.c.b16 %v643, %v642
        %v647 = vpack.c.b16 %v645, %v644
        %v651 = vsel %vm464, %v629, 0
        %653 = vmatpush.bf16.msra.mxu0 0
        %654 = vmatpush.bf16.msra.mxu0 0
        %655 = vmatpush.bf16.msra.mxu0 0
        %656 = vmatpush.bf16.msra.mxu0 0
        %657 = vmatpush.bf16.msra.mxu0 0
        %658 = vmatpush.bf16.msra.mxu0 0
        %659 = vmatpush.bf16.msra.mxu0 %v647
        %660 = vmatpush.bf16.msra.mxu0 %v646
        %661 = vmatmul.bf16.gmra.mxu0 %v651
        %v662 = vpop.f32.mrf.mxu0
        %v663 = vadd.f32 %v636, %v662
        %v664 = vpop.f32.mrf.mxu0
        %665 = vdwg.mxu0
        %v666 = vadd.f32 %v461, %v663
        %v667 = vpack.c.bf16 %v666, %v666
        %vm668 = vcmask 257024
        %669 = vst.msk [vmem:[%s458] sm:$0xf] %vm668, %v667
        %p670 = scmp.lt.s32.totalorder %s25, 1
        %s671 = scalar_select %p670, %s25, 1
        %s672 = smul.addr %s671, 4
        %s673 = scalar_lea.vmem %s10, %s672
        // Predicated region
        $region89: #{predictor_forward.11} parent=59 // pred_check
          %p674 = pneg %p258
        $region90: #{predictor_forward.11} parent=59 // pred_check_branch
          %676 = sbr.rel (%p674) target = $region92
        $region91: #{predictor_forward.11} parent=59 // pred_region
          _
        $region92: #{predictor_forward.11} parent=59 // pred_fallthru
          _
      $region60: #{predictor_forward.11} parent=5 // pred_fallthru
        _
      %p677 = scmp.le.s32.totalorder 2, %s20
      // Predicated region
      $region93: #{predictor_forward.11} parent=5 // pred_check
        %p678 = pneg %p677
      $region94: #{predictor_forward.11} parent=5 // pred_check_branch
        %680 = sbr.rel (%p678) target = $region96
      $region95: #{predictor_forward.11} parent=5 // pred_region
        %s681 = ssub.s32 %s20, 2
        // Predicated region
        $region97: #{predictor_forward.11} parent=95 // pred_check
          %p682 = pneg %p264
        $region98: #{predictor_forward.11} parent=95 // pred_check_branch
          %684 = sbr.rel (%p682) target = $region100
        $region99: #{predictor_forward.11} parent=95 // pred_region
          %p685 = scmp.lt.s32.totalorder %s26, 1
          %s686 = scalar_select %p685, %s26, 1
          %s687 = smul.addr %s686, 4
          %s688 = scalar_lea.vmem %s10, %s687
        $region100: #{predictor_forward.11} parent=95 // pred_fallthru
          _
      $region96: #{predictor_forward.11} parent=5 // pred_fallthru
        _
    $region6: #{predictor_forward.11} parent=1 // loop_footer
      %s24 = sadd.s32 1, %s20
    $region7: #{predictor_forward.11} parent=1 // loop_footer_branch
      %19 = sbr.rel target = $region3
    $region8: #{predictor_forward.11} parent=1 // loop_exit
      _
    %689 = vsyncpa [#allocation3], 1
    %s690 = scalar_lea.sflag [#allocation3], 1
    %691 = vsyncpa %s690, 1
    %692 = vsyncpa [#allocation5], 1
    %693 = vsyncpa [#allocation8], 1
    %694 = vsyncpa [#allocation11], 1

// kernel: predictor_forward.10
$region0: #{predictor_forward.10}
  #allocation0 [shape = 'u32[]', space=smem, size = 0x4, offset = 0x4, fixed_abs, tag = 'smem constant byte address 0x4 - core index']
  #allocation1 [shape = 'u32[72,128]{1,0:T(1,128)}', space=vmem, size = 0x9000, scoped, tag = 'internal scratch']
  %s0 = inlined_call_operand.vmem [shape: bf16[2,8,32], index: 0, kind: input, shape index: {}]
  %s1 = inlined_call_operand.vmem [shape: f32[2,1,8], index: 1, kind: input, shape index: {}]
  %s2 = inlined_call_operand.hbm [shape: f32[1,32], index: 2, kind: input, shape index: {}]
  %s3 = inlined_call_operand.hbm [shape: f32[1,32], index: 3, kind: input, shape index: {}]
  %s4 = inlined_call_operand.vmem [shape: bf16[32,96], index: 4, kind: input, shape index: {}]
  %s5 = inlined_call_operand.hbm [shape: f32[1,96], index: 5, kind: input, shape index: {}]
  %s6 = inlined_call_operand.vmem [shape: bf16[32,32], index: 6, kind: input, shape index: {}]
  %s7 = inlined_call_operand.hbm [shape: f32[1,32], index: 7, kind: input, shape index: {}]
  %s8 = inlined_call_operand.vmem [shape: bf16[2,8,32], index: 8, kind: output, shape index: {}]
  %s9 = sld [smem:[#allocation0]]
  $region81: #{predictor_forward.10} parent=0
    _
  %s11 = ssub.s32 1, %s9
  %s12 = scalar_select 0, %s11, %s9
  $region1: #{predictor_forward.10} parent=0
    #allocation2 [shape = 'u8[512]{0}', space=vmem, size = 0x400, scoped, tag = 'input window, operand 2, single buffered']
    #allocation3 [shape = 's32[2]{0}', space=sflag, size = 0x8, scoped, tag = 'scoped memory for predictor_forward.10']
    #allocation4 [shape = 'u8[512]{0}', space=vmem, size = 0x400, scoped, tag = 'input window, operand 3, single buffered']
    #allocation5 [shape = 's32[1]{0}', space=sflag, size = 0x4, scoped, tag = 'scoped memory for predictor_forward.10']
    #allocation6 [shape = 'u8[512]{0}', space=vmem, size = 0x400, scoped, tag = 'input window, operand 5, single buffered']
    #allocation7 [shape = 'u8[512]{0}', space=vmem, size = 0x400, scoped, tag = 'input window, operand 7, single buffered']
    #allocation8 [shape = 's32[1]{0}', space=sflag, size = 0x4, scoped, tag = 'scoped memory for predictor_forward.10']
    %13 = vsyncpa [#allocation3], 0
    %14 = vsyncpa [#allocation5], 0
    %15 = vsyncpa [#allocation8], 0
    loop: start=0, step=1, limit=4
    $region2: #{predictor_forward.10} parent=1 // loop_pre_header
      _
    $region3: #{predictor_forward.10} parent=1 // loop_header
      %s17 = sphi 0, %s21
      %p18 = scmp.ge.s32.totalorder %s17, 4
      %s27 = sphi 0, %s29
      %s30 = sphi 0, %s27
      %s31 = sphi 0, %s30
      %s47 = sphi 0, %s31
      %s53 = sphi 0, %s55
      %s56 = sphi 0, %s53
      %s57 = sphi 0, %s56
      %s73 = sphi 0, %s57
      %s77 = sphi 0, %s77
      %s79 = sphi 0, %s77
      %s80 = sphi 0, %s79
      %s94 = sphi 0, %s80
      %s98 = sphi 0, %s98
      %s100 = sphi 0, %s98
      %s101 = sphi 0, %s100
      %s115 = sphi 0, %s101
      %s119 = sphi 0, %s119
      %s121 = sphi 0, %s119
      %s122 = sphi 0, %s121
      %s136 = sphi 0, %s122
      %s140 = sphi 0, %s140
      %s142 = sphi 0, %s140
      %s143 = sphi 0, %s142
      %s157 = sphi 0, %s143
      %s161 = sphi 0, %s161
      %s163 = sphi 0, %s161
      %s164 = sphi 0, %s163
      %s178 = sphi 0, %s164
      %s182 = sphi 0, %s182
      %s184 = sphi 0, %s182
      %s185 = sphi 0, %s184
      %s199 = sphi 0, %s185
      %s205 = sphi 0, %s207
      %s208 = sphi 0, %s205
      %s209 = sphi 0, %s208
      %s225 = sphi 0, %s209
    $region4: #{predictor_forward.10} parent=1 // loop_header_branch
      %20 = sbr.rel (%p18) target = $region8
    $region5: #{predictor_forward.10} parent=1 // loop_body
      %s22 = ssub.s32 %s17, 1
      %s23 = ssub.s32 %s17, 2
      %s24 = sadd.s32 %s17, 1
      %s25 = ssub.s32 %s17, %s24
      %p26 = scmp.eq.s32.totalorder %s25, 0
      %s28 = sadd.s32 %s27, 1
      %s29 = scalar_select %p26, %s27, %s28
      %p32 = pneg %p26
      %p33 = scmp.eq.s32.totalorder %s17, 1
      %p34 = por %p32, %p33
      %p35 = scmp.ne.s32.totalorder %s27, %s30
      %p36 = scmp.eq.s32.totalorder %s17, 0
      %p37 = por %p35, %p36
      %p38 = scmp.ne.s32.totalorder %s27, %s30
      %p39 = scmp.eq.s32.totalorder %s22, 1
      %p40 = por %p38, %p39
      %p41 = scmp.ne.s32.totalorder %s30, %s31
      %p42 = scmp.eq.s32.totalorder %s22, 0
      %p43 = por %p41, %p42
      %p44 = scmp.ne.s32.totalorder %s30, %s31
      %p45 = scmp.eq.s32.totalorder %s23, 1
      %p46 = por %p44, %p45
      %p48 = scmp.ne.s32.totalorder %s31, %s47
      %p49 = scmp.eq.s32.totalorder %s23, 0
      %p50 = por %p48, %p49
      %s51 = ssub.s32 %s17, %s24
      %p52 = scmp.eq.s32.totalorder %s51, 0
      %s54 = sadd.s32 %s53, 1
      %s55 = scalar_select %p52, %s53, %s54
      %p58 = pneg %p52
      %p59 = scmp.eq.s32.totalorder %s17, 1
      %p60 = por %p58, %p59
      %p61 = scmp.ne.s32.totalorder %s53, %s56
      %p62 = scmp.eq.s32.totalorder %s17, 0
      %p63 = por %p61, %p62
      %p64 = scmp.ne.s32.totalorder %s53, %s56
      %p65 = scmp.eq.s32.totalorder %s22, 1
      %p66 = por %p64, %p65
      %p67 = scmp.ne.s32.totalorder %s56, %s57
      %p68 = scmp.eq.s32.totalorder %s22, 0
      %p69 = por %p67, %p68
      %p70 = scmp.ne.s32.totalorder %s56, %s57
      %p71 = scmp.eq.s32.totalorder %s23, 1
      %p72 = por %p70, %p71
      %p74 = scmp.ne.s32.totalorder %s57, %s73
      %p75 = scmp.eq.s32.totalorder %s23, 0
      %p76 = por %p74, %p75
      %s78 = sadd.s32 %s77, 1
      %p81 = scmp.eq.s32.totalorder %s17, 1
      %p82 = scmp.ne.s32.totalorder %s77, %s79
      %p83 = scmp.eq.s32.totalorder %s17, 0
      %p84 = por %p82, %p83
      %p85 = scmp.ne.s32.totalorder %s77, %s79
      %p86 = scmp.eq.s32.totalorder %s22, 1
      %p87 = por %p85, %p86
      %p88 = scmp.ne.s32.totalorder %s79, %s80
      %p89 = scmp.eq.s32.totalorder %s22, 0
      %p90 = por %p88, %p89
      %p91 = scmp.ne.s32.totalorder %s79, %s80
      %p92 = scmp.eq.s32.totalorder %s23, 1
      %p93 = por %p91, %p92
      %p95 = scmp.ne.s32.totalorder %s80, %s94
      %p96 = scmp.eq.s32.totalorder %s23, 0
      %p97 = por %p95, %p96
      %s99 = sadd.s32 %s98, 1
      %p102 = scmp.eq.s32.totalorder %s17, 1
      %p103 = scmp.ne.s32.totalorder %s98, %s100
      %p104 = scmp.eq.s32.totalorder %s17, 0
      %p105 = por %p103, %p104
      %p106 = scmp.ne.s32.totalorder %s98, %s100
      %p107 = scmp.eq.s32.totalorder %s22, 1
      %p108 = por %p106, %p107
      %p109 = scmp.ne.s32.totalorder %s100, %s101
      %p110 = scmp.eq.s32.totalorder %s22, 0
      %p111 = por %p109, %p110
      %p112 = scmp.ne.s32.totalorder %s100, %s101
      %p113 = scmp.eq.s32.totalorder %s23, 1
      %p114 = por %p112, %p113
      %p116 = scmp.ne.s32.totalorder %s101, %s115
      %p117 = scmp.eq.s32.totalorder %s23, 0
      %p118 = por %p116, %p117
      %s120 = sadd.s32 %s119, 1
      %p123 = scmp.eq.s32.totalorder %s17, 1
      %p124 = scmp.ne.s32.totalorder %s119, %s121
      %p125 = scmp.eq.s32.totalorder %s17, 0
      %p126 = por %p124, %p125
      %p127 = scmp.ne.s32.totalorder %s119, %s121
      %p128 = scmp.eq.s32.totalorder %s22, 1
      %p129 = por %p127, %p128
      %p130 = scmp.ne.s32.totalorder %s121, %s122
      %p131 = scmp.eq.s32.totalorder %s22, 0
      %p132 = por %p130, %p131
      %p133 = scmp.ne.s32.totalorder %s121, %s122
      %p134 = scmp.eq.s32.totalorder %s23, 1
      %p135 = por %p133, %p134
      %p137 = scmp.ne.s32.totalorder %s122, %s136
      %p138 = scmp.eq.s32.totalorder %s23, 0
      %p139 = por %p137, %p138
      %s141 = sadd.s32 %s140, 1
      %p144 = scmp.eq.s32.totalorder %s17, 1
      %p145 = scmp.ne.s32.totalorder %s140, %s142
      %p146 = scmp.eq.s32.totalorder %s17, 0
      %p147 = por %p145, %p146
      %p148 = scmp.ne.s32.totalorder %s140, %s142
      %p149 = scmp.eq.s32.totalorder %s22, 1
      %p150 = por %p148, %p149
      %p151 = scmp.ne.s32.totalorder %s142, %s143
      %p152 = scmp.eq.s32.totalorder %s22, 0
      %p153 = por %p151, %p152
      %p154 = scmp.ne.s32.totalorder %s142, %s143
      %p155 = scmp.eq.s32.totalorder %s23, 1
      %p156 = por %p154, %p155
      %p158 = scmp.ne.s32.totalorder %s143, %s157
      %p159 = scmp.eq.s32.totalorder %s23, 0
      %p160 = por %p158, %p159
      %s162 = sadd.s32 %s161, 1
      %p165 = scmp.eq.s32.totalorder %s17, 1
      %p166 = scmp.ne.s32.totalorder %s161, %s163
      %p167 = scmp.eq.s32.totalorder %s17, 0
      %p168 = por %p166, %p167
      %p169 = scmp.ne.s32.totalorder %s161, %s163
      %p170 = scmp.eq.s32.totalorder %s22, 1
      %p171 = por %p169, %p170
      %p172 = scmp.ne.s32.totalorder %s163, %s164
      %p173 = scmp.eq.s32.totalorder %s22, 0
      %p174 = por %p172, %p173
      %p175 = scmp.ne.s32.totalorder %s163, %s164
      %p176 = scmp.eq.s32.totalorder %s23, 1
      %p177 = por %p175, %p176
      %p179 = scmp.ne.s32.totalorder %s164, %s178
      %p180 = scmp.eq.s32.totalorder %s23, 0
      %p181 = por %p179, %p180
      %s183 = sadd.s32 %s182, 1
      %p186 = scmp.eq.s32.totalorder %s17, 1
      %p187 = scmp.ne.s32.totalorder %s182, %s184
      %p188 = scmp.eq.s32.totalorder %s17, 0
      %p189 = por %p187, %p188
      %p190 = scmp.ne.s32.totalorder %s182, %s184
      %p191 = scmp.eq.s32.totalorder %s22, 1
      %p192 = por %p190, %p191
      %p193 = scmp.ne.s32.totalorder %s184, %s185
      %p194 = scmp.eq.s32.totalorder %s22, 0
      %p195 = por %p193, %p194
      %p196 = scmp.ne.s32.totalorder %s184, %s185
      %p197 = scmp.eq.s32.totalorder %s23, 1
      %p198 = por %p196, %p197
      %p200 = scmp.ne.s32.totalorder %s185, %s199
      %p201 = scmp.eq.s32.totalorder %s23, 0
      %p202 = por %p200, %p201
      %s203 = ssub.s32 %s17, %s24
      %p204 = scmp.eq.s32.totalorder %s203, 0
      %s206 = sadd.s32 %s205, 1
      %s207 = scalar_select %p204, %s205, %s206
      %p210 = pneg %p204
      %p211 = scmp.eq.s32.totalorder %s17, 1
      %p212 = por %p210, %p211
      %p213 = scmp.ne.s32.totalorder %s205, %s208
      %p214 = scmp.eq.s32.totalorder %s17, 0
      %p215 = por %p213, %p214
      %p216 = scmp.ne.s32.totalorder %s205, %s208
      %p217 = scmp.eq.s32.totalorder %s22, 1
      %p218 = por %p216, %p217
      %p219 = scmp.ne.s32.totalorder %s208, %s209
      %p220 = scmp.eq.s32.totalorder %s22, 0
      %p221 = por %p219, %p220
      %p222 = scmp.ne.s32.totalorder %s208, %s209
      %p223 = scmp.eq.s32.totalorder %s23, 1
      %p224 = por %p222, %p223
      %p226 = scmp.ne.s32.totalorder %s209, %s225
      %p227 = scmp.eq.s32.totalorder %s23, 0
      %p228 = por %p226, %p227
      %p229 = scmp.le.s32.totalorder 1, %s17
      %p230 = scmp.lt.s32.totalorder %s17, 3
      %p231 = pnand %p229, %p230
      %p232 = pneg %p231
      // Predicated region
      $region9: #{predictor_forward.10} parent=5 // pred_check
        _
      $region10: #{predictor_forward.10} parent=5 // pred_check_branch
        %234 = sbr.rel (%p231) target = $region12
      $region11: #{predictor_forward.10} parent=5 // pred_region
        %s235 = ssub.s32 %s17, 1
        // Predicated region
        $region13: #{predictor_forward.10} parent=11 // pred_check
          %p236 = pneg %p90
        $region14: #{predictor_forward.10} parent=11 // pred_check_branch
          %238 = sbr.rel (%p236) target = $region16
        $region15: #{predictor_forward.10} parent=11 // pred_region
          %240 = vsyncadd [#allocation3], 0
          %s242 = sshll.u32 %s2, 4
          %s243 = int_to_ptr.hbm [resolvable:$true] %s242
          %s244 = sshll.u32 [#allocation2], 4
          %s245 = int_to_ptr.vmem [resolvable:$true] %s244
          %247 = dma.hbm_to_vmem [thread:$0]  %s243, 16, %s245, [#allocation3]
        $region16: #{predictor_forward.10} parent=11 // pred_fallthru
          _
        // Predicated region
        $region17: #{predictor_forward.10} parent=11 // pred_check
          %p248 = pneg %p111
        $region18: #{predictor_forward.10} parent=11 // pred_check_branch
          %250 = sbr.rel (%p248) target = $region20
        $region19: #{predictor_forward.10} parent=11 // pred_region
          %252 = vsyncadd [#allocation5], 0
          %s254 = sshll.u32 %s3, 4
          %s255 = int_to_ptr.hbm [resolvable:$true] %s254
          %s256 = sshll.u32 [#allocation4], 4
          %s257 = int_to_ptr.vmem [resolvable:$true] %s256
          %259 = dma.hbm_to_vmem [thread:$0]  %s255, 16, %s257, [#allocation5]
        $region20: #{predictor_forward.10} parent=11 // pred_fallthru
          _
        // Predicated region
        $region21: #{predictor_forward.10} parent=11 // pred_check
          %p260 = pneg %p132
        $region22: #{predictor_forward.10} parent=11 // pred_check_branch
          %262 = sbr.rel (%p260) target = $region24
        $region23: #{predictor_forward.10} parent=11 // pred_region
          _
        $region24: #{predictor_forward.10} parent=11 // pred_fallthru
          _
        // Predicated region
        $region25: #{predictor_forward.10} parent=11 // pred_check
          %p263 = pneg %p153
        $region26: #{predictor_forward.10} parent=11 // pred_check_branch
          %265 = sbr.rel (%p263) target = $region28
        $region27: #{predictor_forward.10} parent=11 // pred_region
          %267 = vsyncadd [#allocation5], 0
          %s269 = sshll.u32 %s5, 4
          %s270 = int_to_ptr.hbm [resolvable:$true] %s269
          %s271 = sshll.u32 [#allocation6], 4
          %s272 = int_to_ptr.vmem [resolvable:$true] %s271
          %274 = dma.hbm_to_vmem [thread:$0]  %s270, 16, %s272, [#allocation5]
        $region28: #{predictor_forward.10} parent=11 // pred_fallthru
          _
        // Predicated region
        $region29: #{predictor_forward.10} parent=11 // pred_check
          %p275 = pneg %p174
        $region30: #{predictor_forward.10} parent=11 // pred_check_branch
          %277 = sbr.rel (%p275) target = $region32
        $region31: #{predictor_forward.10} parent=11 // pred_region
          _
        $region32: #{predictor_forward.10} parent=11 // pred_fallthru
          _
        // Predicated region
        $region33: #{predictor_forward.10} parent=11 // pred_check
          %p278 = pneg %p195
        $region34: #{predictor_forward.10} parent=11 // pred_check_branch
          %280 = sbr.rel (%p278) target = $region36
        $region35: #{predictor_forward.10} parent=11 // pred_region
          %282 = vsyncadd [#allocation8], 0
          %s284 = sshll.u32 %s7, 4
          %s285 = int_to_ptr.hbm [resolvable:$true] %s284
          %s286 = sshll.u32 [#allocation7], 4
          %s287 = int_to_ptr.vmem [resolvable:$true] %s286
          %289 = dma.hbm_to_vmem [thread:$0]  %s285, 16, %s287, [#allocation8]
        $region36: #{predictor_forward.10} parent=11 // pred_fallthru
          _
      $region12: #{predictor_forward.10} parent=5 // pred_fallthru
        _
      %p290 = scmp.lt.s32.totalorder %s17, 2
      // Predicated region
      $region37: #{predictor_forward.10} parent=5 // pred_check
        %p291 = pneg %p290
      $region38: #{predictor_forward.10} parent=5 // pred_check_branch
        %293 = sbr.rel (%p291) target = $region40
      $region39: #{predictor_forward.10} parent=5 // pred_region
        // Predicated region
        $region41: #{predictor_forward.10} parent=39 // pred_check
          %p294 = pneg %p37
        $region42: #{predictor_forward.10} parent=39 // pred_check_branch
          %296 = sbr.rel (%p294) target = $region44
        $region43: #{predictor_forward.10} parent=39 // pred_region
          %p297 = scmp.lt.s32.totalorder %s17, 1
          %s298 = scalar_select %p297, %s17, 1
          %s299 = smul.addr %s298, 4
          %s300 = scalar_lea.vmem %s0, %s299
        $region44: #{predictor_forward.10} parent=39 // pred_fallthru
          _
        // Predicated region
        $region45: #{predictor_forward.10} parent=39 // pred_check
          %p301 = pneg %p63
        $region46: #{predictor_forward.10} parent=39 // pred_check_branch
          %303 = sbr.rel (%p301) target = $region48
        $region47: #{predictor_forward.10} parent=39 // pred_region
          %p304 = scmp.lt.s32.totalorder %s17, 1
          %s305 = scalar_select %p304, %s17, 1
          %s306 = scalar_lea.vmem %s1, %s305
        $region48: #{predictor_forward.10} parent=39 // pred_fallthru
          _
      $region40: #{predictor_forward.10} parent=5 // pred_fallthru
        _
      %p307 = scmp.le.s32.totalorder 1, %s17
      %p308 = scmp.lt.s32.totalorder %s17, 3
      %p309 = pnand %p307, %p308
      %p310 = pneg %p309
      // Predicated region
      $region49: #{predictor_forward.10} parent=5 // pred_check
        _
      $region50: #{predictor_forward.10} parent=5 // pred_check_branch
        %312 = sbr.rel (%p309) target = $region52
      $region51: #{predictor_forward.10} parent=5 // pred_region
        %s313 = ssub.s32 %s17, 1
        // Predicated region
        $region53: #{predictor_forward.10} parent=51 // pred_check
          %p314 = pneg %p90
        $region54: #{predictor_forward.10} parent=51 // pred_check_branch
          %316 = sbr.rel (%p314) target = $region56
        $region55: #{predictor_forward.10} parent=51 // pred_region
          %318 = dma.done [#allocation3], 16
        $region56: #{predictor_forward.10} parent=51 // pred_fallthru
          _
        // Predicated region
        $region57: #{predictor_forward.10} parent=51 // pred_check
          %p319 = pneg %p111
        $region58: #{predictor_forward.10} parent=51 // pred_check_branch
          %321 = sbr.rel (%p319) target = $region60
        $region59: #{predictor_forward.10} parent=51 // pred_region
          %323 = dma.done [#allocation5], 16
        $region60: #{predictor_forward.10} parent=51 // pred_fallthru
          _
        // Predicated region
        $region61: #{predictor_forward.10} parent=51 // pred_check
          %p324 = pneg %p153
        $region62: #{predictor_forward.10} parent=51 // pred_check_branch
          %326 = sbr.rel (%p324) target = $region64
        $region63: #{predictor_forward.10} parent=51 // pred_region
          %328 = dma.done [#allocation5], 16
        $region64: #{predictor_forward.10} parent=51 // pred_fallthru
          _
        // Predicated region
        $region65: #{predictor_forward.10} parent=51 // pred_check
          %p329 = pneg %p195
        $region66: #{predictor_forward.10} parent=51 // pred_check_branch
          %331 = sbr.rel (%p329) target = $region68
        $region67: #{predictor_forward.10} parent=51 // pred_region
          %333 = dma.done [#allocation8], 16
        $region68: #{predictor_forward.10} parent=51 // pred_fallthru
          _
        %p334 = scmp.lt.s32.totalorder %s22, 1
        %s335 = scalar_select %p334, %s22, 1
        %s336 = smul.addr %s335, 4
        %s337 = scalar_lea.vmem %s0, %s336
        %p338 = pneg %p43
        %p339 = pneg %p40
        %p340 = scmp.lt.s32.totalorder %s22, 1
        %s341 = scalar_select %p340, %s22, 1
        %s342 = scalar_lea.vmem %s1, %s341
        %p343 = pneg %p69
        %p344 = pneg %p66
        %p345 = pneg %p90
        %p346 = pneg %p87
        %p347 = pneg %p111
        %p348 = pneg %p108
        %p349 = pneg %p132
        %p350 = pneg %p129
        %p351 = pneg %p153
        %p352 = pneg %p150
        %p353 = pneg %p174
        %p354 = pneg %p171
        %p355 = pneg %p195
        %p356 = pneg %p192
        %p357 = pneg %p221
        %p358 = pneg %p218
        %p359 = scmp.lt.s32.totalorder %s22, 1
        %s360 = scalar_select %p359, %s22, 1
        %s361 = smul.addr %s360, 4
        %s362 = scalar_lea.vmem %s8, %s361
        %p363 = scmp.lt.s32.totalorder %s22, 1
        %s364 = scalar_select %p363, %s22, 1
        %s365 = smul.addr %s364, 4
        %s366 = scalar_lea.vmem %s0, %s365
        %p367 = scmp.lt.s32.totalorder %s22, 1
        %s368 = scalar_select %p367, %s22, 1
        %s369 = scalar_lea.vmem %s1, %s368
        %p370 = scmp.lt.s32.totalorder %s22, 1
        %s371 = scalar_select %p370, %s22, 1
        %s372 = smul.addr %s371, 4
        %s373 = scalar_lea.vmem %s8, %s372
        %v375 = vld [vmem:[%s366] sm:$0xf]
        %v376 = vunpack.c.l.bf16 %v375
        %v377 = vld [vmem:[%s369] sm:$0x1]
        %v378 = vld [vmem:[#allocation2] sm:$0x1]
        %v379 = vld [vmem:[#allocation4] sm:$0x1]
        %vm380 = vcmask 261120
        %v381 = vsel %vm380, %v376, 0.0
        %382 = vadd.xlane.f32.xlu0 %v381
        %v383 = vpop.xlane.xlu0 %382
        %v384 = vrcp.pop 32.0
        %v385 = vmul.f32 32.0, %v384
        %v386 = vsub.f32 1.0, %v385
        %v387 = vmul.f32 %v384, %v386
        %v388 = vadd.f32 %v384, %v387
        %vm389 = vweird.f32 %v384
        %v390 = vsel %vm389, %v384, %v388
        %v391 = vmul.f32 %v383, %v390
        %v392 = vsub.f32 %v376, %v391
        %v393 = vmul.f32 %v392, %v392
        %v394 = vsel %vm380, %v393, 0.0
        %395 = vadd.xlane.f32.xlu0 %v394
        %v396 = vpop.xlane.xlu0 %395
        %v397 = vmul.f32 %v396, %v390
        %v398 = vadd.f32 %v397, 1e-05
        %v399 = vrsqrt.pop %v398
        %v400 = vmul.f32 %v399, %v398
        %v401 = vmul.f32 %v400, %v399
        %v402 = vmul.f32 0.5, %v401
        %v403 = vsub.f32 1.5, %v402
        %v404 = vmul.f32 %v399, %v403
        %vm405 = vweird.f32 %v398
        %vm406 = vweird.f32 %v399
        %vm407 = vmor %vm405, %vm406
        %v408 = vsel %vm407, %v399, %v404
        %v409 = vmul.f32 %v392, %v408
        %v411 = vperm.slane %v378, 0
        %v413 = vmul.f32 %v409, %v411
        %v415 = vperm.slane %v379, 0
        %v417 = vadd.f32 %v413, %v415
        %v418 = vpack.c.bf16 %v417, %v417
        %v419 = vld [vmem:[%s4] sm:$0xf]
        %v420 = vld [vmem:[%s4 + $0x4] sm:$0xf]
        %v421 = vld [vmem:[%s4 + $0x8] sm:$0xf]
        %v422 = vld [vmem:[%s4 + $0xc] sm:$0xf]
        %v423 = vld [vmem:[#allocation6] sm:$0x1]
        %v425 = vperm.slane %v423, 0
        %v431 = vunpack.c.l.b16 %v419
        %v432 = vunpack.c.l.b16 %v420
        %v433 = vunpack.c.l.b16 %v421
        %v434 = vunpack.c.l.b16 %v422
        %v435 = vpack.c.b16 %v432, %v431
        %v436 = vpack.c.b16 %v434, %v433
        %v440 = vsel %vm380, %v418, 0
        %442 = vmatpush.bf16.msra.mxu0 0
        %443 = vmatpush.bf16.msra.mxu0 0
        %444 = vmatpush.bf16.msra.mxu0 0
        %445 = vmatpush.bf16.msra.mxu0 0
        %446 = vmatpush.bf16.msra.mxu0 0
        %447 = vmatpush.bf16.msra.mxu0 0
        %448 = vmatpush.bf16.msra.mxu0 %v436
        %449 = vmatpush.bf16.msra.mxu0 %v435
        %450 = vmatmul.bf16.gmra.mxu0 %v440
        %v451 = vpop.f32.mrf.mxu0
        %v452 = vadd.f32 %v425, %v451
        %v453 = vpop.f32.mrf.mxu0
        %454 = vdwg.mxu0
        %v455 = vpack.c.bf16 %v452, %v452
        %457 = vrot.lane.b32.xlu0 %v455, 96
        %v458 = vpop.permute.xlu0 %457
        %vm459 = vcmask 64512
        %v461 = vsel %vm459, %v455, 0
        %v464 = vsel %vm459, %v458, 0
        %466 = vmatpush.bf16.xpose.msra.mxu0 0
        %467 = vmatpush.bf16.xpose.msra.mxu0 0
        %468 = vmatpush.bf16.xpose.msra.mxu0 0
        %469 = vmatpush.bf16.xpose.msra.mxu0 0
        %470 = vmatpush.bf16.xpose.msra.mxu0 0
        %471 = vmatpush.bf16.xpose.msra.mxu0 0
        %472 = vmatpush.bf16.xpose.msra.mxu0 0
        %473 = vmatpush.bf16.xpose.msra.mxu0 %v464
        %474 = vmatmul.bf16.gmra.mxu0 %v461
        %v475 = vpop.f32.mrf.mxu0
        %v476 = vadd.f32 0.0, %v475
        %v477 = vpop.f32.mrf.mxu0
        %478 = vdwg.mxu0
        %v479 = vmul.f32 %v476, 0.35355338
        %v481 = vperm.slane %v377, 0
        %v483 = vadd.f32 %v479, %v481
        %v484 = vsel %vm459, %v483, -inf
        %485 = vmax.xlane.f32.xlu0 %v484
        %v486 = vpop.xlane.xlu0 %485
        %v487 = vsub.f32 %v483, %v486
        %v488 = vmul.f32 %v487, 1.442695
        %v489 = vpow.pop %v488
        %v490 = vsel %vm459, %v489, 0.0
        %491 = vadd.xlane.f32.xlu0 %v490
        %v492 = vpop.xlane.xlu0 %491
        %v493 = vrcp.pop %v492
        %v494 = vmul.f32 %v489, %v493
        %v495 = vpack.c.bf16 %v494, %v494
        %496 = vrot.lane.b32.xlu0 %v455, 64
        %v497 = vpop.permute.xlu0 %496
        %v499 = vsel %vm459, %v495, 0
        %vm501 = vcmask 1043456
        %v503 = vsel %vm501, %v497, 0
        %505 = vmatpush.bf16.msra.mxu0 0
        %506 = vmatpush.bf16.msra.mxu0 0
        %507 = vmatpush.bf16.msra.mxu0 0
        %508 = vmatpush.bf16.msra.mxu0 0
        %509 = vmatpush.bf16.msra.mxu0 0
        %510 = vmatpush.bf16.msra.mxu0 0
        %511 = vmatpush.bf16.msra.mxu0 0
        %512 = vmatpush.bf16.msra.mxu0 %v503
        %513 = vmatmul.bf16.gmra.mxu0 %v499
        %v514 = vpop.f32.mrf.mxu0
        %v515 = vadd.f32 0.0, %v514
        %v516 = vpop.f32.mrf.mxu0
        %517 = vdwg.mxu0
        %v518 = vpack.c.bf16 %v515, %v515
        %v519 = vld [vmem:[%s6] sm:$0xf]
        %520 = vrot.lane.b32.xlu0 %v455, 120
        %v521 = vpop.permute.xlu0 %520
        %522 = vrot.lane.b32.xlu0 %v455, 88
        %v523 = vpop.permute.xlu0 %522
        %v525 = vsel %vm459, %v521, 0
        %v528 = vsel %vm459, %v523, 0
        %530 = vmatpush.bf16.xpose.msra.mxu0 0
        %531 = vmatpush.bf16.xpose.msra.mxu0 0
        %532 = vmatpush.bf16.xpose.msra.mxu0 0
        %533 = vmatpush.bf16.xpose.msra.mxu0 0
        %534 = vmatpush.bf16.xpose.msra.mxu0 0
        %535 = vmatpush.bf16.xpose.msra.mxu0 0
        %536 = vmatpush.bf16.xpose.msra.mxu0 0
        %537 = vmatpush.bf16.xpose.msra.mxu0 %v528
        %538 = vmatmul.bf16.gmra.mxu0 %v525
        %v539 = vpop.f32.mrf.mxu0
        %v540 = vadd.f32 0.0, %v539
        %v541 = vpop.f32.mrf.mxu0
        %542 = vdwg.mxu0
        %v543 = vmul.f32 %v540, 0.35355338
        %v544 = vadd.f32 %v543, %v481
        %v545 = vsel %vm459, %v544, -inf
        %546 = vmax.xlane.f32.xlu0 %v545
        %v547 = vpop.xlane.xlu0 %546
        %v548 = vsub.f32 %v544, %v547
        %v549 = vmul.f32 %v548, 1.442695
        %v550 = vpow.pop %v549
        %v551 = vsel %vm459, %v550, 0.0
        %552 = vadd.xlane.f32.xlu0 %v551
        %v553 = vpop.xlane.xlu0 %552
        %v554 = vrcp.pop %v553
        %v555 = vmul.f32 %v550, %v554
        %v556 = vpack.c.bf16 %v555, %v555
        %557 = vrot.lane.b32.xlu0 %v455, 56
        %v558 = vpop.permute.xlu0 %557
        %v560 = vsel %vm459, %v556, 0
        %v563 = vsel %vm501, %v558, 0
        %565 = vmatpush.bf16.msra.mxu0 0
        %566 = vmatpush.bf16.msra.mxu0 0
        %567 = vmatpush.bf16.msra.mxu0 0
        %568 = vmatpush.bf16.msra.mxu0 0
        %569 = vmatpush.bf16.msra.mxu0 0
        %570 = vmatpush.bf16.msra.mxu0 0
        %571 = vmatpush.bf16.msra.mxu0 0
        %572 = vmatpush.bf16.msra.mxu0 %v563
        %573 = vmatmul.bf16.gmra.mxu0 %v560
        %v574 = vpop.f32.mrf.mxu0
        %v575 = vadd.f32 0.0, %v574
        %v576 = vpop.f32.mrf.mxu0
        %577 = vdwg.mxu0
        %v578 = vpack.c.bf16 %v575, %v575
        %v579 = vld [vmem:[%s6 + $0x4] sm:$0xf]
        %v581 = vsel %vm459, %v578, 0
        %v584 = vsel %vm501, %v579, 0
        %586 = vmatpush.bf16.msra.mxu0 0
        %587 = vmatpush.bf16.msra.mxu0 0
        %588 = vmatpush.bf16.msra.mxu0 0
        %589 = vmatpush.bf16.msra.mxu0 0
        %590 = vmatpush.bf16.msra.mxu0 0
        %591 = vmatpush.bf16.msra.mxu0 0
        %592 = vmatpush.bf16.msra.mxu0 0
        %593 = vmatpush.bf16.msra.mxu0 %v584
        %594 = vmatmul.bf16.gmra.mxu0 %v581
        %v595 = vpop.f32.mrf.mxu0
        %v596 = vadd.f32 0.0, %v595
        %v597 = vpop.f32.mrf.mxu0
        %598 = vdwg.mxu0
        %v600 = vsel %vm459, %v518, 0
        %v603 = vsel %vm501, %v519, 0
        %605 = vmatpush.bf16.msra.mxu0 0
        %606 = vmatpush.bf16.msra.mxu0 0
        %607 = vmatpush.bf16.msra.mxu0 0
        %608 = vmatpush.bf16.msra.mxu0 0
        %609 = vmatpush.bf16.msra.mxu0 0
        %610 = vmatpush.bf16.msra.mxu0 0
        %611 = vmatpush.bf16.msra.mxu0 0
        %612 = vmatpush.bf16.msra.mxu0 %v603
        %613 = vmatmul.bf16.gmra.mxu0 %v600
        %v614 = vpop.f32.mrf.mxu0
        %v615 = vadd.f32 %v596, %v614
        %v616 = vpop.f32.mrf.mxu0
        %617 = vdwg.mxu0
        %618 = vrot.lane.b32.xlu0 %v455, 112
        %v619 = vpop.permute.xlu0 %618
        %620 = vrot.lane.b32.xlu0 %v455, 80
        %v621 = vpop.permute.xlu0 %620
        %v623 = vsel %vm459, %v619, 0
        %v626 = vsel %vm459, %v621, 0
        %628 = vmatpush.bf16.xpose.msra.mxu0 0
        %629 = vmatpush.bf16.xpose.msra.mxu0 0
        %630 = vmatpush.bf16.xpose.msra.mxu0 0
        %631 = vmatpush.bf16.xpose.msra.mxu0 0
        %632 = vmatpush.bf16.xpose.msra.mxu0 0
        %633 = vmatpush.bf16.xpose.msra.mxu0 0
        %634 = vmatpush.bf16.xpose.msra.mxu0 0
        %635 = vmatpush.bf16.xpose.msra.mxu0 %v626
        %636 = vmatmul.bf16.gmra.mxu0 %v623
        %v637 = vpop.f32.mrf.mxu0
        %v638 = vadd.f32 0.0, %v637
        %v639 = vpop.f32.mrf.mxu0
        %640 = vdwg.mxu0
        %v641 = vmul.f32 %v638, 0.35355338
        %v642 = vadd.f32 %v641, %v481
        %v643 = vsel %vm459, %v642, -inf
        %644 = vmax.xlane.f32.xlu0 %v643
        %v645 = vpop.xlane.xlu0 %644
        %v646 = vsub.f32 %v642, %v645
        %v647 = vmul.f32 %v646, 1.442695
        %v648 = vpow.pop %v647
        %v649 = vsel %vm459, %v648, 0.0
        %650 = vadd.xlane.f32.xlu0 %v649
        %v651 = vpop.xlane.xlu0 %650
        %v652 = vrcp.pop %v651
        %v653 = vmul.f32 %v648, %v652
        %v654 = vpack.c.bf16 %v653, %v653
        %655 = vrot.lane.b32.xlu0 %v455, 48
        %v656 = vpop.permute.xlu0 %655
        %v658 = vsel %vm459, %v654, 0
        %v661 = vsel %vm501, %v656, 0
        %663 = vmatpush.bf16.msra.mxu0 0
        %664 = vmatpush.bf16.msra.mxu0 0
        %665 = vmatpush.bf16.msra.mxu0 0
        %666 = vmatpush.bf16.msra.mxu0 0
        %667 = vmatpush.bf16.msra.mxu0 0
        %668 = vmatpush.bf16.msra.mxu0 0
        %669 = vmatpush.bf16.msra.mxu0 0
        %670 = vmatpush.bf16.msra.mxu0 %v661
        %671 = vmatmul.bf16.gmra.mxu0 %v658
        %v672 = vpop.f32.mrf.mxu0
        %v673 = vadd.f32 0.0, %v672
        %v674 = vpop.f32.mrf.mxu0
        %675 = vdwg.mxu0
        %v676 = vpack.c.bf16 %v673, %v673
        %v677 = vld [vmem:[%s6 + $0x8] sm:$0xf]
        %v679 = vsel %vm459, %v676, 0
        %v682 = vsel %vm501, %v677, 0
        %684 = vmatpush.bf16.msra.mxu0 0
        %685 = vmatpush.bf16.msra.mxu0 0
        %686 = vmatpush.bf16.msra.mxu0 0
        %687 = vmatpush.bf16.msra.mxu0 0
        %688 = vmatpush.bf16.msra.mxu0 0
        %689 = vmatpush.bf16.msra.mxu0 0
        %690 = vmatpush.bf16.msra.mxu0 0
        %691 = vmatpush.bf16.msra.mxu0 %v682
        %692 = vmatmul.bf16.gmra.mxu0 %v679
        %v693 = vpop.f32.mrf.mxu0
        %v694 = vadd.f32 0.0, %v693
        %v695 = vpop.f32.mrf.mxu0
        %696 = vdwg.mxu0
        %v697 = vadd.f32 %v615, %v694
        %698 = vrot.lane.b32.xlu0 %v455, 104
        %v699 = vpop.permute.xlu0 %698
        %700 = vrot.lane.b32.xlu0 %v455, 72
        %v701 = vpop.permute.xlu0 %700
        %v703 = vsel %vm459, %v699, 0
        %v706 = vsel %vm459, %v701, 0
        %708 = vmatpush.bf16.xpose.msra.mxu0 0
        %709 = vmatpush.bf16.xpose.msra.mxu0 0
        %710 = vmatpush.bf16.xpose.msra.mxu0 0
        %711 = vmatpush.bf16.xpose.msra.mxu0 0
        %712 = vmatpush.bf16.xpose.msra.mxu0 0
        %713 = vmatpush.bf16.xpose.msra.mxu0 0
        %714 = vmatpush.bf16.xpose.msra.mxu0 0
        %715 = vmatpush.bf16.xpose.msra.mxu0 %v706
        %716 = vmatmul.bf16.gmra.mxu0 %v703
        %v717 = vpop.f32.mrf.mxu0
        %v718 = vadd.f32 0.0, %v717
        %v719 = vpop.f32.mrf.mxu0
        %720 = vdwg.mxu0
        %v721 = vmul.f32 %v718, 0.35355338
        %v722 = vadd.f32 %v721, %v481
        %v723 = vsel %vm459, %v722, -inf
        %724 = vmax.xlane.f32.xlu0 %v723
        %v725 = vpop.xlane.xlu0 %724
        %v726 = vsub.f32 %v722, %v725
        %v727 = vmul.f32 %v726, 1.442695
        %v728 = vpow.pop %v727
        %v729 = vsel %vm459, %v728, 0.0
        %730 = vadd.xlane.f32.xlu0 %v729
        %v731 = vpop.xlane.xlu0 %730
        %v732 = vrcp.pop %v731
        %v733 = vmul.f32 %v728, %v732
        %v734 = vpack.c.bf16 %v733, %v733
        %735 = vrot.lane.b32.xlu0 %v455, 40
        %v736 = vpop.permute.xlu0 %735
        %v738 = vsel %vm459, %v734, 0
        %v741 = vsel %vm501, %v736, 0
        %743 = vmatpush.bf16.msra.mxu0 0
        %744 = vmatpush.bf16.msra.mxu0 0
        %745 = vmatpush.bf16.msra.mxu0 0
        %746 = vmatpush.bf16.msra.mxu0 0
        %747 = vmatpush.bf16.msra.mxu0 0
        %748 = vmatpush.bf16.msra.mxu0 0
        %749 = vmatpush.bf16.msra.mxu0 0
        %750 = vmatpush.bf16.msra.mxu0 %v741
        %751 = vmatmul.bf16.gmra.mxu0 %v738
        %v752 = vpop.f32.mrf.mxu0
        %v753 = vadd.f32 0.0, %v752
        %v754 = vpop.f32.mrf.mxu0
        %755 = vdwg.mxu0
        %v756 = vpack.c.bf16 %v753, %v753
        %v757 = vld [vmem:[%s6 + $0xc] sm:$0xf]
        %v759 = vsel %vm459, %v756, 0
        %v762 = vsel %vm501, %v757, 0
        %764 = vmatpush.bf16.msra.mxu0 0
        %765 = vmatpush.bf16.msra.mxu0 0
        %766 = vmatpush.bf16.msra.mxu0 0
        %767 = vmatpush.bf16.msra.mxu0 0
        %768 = vmatpush.bf16.msra.mxu0 0
        %769 = vmatpush.bf16.msra.mxu0 0
        %770 = vmatpush.bf16.msra.mxu0 0
        %771 = vmatpush.bf16.msra.mxu0 %v762
        %772 = vmatmul.bf16.gmra.mxu0 %v759
        %v773 = vpop.f32.mrf.mxu0
        %v774 = vadd.f32 0.0, %v773
        %v775 = vpop.f32.mrf.mxu0
        %776 = vdwg.mxu0
        %v777 = vadd.f32 %v697, %v774
        %v778 = vadd.f32 %v376, %v777
        %v779 = vld [vmem:[#allocation7] sm:$0x1]
        %v781 = vperm.slane %v779, 0
        %v783 = vadd.f32 %v778, %v781
        %v784 = vpack.c.bf16 %v783, %v783
        %vm785 = vcmask 257024
        %786 = vst.msk [vmem:[%s373] sm:$0xf] %vm785, %v784
        %p787 = scmp.lt.s32.totalorder %s22, 1
        %s788 = scalar_select %p787, %s22, 1
        %s789 = smul.addr %s788, 4
        %s790 = scalar_lea.vmem %s8, %s789
        // Predicated region
        $region69: #{predictor_forward.10} parent=51 // pred_check
          %p791 = pneg %p218
        $region70: #{predictor_forward.10} parent=51 // pred_check_branch
          %793 = sbr.rel (%p791) target = $region72
        $region71: #{predictor_forward.10} parent=51 // pred_region
          _
        $region72: #{predictor_forward.10} parent=51 // pred_fallthru
          _
      $region52: #{predictor_forward.10} parent=5 // pred_fallthru
        _
      %p794 = scmp.le.s32.totalorder 2, %s17
      // Predicated region
      $region73: #{predictor_forward.10} parent=5 // pred_check
        %p795 = pneg %p794
      $region74: #{predictor_forward.10} parent=5 // pred_check_branch
        %797 = sbr.rel (%p795) target = $region76
      $region75: #{predictor_forward.10} parent=5 // pred_region
        %s798 = ssub.s32 %s17, 2
        // Predicated region
        $region77: #{predictor_forward.10} parent=75 // pred_check
          %p799 = pneg %p224
        $region78: #{predictor_forward.10} parent=75 // pred_check_branch
          %801 = sbr.rel (%p799) target = $region80
        $region79: #{predictor_forward.10} parent=75 // pred_region
          %p802 = scmp.lt.s32.totalorder %s23, 1
          %s803 = scalar_select %p802, %s23, 1
          %s804 = smul.addr %s803, 4
          %s805 = scalar_lea.vmem %s8, %s804
        $region80: #{predictor_forward.10} parent=75 // pred_fallthru
          _
      $region76: #{predictor_forward.10} parent=5 // pred_fallthru
        _
    $region6: #{predictor_forward.10} parent=1 // loop_footer
      %s21 = sadd.s32 1, %s17
    $region7: #{predictor_forward.10} parent=1 // loop_footer_branch
      %16 = sbr.rel target = $region3
    $region8: #{predictor_forward.10} parent=1 // loop_exit
      _
    %806 = vsyncpa [#allocation3], 1
    %s807 = scalar_lea.sflag [#allocation3], 1
    %808 = vsyncpa %s807, 1
    %809 = vsyncpa [#allocation5], 1
    %810 = vsyncpa [#allocation8], 1

// kernel: predictor_forward.13
$region0: #{predictor_forward.13}
  #allocation0 [shape = 'u32[]', space=smem, size = 0x4, offset = 0x4, fixed_abs, tag = 'smem constant byte address 0x4 - core index']
  #allocation1 [shape = 'u32[72,128]{1,0:T(1,128)}', space=vmem, size = 0x9000, scoped, tag = 'internal scratch']
  %s0 = inlined_call_operand.vmem [shape: bf16[16,32], index: 0, kind: input, shape index: {}]
  %s1 = inlined_call_operand.vmem [shape: f32[1,32], index: 1, kind: input, shape index: {}]
  %s2 = inlined_call_operand.hbm [shape: f32[1,32], index: 2, kind: input, shape index: {}]
  %s3 = inlined_call_operand.vmem [shape: bf16[32,64], index: 3, kind: input, shape index: {}]
  %s4 = inlined_call_operand.hbm [shape: f32[1,64], index: 4, kind: input, shape index: {}]
  %s5 = inlined_call_operand.vmem [shape: bf16[64,32], index: 5, kind: input, shape index: {}]
  %s6 = inlined_call_operand.hbm [shape: f32[1,32], index: 6, kind: input, shape index: {}]
  %s7 = inlined_call_operand.vmem [shape: bf16[16,32], index: 7, kind: output, shape index: {}]
  %s8 = sld [smem:[#allocation0]]
  $region50: #{predictor_forward.13} parent=0
    _
  %s10 = ssub.s32 1, %s8
  %s11 = scalar_select 0, %s10, %s8
  $region1: #{predictor_forward.13} parent=0
    #allocation2 [shape = 'u8[512]{0}', space=vmem, size = 0x400, scoped, tag = 'input window, operand 2, single buffered']
    #allocation3 [shape = 's32[1]{0}', space=sflag, size = 0x4, scoped, tag = 'scoped memory for predictor_forward.13']
    #allocation4 [shape = 'u8[512]{0}', space=vmem, size = 0x400, scoped, tag = 'input window, operand 4, single buffered']
    #allocation5 [shape = 's32[1]{0}', space=sflag, size = 0x4, scoped, tag = 'scoped memory for predictor_forward.13']
    #allocation6 [shape = 'u8[512]{0}', space=vmem, size = 0x400, scoped, tag = 'input window, operand 6, single buffered']
    %12 = vsyncpa [#allocation3], 0
    %13 = vsyncpa [#allocation5], 0
    // Predicated region
    $region2: #{predictor_forward.13} parent=1 // pred_check
      _
    $region3: #{predictor_forward.13} parent=1 // pred_check_branch
      %15 = sbr.rel (0) target = $region5
    $region4: #{predictor_forward.13} parent=1 // pred_region
      _
    $region5: #{predictor_forward.13} parent=1 // pred_fallthru
      _
    // Predicated region
    $region6: #{predictor_forward.13} parent=1 // pred_check
      _
    $region7: #{predictor_forward.13} parent=1 // pred_check_branch
      %17 = sbr.rel (0) target = $region9
    $region8: #{predictor_forward.13} parent=1 // pred_region
      _
    $region9: #{predictor_forward.13} parent=1 // pred_fallthru
      _
    // Predicated region
    $region10: #{predictor_forward.13} parent=1 // pred_check
      _
    $region11: #{predictor_forward.13} parent=1 // pred_check_branch
      %19 = sbr.rel (0) target = $region13
    $region12: #{predictor_forward.13} parent=1 // pred_region
      %21 = vsyncadd [#allocation3], 0
      %s23 = sshll.u32 %s2, 4
      %s24 = int_to_ptr.hbm [resolvable:$true] %s23
      %s25 = sshll.u32 [#allocation2], 4
      %s26 = int_to_ptr.vmem [resolvable:$true] %s25
      %28 = dma.hbm_to_vmem [thread:$0]  %s24, 16, %s26, [#allocation3]
    $region13: #{predictor_forward.13} parent=1 // pred_fallthru
      _
    // Predicated region
    $region14: #{predictor_forward.13} parent=1 // pred_check
      _
    $region15: #{predictor_forward.13} parent=1 // pred_check_branch
      %30 = sbr.rel (0) target = $region17
    $region16: #{predictor_forward.13} parent=1 // pred_region
      _
    $region17: #{predictor_forward.13} parent=1 // pred_fallthru
      _
    // Predicated region
    $region18: #{predictor_forward.13} parent=1 // pred_check
      _
    $region19: #{predictor_forward.13} parent=1 // pred_check_branch
      %32 = sbr.rel (0) target = $region21
    $region20: #{predictor_forward.13} parent=1 // pred_region
      %34 = vsyncadd [#allocation5], 0
      %s36 = sshll.u32 %s4, 4
      %s37 = int_to_ptr.hbm [resolvable:$true] %s36
      %s38 = sshll.u32 [#allocation4], 4
      %s39 = int_to_ptr.vmem [resolvable:$true] %s38
      %41 = dma.hbm_to_vmem [thread:$0]  %s37, 16, %s39, [#allocation5]
    $region21: #{predictor_forward.13} parent=1 // pred_fallthru
      _
    // Predicated region
    $region22: #{predictor_forward.13} parent=1 // pred_check
      _
    $region23: #{predictor_forward.13} parent=1 // pred_check_branch
      %43 = sbr.rel (0) target = $region25
    $region24: #{predictor_forward.13} parent=1 // pred_region
      _
    $region25: #{predictor_forward.13} parent=1 // pred_fallthru
      _
    // Predicated region
    $region26: #{predictor_forward.13} parent=1 // pred_check
      _
    $region27: #{predictor_forward.13} parent=1 // pred_check_branch
      %45 = sbr.rel (0) target = $region29
    $region28: #{predictor_forward.13} parent=1 // pred_region
      %47 = vsyncadd [#allocation5], 0
      %s49 = sshll.u32 %s6, 4
      %s50 = int_to_ptr.hbm [resolvable:$true] %s49
      %s51 = sshll.u32 [#allocation6], 4
      %s52 = int_to_ptr.vmem [resolvable:$true] %s51
      %54 = dma.hbm_to_vmem [thread:$0]  %s50, 16, %s52, [#allocation5]
    $region29: #{predictor_forward.13} parent=1 // pred_fallthru
      _
    // Predicated region
    $region30: #{predictor_forward.13} parent=1 // pred_check
      _
    $region31: #{predictor_forward.13} parent=1 // pred_check_branch
      %56 = sbr.rel (0) target = $region33
    $region32: #{predictor_forward.13} parent=1 // pred_region
      %58 = dma.done [#allocation3], 16
    $region33: #{predictor_forward.13} parent=1 // pred_fallthru
      _
    // Predicated region
    $region34: #{predictor_forward.13} parent=1 // pred_check
      _
    $region35: #{predictor_forward.13} parent=1 // pred_check_branch
      %60 = sbr.rel (0) target = $region37
    $region36: #{predictor_forward.13} parent=1 // pred_region
      %62 = dma.done [#allocation5], 16
    $region37: #{predictor_forward.13} parent=1 // pred_fallthru
      _
    // Predicated region
    $region38: #{predictor_forward.13} parent=1 // pred_check
      _
    $region39: #{predictor_forward.13} parent=1 // pred_check_branch
      %64 = sbr.rel (0) target = $region41
    $region40: #{predictor_forward.13} parent=1 // pred_region
      %66 = dma.done [#allocation5], 16
    $region41: #{predictor_forward.13} parent=1 // pred_fallthru
      _
    %v68 = vld [vmem:[%s0] sm:$0xf]
    %v69 = vld [vmem:[%s0 + $0x4] sm:$0xf]
    %v70 = vunpack.c.l.bf16 %v68
    %v71 = vunpack.c.l.bf16 %v69
    %v72 = vld [vmem:[%s1] sm:$0x1]
    %v73 = vld [vmem:[#allocation2] sm:$0x1]
    %vm74 = vcmask 261120
    %v75 = vsel %vm74, %v70, 0.0
    %76 = vadd.xlane.f32.xlu0 %v75
    %v77 = vpop.xlane.xlu0 %76
    %v78 = vsel %vm74, %v71, 0.0
    %79 = vadd.xlane.f32.xlu0 %v78
    %v80 = vpop.xlane.xlu0 %79
    %v81 = vrcp.pop 32.0
    %v82 = vmul.f32 32.0, %v81
    %v83 = vsub.f32 1.0, %v82
    %v84 = vmul.f32 %v81, %v83
    %v85 = vadd.f32 %v81, %v84
    %vm86 = vweird.f32 %v81
    %v87 = vsel %vm86, %v81, %v85
    %v88 = vmul.f32 %v77, %v87
    %v89 = vmul.f32 %v80, %v87
    %v90 = vsub.f32 %v70, %v88
    %v91 = vsub.f32 %v71, %v89
    %v92 = vmul.f32 %v90, %v90
    %v93 = vmul.f32 %v91, %v91
    %v94 = vsel %vm74, %v92, 0.0
    %95 = vadd.xlane.f32.xlu0 %v94
    %v96 = vpop.xlane.xlu0 %95
    %v97 = vsel %vm74, %v93, 0.0
    %98 = vadd.xlane.f32.xlu0 %v97
    %v99 = vpop.xlane.xlu0 %98
    %v100 = vmul.f32 %v96, %v87
    %v101 = vmul.f32 %v99, %v87
    %v102 = vadd.f32 %v100, 1e-05
    %v103 = vadd.f32 %v101, 1e-05
    %v104 = vrsqrt.pop %v102
    %v105 = vmul.f32 %v104, %v102
    %v106 = vmul.f32 %v105, %v104
    %v107 = vmul.f32 0.5, %v106
    %v108 = vsub.f32 1.5, %v107
    %v109 = vmul.f32 %v104, %v108
    %vm110 = vweird.f32 %v102
    %vm111 = vweird.f32 %v104
    %vm112 = vmor %vm110, %vm111
    %v113 = vsel %vm112, %v104, %v109
    %v114 = vrsqrt.pop %v103
    %v115 = vmul.f32 %v114, %v103
    %v116 = vmul.f32 %v115, %v114
    %v117 = vmul.f32 0.5, %v116
    %v118 = vsub.f32 1.5, %v117
    %v119 = vmul.f32 %v114, %v118
    %vm120 = vweird.f32 %v103
    %vm121 = vweird.f32 %v114
    %vm122 = vmor %vm120, %vm121
    %v123 = vsel %vm122, %v114, %v119
    %v124 = vmul.f32 %v90, %v113
    %v125 = vmul.f32 %v91, %v123
    %v127 = vperm.slane %v72, 0
    %v129 = vmul.f32 %v124, %v127
    %v130 = vmul.f32 %v125, %v127
    %v132 = vperm.slane %v73, 0
    %v134 = vadd.f32 %v129, %v132
    %v135 = vadd.f32 %v130, %v132
    %v136 = vpack.c.bf16 %v135, %v134
    %v137 = vld [vmem:[%s3] sm:$0xf]
    %v138 = vld [vmem:[%s3 + $0x4] sm:$0xf]
    %v139 = vld [vmem:[%s3 + $0x8] sm:$0xf]
    %v140 = vld [vmem:[%s3 + $0xc] sm:$0xf]
    %v141 = vld [vmem:[#allocation4] sm:$0x1]
    %v143 = vperm.slane %v141, 0
    %v149 = vunpack.c.l.b16 %v137
    %v150 = vunpack.c.l.b16 %v138
    %v151 = vunpack.c.l.b16 %v139
    %v152 = vunpack.c.l.b16 %v140
    %v153 = vpack.c.b16 %v150, %v149
    %v154 = vpack.c.b16 %v152, %v151
    %v158 = vsel %vm74, %v136, 0
    %160 = vmatpush.bf16.msra.mxu0 0
    %161 = vmatpush.bf16.msra.mxu0 0
    %162 = vmatpush.bf16.msra.mxu0 0
    %163 = vmatpush.bf16.msra.mxu0 0
    %164 = vmatpush.bf16.msra.mxu0 0
    %165 = vmatpush.bf16.msra.mxu0 0
    %166 = vmatpush.bf16.msra.mxu0 %v154
    %167 = vmatpush.bf16.msra.mxu0 %v153
    %168 = vmatmul.bf16.gmra.mxu0 %v158
    %v169 = vpop.f32.mrf.mxu0
    %v170 = vadd.f32 %v143, %v169
    %v171 = vpop.f32.mrf.mxu0
    %v172 = vadd.f32 %v143, %v171
    %173 = vdwg.mxu0
    %v174 = vxor.u32 %v170, 2147483648
    %v175 = vxor.u32 %v172, 2147483648
    %v176 = vmul.f32 %v174, 1.442695
    %v177 = vpow.pop %v176
    %v178 = vmul.f32 %v175, 1.442695
    %v179 = vpow.pop %v178
    %v180 = vadd.f32 %v177, 1.0
    %v181 = vadd.f32 %v179, 1.0
    %v182 = vrcp.pop %v180
    %v183 = vmul.f32 %v180, %v182
    %v184 = vsub.f32 1.0, %v183
    %v185 = vmul.f32 %v182, %v184
    %v186 = vadd.f32 %v182, %v185
    %vm187 = vweird.f32 %v180
    %vm188 = vweird.f32 %v182
    %vm189 = vmor %vm187, %vm188
    %v190 = vsel %vm189, %v182, %v186
    %v191 = vand.u32 2147483647, %v180
    %vm192 = vcmp.eq.f32.partialorder %v191, 8.507059e+37
    %v193 = vand.u32 %v180, 2147483648
    %v194 = vor.u32 1.1754944e-38, %v193
    %v195 = vsel %vm192, %v194, %v190
    %v196 = vmul.f32 1.0, %v195
    %v197 = vrcp.pop %v181
    %v198 = vmul.f32 %v181, %v197
    %v199 = vsub.f32 1.0, %v198
    %v200 = vmul.f32 %v197, %v199
    %v201 = vadd.f32 %v197, %v200
    %vm202 = vweird.f32 %v181
    %vm203 = vweird.f32 %v197
    %vm204 = vmor %vm202, %vm203
    %v205 = vsel %vm204, %v197, %v201
    %v206 = vand.u32 2147483647, %v181
    %vm207 = vcmp.eq.f32.partialorder %v206, 8.507059e+37
    %v208 = vand.u32 %v181, 2147483648
    %v209 = vor.u32 1.1754944e-38, %v208
    %v210 = vsel %vm207, %v209, %v205
    %v211 = vmul.f32 1.0, %v210
    %v212 = vmul.f32 %v170, %v196
    %v213 = vmul.f32 %v172, %v211
    %v214 = vpack.c.bf16 %v213, %v212
    %v215 = vld [vmem:[%s5] sm:$0xf]
    %v216 = vld [vmem:[%s5 + $0x4] sm:$0xf]
    %v217 = vld [vmem:[%s5 + $0x8] sm:$0xf]
    %v218 = vld [vmem:[%s5 + $0xc] sm:$0xf]
    %v219 = vld [vmem:[%s5 + $0x10] sm:$0xf]
    %v220 = vld [vmem:[%s5 + $0x14] sm:$0xf]
    %v221 = vld [vmem:[%s5 + $0x18] sm:$0xf]
    %v222 = vld [vmem:[%s5 + $0x1c] sm:$0xf]
    %v223 = vld [vmem:[#allocation6] sm:$0x1]
    %v225 = vperm.slane %v223, 0
    %v235 = vunpack.c.l.b16 %v215
    %v236 = vunpack.c.l.b16 %v216
    %v237 = vunpack.c.l.b16 %v217
    %v238 = vunpack.c.l.b16 %v218
    %v239 = vunpack.c.l.b16 %v219
    %v240 = vunpack.c.l.b16 %v220
    %v241 = vunpack.c.l.b16 %v221
    %v242 = vunpack.c.l.b16 %v222
    %v243 = vpack.c.b16 %v236, %v235
    %v244 = vpack.c.b16 %v238, %v237
    %v245 = vpack.c.b16 %v240, %v239
    %v246 = vpack.c.b16 %v242, %v241
    %vm251 = vcmask 523264
    %v253 = vsel %vm251, %v214, 0
    %255 = vmatpush.bf16.msra.mxu0 0
    %256 = vmatpush.bf16.msra.mxu0 0
    %257 = vmatpush.bf16.msra.mxu0 0
    %258 = vmatpush.bf16.msra.mxu0 0
    %259 = vmatpush.bf16.msra.mxu0 %v246
    %260 = vmatpush.bf16.msra.mxu0 %v245
    %261 = vmatpush.bf16.msra.mxu0 %v244
    %262 = vmatpush.bf16.msra.mxu0 %v243
    %263 = vmatmul.bf16.gmra.mxu0 %v253
    %v264 = vpop.f32.mrf.mxu0
    %v265 = vadd.f32 %v225, %v264
    %v266 = vpop.f32.mrf.mxu0
    %v267 = vadd.f32 %v225, %v266
    %268 = vdwg.mxu0
    %v269 = vmul.f32 %v265, 0.5
    %v270 = vmul.f32 %v267, 0.5
    %v271 = vadd.f32 %v70, %v269
    %v272 = vadd.f32 %v71, %v270
    %v273 = vpack.c.bf16 %v271, %v271
    %v274 = vpack.c.bf16 %v272, %v272
    %vm275 = vcmask 257024
    %276 = vst.msk [vmem:[%s7] sm:$0xf] %vm275, %v273
    %277 = vst.msk [vmem:[%s7 + $0x4] sm:$0xf] %vm275, %v274
    // Predicated region
    $region42: #{predictor_forward.13} parent=1 // pred_check
      _
    $region43: #{predictor_forward.13} parent=1 // pred_check_branch
      %279 = sbr.rel (0) target = $region45
    $region44: #{predictor_forward.13} parent=1 // pred_region
      _
    $region45: #{predictor_forward.13} parent=1 // pred_fallthru
      _
    // Predicated region
    $region46: #{predictor_forward.13} parent=1 // pred_check
      _
    $region47: #{predictor_forward.13} parent=1 // pred_check_branch
      %281 = sbr.rel (0) target = $region49
    $region48: #{predictor_forward.13} parent=1 // pred_region
      _
    $region49: #{predictor_forward.13} parent=1 // pred_fallthru
      _
    %282 = vsyncpa [#allocation3], 1
    %283 = vsyncpa [#allocation5], 1

// kernel: predictor_forward.16
$region0: #{predictor_forward.16}
  #allocation0 [shape = 'u32[]', space=smem, size = 0x4, offset = 0x4, fixed_abs, tag = 'smem constant byte address 0x4 - core index']
  #allocation1 [shape = 'u32[72,128]{1,0:T(1,128)}', space=vmem, size = 0x9000, scoped, tag = 'internal scratch']
  %s0 = inlined_call_operand.vmem [shape: bf16[16,32], index: 0, kind: input, shape index: {}]
  %s1 = inlined_call_operand.vmem [shape: f32[1,32], index: 1, kind: input, shape index: {}]
  %s2 = inlined_call_operand.vmem [shape: f32[1,32], index: 2, kind: input, shape index: {}]
  %s3 = inlined_call_operand.vmem [shape: bf16[32,64], index: 3, kind: input, shape index: {}]
  %s4 = inlined_call_operand.vmem [shape: f32[1,64], index: 4, kind: input, shape index: {}]
  %s5 = inlined_call_operand.vmem [shape: bf16[64,32], index: 5, kind: input, shape index: {}]
  %s6 = inlined_call_operand.vmem [shape: f32[1,32], index: 6, kind: input, shape index: {}]
  %s7 = inlined_call_operand.vmem [shape: f32[1,32], index: 7, kind: input, shape index: {}]
  %s8 = inlined_call_operand.vmem [shape: f32[1,32], index: 8, kind: input, shape index: {}]
  %s9 = inlined_call_operand.vmem [shape: bf16[16,32], index: 9, kind: output, shape index: {}]
  %s10 = sld [smem:[#allocation0]]
  $region46: #{predictor_forward.16} parent=0
    _
  %s12 = ssub.s32 1, %s10
  %s13 = scalar_select 0, %s12, %s10
  // Predicated region
  $region2: #{predictor_forward.16} parent=0 // pred_check
    _
  $region3: #{predictor_forward.16} parent=0 // pred_check_branch
    %15 = sbr.rel (0) target = $region5
  $region4: #{predictor_forward.16} parent=0 // pred_region
    _
  $region5: #{predictor_forward.16} parent=0 // pred_fallthru
    _
  // Predicated region
  $region6: #{predictor_forward.16} parent=0 // pred_check
    _
  $region7: #{predictor_forward.16} parent=0 // pred_check_branch
    %17 = sbr.rel (0) target = $region9
  $region8: #{predictor_forward.16} parent=0 // pred_region
    _
  $region9: #{predictor_forward.16} parent=0 // pred_fallthru
    _
  // Predicated region
  $region10: #{predictor_forward.16} parent=0 // pred_check
    _
  $region11: #{predictor_forward.16} parent=0 // pred_check_branch
    %19 = sbr.rel (0) target = $region13
  $region12: #{predictor_forward.16} parent=0 // pred_region
    _
  $region13: #{predictor_forward.16} parent=0 // pred_fallthru
    _
  // Predicated region
  $region14: #{predictor_forward.16} parent=0 // pred_check
    _
  $region15: #{predictor_forward.16} parent=0 // pred_check_branch
    %21 = sbr.rel (0) target = $region17
  $region16: #{predictor_forward.16} parent=0 // pred_region
    _
  $region17: #{predictor_forward.16} parent=0 // pred_fallthru
    _
  // Predicated region
  $region18: #{predictor_forward.16} parent=0 // pred_check
    _
  $region19: #{predictor_forward.16} parent=0 // pred_check_branch
    %23 = sbr.rel (0) target = $region21
  $region20: #{predictor_forward.16} parent=0 // pred_region
    _
  $region21: #{predictor_forward.16} parent=0 // pred_fallthru
    _
  // Predicated region
  $region22: #{predictor_forward.16} parent=0 // pred_check
    _
  $region23: #{predictor_forward.16} parent=0 // pred_check_branch
    %25 = sbr.rel (0) target = $region25
  $region24: #{predictor_forward.16} parent=0 // pred_region
    _
  $region25: #{predictor_forward.16} parent=0 // pred_fallthru
    _
  // Predicated region
  $region26: #{predictor_forward.16} parent=0 // pred_check
    _
  $region27: #{predictor_forward.16} parent=0 // pred_check_branch
    %27 = sbr.rel (0) target = $region29
  $region28: #{predictor_forward.16} parent=0 // pred_region
    _
  $region29: #{predictor_forward.16} parent=0 // pred_fallthru
    _
  // Predicated region
  $region30: #{predictor_forward.16} parent=0 // pred_check
    _
  $region31: #{predictor_forward.16} parent=0 // pred_check_branch
    %29 = sbr.rel (0) target = $region33
  $region32: #{predictor_forward.16} parent=0 // pred_region
    _
  $region33: #{predictor_forward.16} parent=0 // pred_fallthru
    _
  // Predicated region
  $region34: #{predictor_forward.16} parent=0 // pred_check
    _
  $region35: #{predictor_forward.16} parent=0 // pred_check_branch
    %31 = sbr.rel (0) target = $region37
  $region36: #{predictor_forward.16} parent=0 // pred_region
    _
  $region37: #{predictor_forward.16} parent=0 // pred_fallthru
    _
  %v33 = vld [vmem:[%s0] sm:$0xf]
  %v34 = vld [vmem:[%s0 + $0x4] sm:$0xf]
  %v35 = vunpack.c.l.bf16 %v33
  %v36 = vunpack.c.l.bf16 %v34
  %v37 = vld [vmem:[%s1] sm:$0x1]
  %v38 = vld [vmem:[%s2] sm:$0x1]
  %vm39 = vcmask 261120
  %v40 = vsel %vm39, %v35, 0.0
  %41 = vadd.xlane.f32.xlu0 %v40
  %v42 = vpop.xlane.xlu0 %41
  %v43 = vsel %vm39, %v36, 0.0
  %44 = vadd.xlane.f32.xlu0 %v43
  %v45 = vpop.xlane.xlu0 %44
  %v46 = vrcp.pop 32.0
  %v47 = vmul.f32 32.0, %v46
  %v48 = vsub.f32 1.0, %v47
  %v49 = vmul.f32 %v46, %v48
  %v50 = vadd.f32 %v46, %v49
  %vm51 = vweird.f32 %v46
  %v52 = vsel %vm51, %v46, %v50
  %v53 = vmul.f32 %v42, %v52
  %v54 = vmul.f32 %v45, %v52
  %v55 = vsub.f32 %v35, %v53
  %v56 = vsub.f32 %v36, %v54
  %v57 = vmul.f32 %v55, %v55
  %v58 = vmul.f32 %v56, %v56
  %v59 = vsel %vm39, %v57, 0.0
  %60 = vadd.xlane.f32.xlu0 %v59
  %v61 = vpop.xlane.xlu0 %60
  %v62 = vsel %vm39, %v58, 0.0
  %63 = vadd.xlane.f32.xlu0 %v62
  %v64 = vpop.xlane.xlu0 %63
  %v65 = vmul.f32 %v61, %v52
  %v66 = vmul.f32 %v64, %v52
  %v67 = vadd.f32 %v65, 1e-05
  %v68 = vadd.f32 %v66, 1e-05
  %v69 = vrsqrt.pop %v67
  %v70 = vmul.f32 %v69, %v67
  %v71 = vmul.f32 %v70, %v69
  %v72 = vmul.f32 0.5, %v71
  %v73 = vsub.f32 1.5, %v72
  %v74 = vmul.f32 %v69, %v73
  %vm75 = vweird.f32 %v67
  %vm76 = vweird.f32 %v69
  %vm77 = vmor %vm75, %vm76
  %v78 = vsel %vm77, %v69, %v74
  %v79 = vrsqrt.pop %v68
  %v80 = vmul.f32 %v79, %v68
  %v81 = vmul.f32 %v80, %v79
  %v82 = vmul.f32 0.5, %v81
  %v83 = vsub.f32 1.5, %v82
  %v84 = vmul.f32 %v79, %v83
  %vm85 = vweird.f32 %v68
  %vm86 = vweird.f32 %v79
  %vm87 = vmor %vm85, %vm86
  %v88 = vsel %vm87, %v79, %v84
  %v89 = vmul.f32 %v55, %v78
  %v90 = vmul.f32 %v56, %v88
  %v92 = vperm.slane %v37, 0
  %v94 = vmul.f32 %v89, %v92
  %v95 = vmul.f32 %v90, %v92
  %v97 = vperm.slane %v38, 0
  %v99 = vadd.f32 %v94, %v97
  %v100 = vadd.f32 %v95, %v97
  %v101 = vpack.c.bf16 %v100, %v99
  %v102 = vld [vmem:[%s3] sm:$0xf]
  %v103 = vld [vmem:[%s3 + $0x4] sm:$0xf]
  %v104 = vld [vmem:[%s3 + $0x8] sm:$0xf]
  %v105 = vld [vmem:[%s3 + $0xc] sm:$0xf]
  %v106 = vld [vmem:[%s4] sm:$0x1]
  %v108 = vperm.slane %v106, 0
  %v114 = vunpack.c.l.b16 %v102
  %v115 = vunpack.c.l.b16 %v103
  %v116 = vunpack.c.l.b16 %v104
  %v117 = vunpack.c.l.b16 %v105
  %v118 = vpack.c.b16 %v115, %v114
  %v119 = vpack.c.b16 %v117, %v116
  %v123 = vsel %vm39, %v101, 0
  %125 = vmatpush.bf16.msra.mxu0 0
  %126 = vmatpush.bf16.msra.mxu0 0
  %127 = vmatpush.bf16.msra.mxu0 0
  %128 = vmatpush.bf16.msra.mxu0 0
  %129 = vmatpush.bf16.msra.mxu0 0
  %130 = vmatpush.bf16.msra.mxu0 0
  %131 = vmatpush.bf16.msra.mxu0 %v119
  %132 = vmatpush.bf16.msra.mxu0 %v118
  %133 = vmatmul.bf16.gmra.mxu0 %v123
  %v134 = vpop.f32.mrf.mxu0
  %v135 = vadd.f32 %v108, %v134
  %v136 = vpop.f32.mrf.mxu0
  %v137 = vadd.f32 %v108, %v136
  %138 = vdwg.mxu0
  %v139 = vxor.u32 %v135, 2147483648
  %v140 = vxor.u32 %v137, 2147483648
  %v141 = vmul.f32 %v139, 1.442695
  %v142 = vpow.pop %v141
  %v143 = vmul.f32 %v140, 1.442695
  %v144 = vpow.pop %v143
  %v145 = vadd.f32 %v142, 1.0
  %v146 = vadd.f32 %v144, 1.0
  %v147 = vrcp.pop %v145
  %v148 = vmul.f32 %v145, %v147
  %v149 = vsub.f32 1.0, %v148
  %v150 = vmul.f32 %v147, %v149
  %v151 = vadd.f32 %v147, %v150
  %vm152 = vweird.f32 %v145
  %vm153 = vweird.f32 %v147
  %vm154 = vmor %vm152, %vm153
  %v155 = vsel %vm154, %v147, %v151
  %v156 = vand.u32 2147483647, %v145
  %vm157 = vcmp.eq.f32.partialorder %v156, 8.507059e+37
  %v158 = vand.u32 %v145, 2147483648
  %v159 = vor.u32 1.1754944e-38, %v158
  %v160 = vsel %vm157, %v159, %v155
  %v161 = vmul.f32 1.0, %v160
  %v162 = vrcp.pop %v146
  %v163 = vmul.f32 %v146, %v162
  %v164 = vsub.f32 1.0, %v163
  %v165 = vmul.f32 %v162, %v164
  %v166 = vadd.f32 %v162, %v165
  %vm167 = vweird.f32 %v146
  %vm168 = vweird.f32 %v162
  %vm169 = vmor %vm167, %vm168
  %v170 = vsel %vm169, %v162, %v166
  %v171 = vand.u32 2147483647, %v146
  %vm172 = vcmp.eq.f32.partialorder %v171, 8.507059e+37
  %v173 = vand.u32 %v146, 2147483648
  %v174 = vor.u32 1.1754944e-38, %v173
  %v175 = vsel %vm172, %v174, %v170
  %v176 = vmul.f32 1.0, %v175
  %v177 = vmul.f32 %v135, %v161
  %v178 = vmul.f32 %v137, %v176
  %v179 = vpack.c.bf16 %v178, %v177
  %v180 = vld [vmem:[%s5] sm:$0xf]
  %v181 = vld [vmem:[%s5 + $0x4] sm:$0xf]
  %v182 = vld [vmem:[%s5 + $0x8] sm:$0xf]
  %v183 = vld [vmem:[%s5 + $0xc] sm:$0xf]
  %v184 = vld [vmem:[%s5 + $0x10] sm:$0xf]
  %v185 = vld [vmem:[%s5 + $0x14] sm:$0xf]
  %v186 = vld [vmem:[%s5 + $0x18] sm:$0xf]
  %v187 = vld [vmem:[%s5 + $0x1c] sm:$0xf]
  %v188 = vld [vmem:[%s6] sm:$0x1]
  %v190 = vperm.slane %v188, 0
  %v200 = vunpack.c.l.b16 %v180
  %v201 = vunpack.c.l.b16 %v181
  %v202 = vunpack.c.l.b16 %v182
  %v203 = vunpack.c.l.b16 %v183
  %v204 = vunpack.c.l.b16 %v184
  %v205 = vunpack.c.l.b16 %v185
  %v206 = vunpack.c.l.b16 %v186
  %v207 = vunpack.c.l.b16 %v187
  %v208 = vpack.c.b16 %v201, %v200
  %v209 = vpack.c.b16 %v203, %v202
  %v210 = vpack.c.b16 %v205, %v204
  %v211 = vpack.c.b16 %v207, %v206
  %vm216 = vcmask 523264
  %v218 = vsel %vm216, %v179, 0
  %220 = vmatpush.bf16.msra.mxu0 0
  %221 = vmatpush.bf16.msra.mxu0 0
  %222 = vmatpush.bf16.msra.mxu0 0
  %223 = vmatpush.bf16.msra.mxu0 0
  %224 = vmatpush.bf16.msra.mxu0 %v211
  %225 = vmatpush.bf16.msra.mxu0 %v210
  %226 = vmatpush.bf16.msra.mxu0 %v209
  %227 = vmatpush.bf16.msra.mxu0 %v208
  %228 = vmatmul.bf16.gmra.mxu0 %v218
  %v229 = vpop.f32.mrf.mxu0
  %v230 = vadd.f32 %v190, %v229
  %v231 = vpop.f32.mrf.mxu0
  %v232 = vadd.f32 %v190, %v231
  %233 = vdwg.mxu0
  %v234 = vmul.f32 %v230, 0.5
  %v235 = vmul.f32 %v232, 0.5
  %v236 = vadd.f32 %v35, %v234
  %v237 = vadd.f32 %v36, %v235
  %v238 = vld [vmem:[%s7] sm:$0x1]
  %v239 = vld [vmem:[%s8] sm:$0x1]
  %v240 = vsel %vm39, %v236, 0.0
  %241 = vadd.xlane.f32.xlu0 %v240
  %v242 = vpop.xlane.xlu0 %241
  %v243 = vsel %vm39, %v237, 0.0
  %244 = vadd.xlane.f32.xlu0 %v243
  %v245 = vpop.xlane.xlu0 %244
  %v246 = vmul.f32 %v242, %v52
  %v247 = vmul.f32 %v245, %v52
  %v248 = vsub.f32 %v236, %v246
  %v249 = vsub.f32 %v237, %v247
  %v250 = vmul.f32 %v248, %v248
  %v251 = vmul.f32 %v249, %v249
  %v252 = vsel %vm39, %v250, 0.0
  %253 = vadd.xlane.f32.xlu0 %v252
  %v254 = vpop.xlane.xlu0 %253
  %v255 = vsel %vm39, %v251, 0.0
  %256 = vadd.xlane.f32.xlu0 %v255
  %v257 = vpop.xlane.xlu0 %256
  %v258 = vmul.f32 %v254, %v52
  %v259 = vmul.f32 %v257, %v52
  %v260 = vadd.f32 %v258, 1e-05
  %v261 = vadd.f32 %v259, 1e-05
  %v262 = vrsqrt.pop %v260
  %v263 = vmul.f32 %v262, %v260
  %v264 = vmul.f32 %v263, %v262
  %v265 = vmul.f32 0.5, %v264
  %v266 = vsub.f32 1.5, %v265
  %v267 = vmul.f32 %v262, %v266
  %vm268 = vweird.f32 %v260
  %vm269 = vweird.f32 %v262
  %vm270 = vmor %vm268, %vm269
  %v271 = vsel %vm270, %v262, %v267
  %v272 = vrsqrt.pop %v261
  %v273 = vmul.f32 %v272, %v261
  %v274 = vmul.f32 %v273, %v272
  %v275 = vmul.f32 0.5, %v274
  %v276 = vsub.f32 1.5, %v275
  %v277 = vmul.f32 %v272, %v276
  %vm278 = vweird.f32 %v261
  %vm279 = vweird.f32 %v272
  %vm280 = vmor %vm278, %vm279
  %v281 = vsel %vm280, %v272, %v277
  %v282 = vmul.f32 %v248, %v271
  %v283 = vmul.f32 %v249, %v281
  %v285 = vperm.slane %v238, 0
  %v287 = vmul.f32 %v282, %v285
  %v288 = vmul.f32 %v283, %v285
  %v290 = vperm.slane %v239, 0
  %v292 = vadd.f32 %v287, %v290
  %v293 = vadd.f32 %v288, %v290
  %v294 = vpack.c.bf16 %v292, %v292
  %v295 = vpack.c.bf16 %v293, %v293
  %vm296 = vcmask 257024
  %297 = vst.msk [vmem:[%s9] sm:$0xf] %vm296, %v294
  %298 = vst.msk [vmem:[%s9 + $0x4] sm:$0xf] %vm296, %v295
  // Predicated region
  $region38: #{predictor_forward.16} parent=0 // pred_check
    _
  $region39: #{predictor_forward.16} parent=0 // pred_check_branch
    %300 = sbr.rel (0) target = $region41
  $region40: #{predictor_forward.16} parent=0 // pred_region
    _
  $region41: #{predictor_forward.16} parent=0 // pred_fallthru
    _
  // Predicated region
  $region42: #{predictor_forward.16} parent=0 // pred_check
    _
  $region43: #{predictor_forward.16} parent=0 // pred_check_branch
    %302 = sbr.rel (0) target = $region45
  $region44: #{predictor_forward.16} parent=0 // pred_region
    _
  $region45: #{predictor_forward.16} parent=0 // pred_fallthru
    _

// kernel: predictor_forward.17
$region0: #{predictor_forward.17}
  #allocation0 [shape = 'u32[]', space=smem, size = 0x4, offset = 0x4, fixed_abs, tag = 'smem constant byte address 0x4 - core index']
  #allocation1 [shape = 'u32[72,128]{1,0:T(1,128)}', space=vmem, size = 0x9000, scoped, tag = 'internal scratch']
  %s0 = inlined_call_operand.vmem [shape: bf16[8,32], index: 0, kind: input, shape index: {}]
  %s1 = inlined_call_operand.vmem [shape: bf16[32,128], index: 1, kind: input, shape index: {}]
  %s2 = inlined_call_operand.vmem [shape: f32[1,128], index: 2, kind: input, shape index: {}]
  %s3 = inlined_call_operand.vmem [shape: f32[8,128], index: 3, kind: output, shape index: {}]
  %s4 = sld [smem:[#allocation0]]
  $region22: #{predictor_forward.17} parent=0
    _
  %s6 = ssub.s32 1, %s4
  %s7 = scalar_select 0, %s6, %s4
  // Predicated region
  $region2: #{predictor_forward.17} parent=0 // pred_check
    _
  $region3: #{predictor_forward.17} parent=0 // pred_check_branch
    %9 = sbr.rel (0) target = $region5
  $region4: #{predictor_forward.17} parent=0 // pred_region
    _
  $region5: #{predictor_forward.17} parent=0 // pred_fallthru
    _
  // Predicated region
  $region6: #{predictor_forward.17} parent=0 // pred_check
    _
  $region7: #{predictor_forward.17} parent=0 // pred_check_branch
    %11 = sbr.rel (0) target = $region9
  $region8: #{predictor_forward.17} parent=0 // pred_region
    _
  $region9: #{predictor_forward.17} parent=0 // pred_fallthru
    _
  // Predicated region
  $region10: #{predictor_forward.17} parent=0 // pred_check
    _
  $region11: #{predictor_forward.17} parent=0 // pred_check_branch
    %13 = sbr.rel (0) target = $region13
  $region12: #{predictor_forward.17} parent=0 // pred_region
    _
  $region13: #{predictor_forward.17} parent=0 // pred_fallthru
    _
  %v15 = vld [vmem:[%s0] sm:$0xf]
  %v16 = vld [vmem:[%s1] sm:$0xf]
  %v17 = vld [vmem:[%s1 + $0x4] sm:$0xf]
  %v18 = vld [vmem:[%s1 + $0x8] sm:$0xf]
  %v19 = vld [vmem:[%s1 + $0xc] sm:$0xf]
  %v20 = vld [vmem:[%s2] sm:$0x1]
  %v22 = vperm.slane %v20, 0
  %v28 = vunpack.c.l.b16 %v16
  %v29 = vunpack.c.l.b16 %v17
  %v30 = vunpack.c.l.b16 %v18
  %v31 = vunpack.c.l.b16 %v19
  %v32 = vpack.c.b16 %v29, %v28
  %v33 = vpack.c.b16 %v31, %v30
  %vm36 = vcmask 261120
  %v38 = vsel %vm36, %v15, 0
  %40 = vmatpush.bf16.msra.mxu0 0
  %41 = vmatpush.bf16.msra.mxu0 0
  %42 = vmatpush.bf16.msra.mxu0 0
  %43 = vmatpush.bf16.msra.mxu0 0
  %44 = vmatpush.bf16.msra.mxu0 0
  %45 = vmatpush.bf16.msra.mxu0 0
  %46 = vmatpush.bf16.msra.mxu0 %v33
  %47 = vmatpush.bf16.msra.mxu0 %v32
  %48 = vmatmul.bf16.gmra.mxu0 %v38
  %v49 = vpop.f32.mrf.mxu0
  %v50 = vadd.f32 %v22, %v49
  %v51 = vpop.f32.mrf.mxu0
  %52 = vdwg.mxu0
  %53 = vmax.xlane.f32.xlu0 %v50
  %v54 = vpop.xlane.xlu0 %53
  %v55 = vsub.f32 %v50, %v54
  %v56 = vmul.f32 %v55, 1.442695
  %v57 = vpow.pop %v56
  %58 = vadd.xlane.f32.xlu0 %v57
  %v59 = vpop.xlane.xlu0 %58
  %v60 = vrcp.pop %v59
  %v61 = vmul.f32 %v57, %v60
  %62 = vst [vmem:[%s3] sm:$0xff] %v61
  // Predicated region
  $region14: #{predictor_forward.17} parent=0 // pred_check
    _
  $region15: #{predictor_forward.17} parent=0 // pred_check_branch
    %64 = sbr.rel (0) target = $region17
  $region16: #{predictor_forward.17} parent=0 // pred_region
    _
  $region17: #{predictor_forward.17} parent=0 // pred_fallthru
    _
  // Predicated region
  $region18: #{predictor_forward.17} parent=0 // pred_check
    _
  $region19: #{predictor_forward.17} parent=0 // pred_check_branch
    %66 = sbr.rel (0) target = $region21
  $region20: #{predictor_forward.17} parent=0 // pred_region
    _
  $region21: #{predictor_forward.17} parent=0 // pred_fallthru
    _

// kernel: predictor_forward.15
$region0: #{predictor_forward.15}
  #allocation0 [shape = 'u32[]', space=smem, size = 0x4, offset = 0x4, fixed_abs, tag = 'smem constant byte address 0x4 - core index']
  #allocation1 [shape = 'u32[72,128]{1,0:T(1,128)}', space=vmem, size = 0x9000, scoped, tag = 'internal scratch']
  %s0 = inlined_call_operand.vmem [shape: bf16[2,8,32], index: 0, kind: input, shape index: {}]
  %s1 = inlined_call_operand.vmem [shape: f32[1,32], index: 1, kind: input, shape index: {}]
  %s2 = inlined_call_operand.hbm [shape: f32[1,32], index: 2, kind: input, shape index: {}]
  %s3 = inlined_call_operand.vmem [shape: bf16[32,64], index: 3, kind: input, shape index: {}]
  %s4 = inlined_call_operand.vmem [shape: f32[1,64], index: 4, kind: input, shape index: {}]
  %s5 = inlined_call_operand.vmem [shape: f32[3,32], index: 5, kind: input, shape index: {}]
  %s6 = inlined_call_operand.hbm [shape: f32[1,32], index: 6, kind: input, shape index: {}]
  %s7 = inlined_call_operand.hbm [shape: f32[1,32], index: 7, kind: input, shape index: {}]
  %s8 = inlined_call_operand.hbm [shape: bf16[32,32], index: 8, kind: input, shape index: {}]
  %s9 = inlined_call_operand.vmem [shape: f32[1,32], index: 9, kind: input, shape index: {}]
  %s10 = inlined_call_operand.vmem [shape: bf16[2,8,32], index: 10, kind: output, shape index: {}]
  %s11 = sld [smem:[#allocation0]]
  $region89: #{predictor_forward.15} parent=0
    _
  %s13 = ssub.s32 1, %s11
  %s14 = scalar_select 0, %s13, %s11
  $region1: #{predictor_forward.15} parent=0
    #allocation2 [shape = 'u8[512]{0}', space=vmem, size = 0x400, scoped, tag = 'input window, operand 2, single buffered']
    #allocation3 [shape = 's32[2]{0}', space=sflag, size = 0x8, scoped, tag = 'scoped memory for predictor_forward.15']
    #allocation4 [shape = 'u8[512]{0}', space=vmem, size = 0x400, scoped, tag = 'input window, operand 6, single buffered']
    #allocation5 [shape = 's32[1]{0}', space=sflag, size = 0x4, scoped, tag = 'scoped memory for predictor_forward.15']
    #allocation6 [shape = 'u8[512]{0}', space=vmem, size = 0x400, scoped, tag = 'input window, operand 7, single buffered']
    #allocation7 [shape = 'u8[8192]{0}', space=vmem, size = 0x2000, scoped, tag = 'input window, operand 8, single buffered']
    #allocation8 [shape = 's32[1]{0}', space=sflag, size = 0x4, scoped, tag = 'scoped memory for predictor_forward.15']
    %15 = vsyncpa [#allocation3], 0
    %16 = vsyncpa [#allocation5], 0
    %17 = vsyncpa [#allocation8], 0
    loop: start=0, step=1, limit=4
    $region2: #{predictor_forward.15} parent=1 // loop_pre_header
      _
    $region3: #{predictor_forward.15} parent=1 // loop_header
      %s19 = sphi 0, %s23
      %p20 = scmp.ge.s32.totalorder %s19, 4
      %s29 = sphi 0, %s31
      %s32 = sphi 0, %s29
      %s33 = sphi 0, %s32
      %s49 = sphi 0, %s33
      %s53 = sphi 0, %s53
      %s55 = sphi 0, %s53
      %s56 = sphi 0, %s55
      %s70 = sphi 0, %s56
      %s74 = sphi 0, %s74
      %s76 = sphi 0, %s74
      %s77 = sphi 0, %s76
      %s91 = sphi 0, %s77
      %s95 = sphi 0, %s95
      %s97 = sphi 0, %s95
      %s98 = sphi 0, %s97
      %s112 = sphi 0, %s98
      %s116 = sphi 0, %s116
      %s118 = sphi 0, %s116
      %s119 = sphi 0, %s118
      %s133 = sphi 0, %s119
      %s137 = sphi 0, %s137
      %s139 = sphi 0, %s137
      %s140 = sphi 0, %s139
      %s154 = sphi 0, %s140
      %s158 = sphi 0, %s158
      %s160 = sphi 0, %s158
      %s161 = sphi 0, %s160
      %s175 = sphi 0, %s161
      %s179 = sphi 0, %s179
      %s181 = sphi 0, %s179
      %s182 = sphi 0, %s181
      %s196 = sphi 0, %s182
      %s200 = sphi 0, %s200
      %s202 = sphi 0, %s200
      %s203 = sphi 0, %s202
      %s217 = sphi 0, %s203
      %s221 = sphi 0, %s221
      %s223 = sphi 0, %s221
      %s224 = sphi 0, %s223
      %s238 = sphi 0, %s224
      %s244 = sphi 0, %s246
      %s247 = sphi 0, %s244
      %s248 = sphi 0, %s247
      %s264 = sphi 0, %s248
    $region4: #{predictor_forward.15} parent=1 // loop_header_branch
      %22 = sbr.rel (%p20) target = $region8
    $region5: #{predictor_forward.15} parent=1 // loop_body
      %s24 = ssub.s32 %s19, 1
      %s25 = ssub.s32 %s19, 2
      %s26 = sadd.s32 %s19, 1
      %s27 = ssub.s32 %s19, %s26
      %p28 = scmp.eq.s32.totalorder %s27, 0
      %s30 = sadd.s32 %s29, 1
      %s31 = scalar_select %p28, %s29, %s30
      %p34 = pneg %p28
      %p35 = scmp.eq.s32.totalorder %s19, 1
      %p36 = por %p34, %p35
      %p37 = scmp.ne.s32.totalorder %s29, %s32
      %p38 = scmp.eq.s32.totalorder %s19, 0
      %p39 = por %p37, %p38
      %p40 = scmp.ne.s32.totalorder %s29, %s32
      %p41 = scmp.eq.s32.totalorder %s24, 1
      %p42 = por %p40, %p41
      %p43 = scmp.ne.s32.totalorder %s32, %s33
      %p44 = scmp.eq.s32.totalorder %s24, 0
      %p45 = por %p43, %p44
      %p46 = scmp.ne.s32.totalorder %s32, %s33
      %p47 = scmp.eq.s32.totalorder %s25, 1
      %p48 = por %p46, %p47
      %p50 = scmp.ne.s32.totalorder %s33, %s49
      %p51 = scmp.eq.s32.totalorder %s25, 0
      %p52 = por %p50, %p51
      %s54 = sadd.s32 %s53, 1
      %p57 = scmp.eq.s32.totalorder %s19, 1
      %p58 = scmp.ne.s32.totalorder %s53, %s55
      %p59 = scmp.eq.s32.totalorder %s19, 0
      %p60 = por %p58, %p59
      %p61 = scmp.ne.s32.totalorder %s53, %s55
      %p62 = scmp.eq.s32.totalorder %s24, 1
      %p63 = por %p61, %p62
      %p64 = scmp.ne.s32.totalorder %s55, %s56
      %p65 = scmp.eq.s32.totalorder %s24, 0
      %p66 = por %p64, %p65
      %p67 = scmp.ne.s32.totalorder %s55, %s56
      %p68 = scmp.eq.s32.totalorder %s25, 1
      %p69 = por %p67, %p68
      %p71 = scmp.ne.s32.totalorder %s56, %s70
      %p72 = scmp.eq.s32.totalorder %s25, 0
      %p73 = por %p71, %p72
      %s75 = sadd.s32 %s74, 1
      %p78 = scmp.eq.s32.totalorder %s19, 1
      %p79 = scmp.ne.s32.totalorder %s74, %s76
      %p80 = scmp.eq.s32.totalorder %s19, 0
      %p81 = por %p79, %p80
      %p82 = scmp.ne.s32.totalorder %s74, %s76
      %p83 = scmp.eq.s32.totalorder %s24, 1
      %p84 = por %p82, %p83
      %p85 = scmp.ne.s32.totalorder %s76, %s77
      %p86 = scmp.eq.s32.totalorder %s24, 0
      %p87 = por %p85, %p86
      %p88 = scmp.ne.s32.totalorder %s76, %s77
      %p89 = scmp.eq.s32.totalorder %s25, 1
      %p90 = por %p88, %p89
      %p92 = scmp.ne.s32.totalorder %s77, %s91
      %p93 = scmp.eq.s32.totalorder %s25, 0
      %p94 = por %p92, %p93
      %s96 = sadd.s32 %s95, 1
      %p99 = scmp.eq.s32.totalorder %s19, 1
      %p100 = scmp.ne.s32.totalorder %s95, %s97
      %p101 = scmp.eq.s32.totalorder %s19, 0
      %p102 = por %p100, %p101
      %p103 = scmp.ne.s32.totalorder %s95, %s97
      %p104 = scmp.eq.s32.totalorder %s24, 1
      %p105 = por %p103, %p104
      %p106 = scmp.ne.s32.totalorder %s97, %s98
      %p107 = scmp.eq.s32.totalorder %s24, 0
      %p108 = por %p106, %p107
      %p109 = scmp.ne.s32.totalorder %s97, %s98
      %p110 = scmp.eq.s32.totalorder %s25, 1
      %p111 = por %p109, %p110
      %p113 = scmp.ne.s32.totalorder %s98, %s112
      %p114 = scmp.eq.s32.totalorder %s25, 0
      %p115 = por %p113, %p114
      %s117 = sadd.s32 %s116, 1
      %p120 = scmp.eq.s32.totalorder %s19, 1
      %p121 = scmp.ne.s32.totalorder %s116, %s118
      %p122 = scmp.eq.s32.totalorder %s19, 0
      %p123 = por %p121, %p122
      %p124 = scmp.ne.s32.totalorder %s116, %s118
      %p125 = scmp.eq.s32.totalorder %s24, 1
      %p126 = por %p124, %p125
      %p127 = scmp.ne.s32.totalorder %s118, %s119
      %p128 = scmp.eq.s32.totalorder %s24, 0
      %p129 = por %p127, %p128
      %p130 = scmp.ne.s32.totalorder %s118, %s119
      %p131 = scmp.eq.s32.totalorder %s25, 1
      %p132 = por %p130, %p131
      %p134 = scmp.ne.s32.totalorder %s119, %s133
      %p135 = scmp.eq.s32.totalorder %s25, 0
      %p136 = por %p134, %p135
      %s138 = sadd.s32 %s137, 1
      %p141 = scmp.eq.s32.totalorder %s19, 1
      %p142 = scmp.ne.s32.totalorder %s137, %s139
      %p143 = scmp.eq.s32.totalorder %s19, 0
      %p144 = por %p142, %p143
      %p145 = scmp.ne.s32.totalorder %s137, %s139
      %p146 = scmp.eq.s32.totalorder %s24, 1
      %p147 = por %p145, %p146
      %p148 = scmp.ne.s32.totalorder %s139, %s140
      %p149 = scmp.eq.s32.totalorder %s24, 0
      %p150 = por %p148, %p149
      %p151 = scmp.ne.s32.totalorder %s139, %s140
      %p152 = scmp.eq.s32.totalorder %s25, 1
      %p153 = por %p151, %p152
      %p155 = scmp.ne.s32.totalorder %s140, %s154
      %p156 = scmp.eq.s32.totalorder %s25, 0
      %p157 = por %p155, %p156
      %s159 = sadd.s32 %s158, 1
      %p162 = scmp.eq.s32.totalorder %s19, 1
      %p163 = scmp.ne.s32.totalorder %s158, %s160
      %p164 = scmp.eq.s32.totalorder %s19, 0
      %p165 = por %p163, %p164
      %p166 = scmp.ne.s32.totalorder %s158, %s160
      %p167 = scmp.eq.s32.totalorder %s24, 1
      %p168 = por %p166, %p167
      %p169 = scmp.ne.s32.totalorder %s160, %s161
      %p170 = scmp.eq.s32.totalorder %s24, 0
      %p171 = por %p169, %p170
      %p172 = scmp.ne.s32.totalorder %s160, %s161
      %p173 = scmp.eq.s32.totalorder %s25, 1
      %p174 = por %p172, %p173
      %p176 = scmp.ne.s32.totalorder %s161, %s175
      %p177 = scmp.eq.s32.totalorder %s25, 0
      %p178 = por %p176, %p177
      %s180 = sadd.s32 %s179, 1
      %p183 = scmp.eq.s32.totalorder %s19, 1
      %p184 = scmp.ne.s32.totalorder %s179, %s181
      %p185 = scmp.eq.s32.totalorder %s19, 0
      %p186 = por %p184, %p185
      %p187 = scmp.ne.s32.totalorder %s179, %s181
      %p188 = scmp.eq.s32.totalorder %s24, 1
      %p189 = por %p187, %p188
      %p190 = scmp.ne.s32.totalorder %s181, %s182
      %p191 = scmp.eq.s32.totalorder %s24, 0
      %p192 = por %p190, %p191
      %p193 = scmp.ne.s32.totalorder %s181, %s182
      %p194 = scmp.eq.s32.totalorder %s25, 1
      %p195 = por %p193, %p194
      %p197 = scmp.ne.s32.totalorder %s182, %s196
      %p198 = scmp.eq.s32.totalorder %s25, 0
      %p199 = por %p197, %p198
      %s201 = sadd.s32 %s200, 1
      %p204 = scmp.eq.s32.totalorder %s19, 1
      %p205 = scmp.ne.s32.totalorder %s200, %s202
      %p206 = scmp.eq.s32.totalorder %s19, 0
      %p207 = por %p205, %p206
      %p208 = scmp.ne.s32.totalorder %s200, %s202
      %p209 = scmp.eq.s32.totalorder %s24, 1
      %p210 = por %p208, %p209
      %p211 = scmp.ne.s32.totalorder %s202, %s203
      %p212 = scmp.eq.s32.totalorder %s24, 0
      %p213 = por %p211, %p212
      %p214 = scmp.ne.s32.totalorder %s202, %s203
      %p215 = scmp.eq.s32.totalorder %s25, 1
      %p216 = por %p214, %p215
      %p218 = scmp.ne.s32.totalorder %s203, %s217
      %p219 = scmp.eq.s32.totalorder %s25, 0
      %p220 = por %p218, %p219
      %s222 = sadd.s32 %s221, 1
      %p225 = scmp.eq.s32.totalorder %s19, 1
      %p226 = scmp.ne.s32.totalorder %s221, %s223
      %p227 = scmp.eq.s32.totalorder %s19, 0
      %p228 = por %p226, %p227
      %p229 = scmp.ne.s32.totalorder %s221, %s223
      %p230 = scmp.eq.s32.totalorder %s24, 1
      %p231 = por %p229, %p230
      %p232 = scmp.ne.s32.totalorder %s223, %s224
      %p233 = scmp.eq.s32.totalorder %s24, 0
      %p234 = por %p232, %p233
      %p235 = scmp.ne.s32.totalorder %s223, %s224
      %p236 = scmp.eq.s32.totalorder %s25, 1
      %p237 = por %p235, %p236
      %p239 = scmp.ne.s32.totalorder %s224, %s238
      %p240 = scmp.eq.s32.totalorder %s25, 0
      %p241 = por %p239, %p240
      %s242 = ssub.s32 %s19, %s26
      %p243 = scmp.eq.s32.totalorder %s242, 0
      %s245 = sadd.s32 %s244, 1
      %s246 = scalar_select %p243, %s244, %s245
      %p249 = pneg %p243
      %p250 = scmp.eq.s32.totalorder %s19, 1
      %p251 = por %p249, %p250
      %p252 = scmp.ne.s32.totalorder %s244, %s247
      %p253 = scmp.eq.s32.totalorder %s19, 0
      %p254 = por %p252, %p253
      %p255 = scmp.ne.s32.totalorder %s244, %s247
      %p256 = scmp.eq.s32.totalorder %s24, 1
      %p257 = por %p255, %p256
      %p258 = scmp.ne.s32.totalorder %s247, %s248
      %p259 = scmp.eq.s32.totalorder %s24, 0
      %p260 = por %p258, %p259
      %p261 = scmp.ne.s32.totalorder %s247, %s248
      %p262 = scmp.eq.s32.totalorder %s25, 1
      %p263 = por %p261, %p262
      %p265 = scmp.ne.s32.totalorder %s248, %s264
      %p266 = scmp.eq.s32.totalorder %s25, 0
      %p267 = por %p265, %p266
      %p268 = scmp.le.s32.totalorder 1, %s19
      %p269 = scmp.lt.s32.totalorder %s19, 3
      %p270 = pnand %p268, %p269
      %p271 = pneg %p270
      // Predicated region
      $region9: #{predictor_forward.15} parent=5 // pred_check
        _
      $region10: #{predictor_forward.15} parent=5 // pred_check_branch
        %273 = sbr.rel (%p270) target = $region12
      $region11: #{predictor_forward.15} parent=5 // pred_region
        %s274 = ssub.s32 %s19, 1
        // Predicated region
        $region13: #{predictor_forward.15} parent=11 // pred_check
          %p275 = pneg %p66
        $region14: #{predictor_forward.15} parent=11 // pred_check_branch
          %277 = sbr.rel (%p275) target = $region16
        $region15: #{predictor_forward.15} parent=11 // pred_region
          _
        $region16: #{predictor_forward.15} parent=11 // pred_fallthru
          _
        // Predicated region
        $region17: #{predictor_forward.15} parent=11 // pred_check
          %p278 = pneg %p87
        $region18: #{predictor_forward.15} parent=11 // pred_check_branch
          %280 = sbr.rel (%p278) target = $region20
        $region19: #{predictor_forward.15} parent=11 // pred_region
          %282 = vsyncadd [#allocation3], 0
          %s284 = sshll.u32 %s2, 4
          %s285 = int_to_ptr.hbm [resolvable:$true] %s284
          %s286 = sshll.u32 [#allocation2], 4
          %s287 = int_to_ptr.vmem [resolvable:$true] %s286
          %289 = dma.hbm_to_vmem [thread:$0]  %s285, 16, %s287, [#allocation3]
        $region20: #{predictor_forward.15} parent=11 // pred_fallthru
          _
        // Predicated region
        $region21: #{predictor_forward.15} parent=11 // pred_check
          %p290 = pneg %p108
        $region22: #{predictor_forward.15} parent=11 // pred_check_branch
          %292 = sbr.rel (%p290) target = $region24
        $region23: #{predictor_forward.15} parent=11 // pred_region
          _
        $region24: #{predictor_forward.15} parent=11 // pred_fallthru
          _
        // Predicated region
        $region25: #{predictor_forward.15} parent=11 // pred_check
          %p293 = pneg %p129
        $region26: #{predictor_forward.15} parent=11 // pred_check_branch
          %295 = sbr.rel (%p293) target = $region28
        $region27: #{predictor_forward.15} parent=11 // pred_region
          _
        $region28: #{predictor_forward.15} parent=11 // pred_fallthru
          _
        // Predicated region
        $region29: #{predictor_forward.15} parent=11 // pred_check
          %p296 = pneg %p150
        $region30: #{predictor_forward.15} parent=11 // pred_check_branch
          %298 = sbr.rel (%p296) target = $region32
        $region31: #{predictor_forward.15} parent=11 // pred_region
          _
        $region32: #{predictor_forward.15} parent=11 // pred_fallthru
          _
        // Predicated region
        $region33: #{predictor_forward.15} parent=11 // pred_check
          %p299 = pneg %p171
        $region34: #{predictor_forward.15} parent=11 // pred_check_branch
          %301 = sbr.rel (%p299) target = $region36
        $region35: #{predictor_forward.15} parent=11 // pred_region
          %303 = vsyncadd [#allocation5], 0
          %s305 = sshll.u32 %s6, 4
          %s306 = int_to_ptr.hbm [resolvable:$true] %s305
          %s307 = sshll.u32 [#allocation4], 4
          %s308 = int_to_ptr.vmem [resolvable:$true] %s307
          %310 = dma.hbm_to_vmem [thread:$0]  %s306, 16, %s308, [#allocation5]
        $region36: #{predictor_forward.15} parent=11 // pred_fallthru
          _
        // Predicated region
        $region37: #{predictor_forward.15} parent=11 // pred_check
          %p311 = pneg %p192
        $region38: #{predictor_forward.15} parent=11 // pred_check_branch
          %313 = sbr.rel (%p311) target = $region40
        $region39: #{predictor_forward.15} parent=11 // pred_region
          %315 = vsyncadd [#allocation5], 0
          %s317 = sshll.u32 %s7, 4
          %s318 = int_to_ptr.hbm [resolvable:$true] %s317
          %s319 = sshll.u32 [#allocation6], 4
          %s320 = int_to_ptr.vmem [resolvable:$true] %s319
          %322 = dma.hbm_to_vmem [thread:$0]  %s318, 16, %s320, [#allocation5]
        $region40: #{predictor_forward.15} parent=11 // pred_fallthru
          _
        // Predicated region
        $region41: #{predictor_forward.15} parent=11 // pred_check
          %p323 = pneg %p213
        $region42: #{predictor_forward.15} parent=11 // pred_check_branch
          %325 = sbr.rel (%p323) target = $region44
        $region43: #{predictor_forward.15} parent=11 // pred_region
          %327 = vsyncadd [#allocation8], 0
          %s328 = sshll.u32 %s8, 4
          %s329 = int_to_ptr.hbm [resolvable:$true] %s328
          %s330 = sshll.u32 [#allocation7], 4
          %s331 = int_to_ptr.vmem [resolvable:$true] %s330
          %336 = dma.hbm_to_vmem [thread:$0]  %s329, 256, %s331, [#allocation8], 64, 64, 4
        $region44: #{predictor_forward.15} parent=11 // pred_fallthru
          _
        // Predicated region
        $region45: #{predictor_forward.15} parent=11 // pred_check
          %p337 = pneg %p234
        $region46: #{predictor_forward.15} parent=11 // pred_check_branch
          %339 = sbr.rel (%p337) target = $region48
        $region47: #{predictor_forward.15} parent=11 // pred_region
          _
        $region48: #{predictor_forward.15} parent=11 // pred_fallthru
          _
      $region12: #{predictor_forward.15} parent=5 // pred_fallthru
        _
      %p340 = scmp.lt.s32.totalorder %s19, 2
      // Predicated region
      $region49: #{predictor_forward.15} parent=5 // pred_check
        %p341 = pneg %p340
      $region50: #{predictor_forward.15} parent=5 // pred_check_branch
        %343 = sbr.rel (%p341) target = $region52
      $region51: #{predictor_forward.15} parent=5 // pred_region
        // Predicated region
        $region53: #{predictor_forward.15} parent=51 // pred_check
          %p344 = pneg %p39
        $region54: #{predictor_forward.15} parent=51 // pred_check_branch
          %346 = sbr.rel (%p344) target = $region56
        $region55: #{predictor_forward.15} parent=51 // pred_region
          %p347 = scmp.lt.s32.totalorder %s19, 1
          %s348 = scalar_select %p347, %s19, 1
          %s349 = smul.addr %s348, 4
          %s350 = scalar_lea.vmem %s0, %s349
        $region56: #{predictor_forward.15} parent=51 // pred_fallthru
          _
      $region52: #{predictor_forward.15} parent=5 // pred_fallthru
        _
      %p351 = scmp.le.s32.totalorder 1, %s19
      %p352 = scmp.lt.s32.totalorder %s19, 3
      %p353 = pnand %p351, %p352
      %p354 = pneg %p353
      // Predicated region
      $region57: #{predictor_forward.15} parent=5 // pred_check
        _
      $region58: #{predictor_forward.15} parent=5 // pred_check_branch
        %356 = sbr.rel (%p353) target = $region60
      $region59: #{predictor_forward.15} parent=5 // pred_region
        %s357 = ssub.s32 %s19, 1
        // Predicated region
        $region61: #{predictor_forward.15} parent=59 // pred_check
          %p358 = pneg %p87
        $region62: #{predictor_forward.15} parent=59 // pred_check_branch
          %360 = sbr.rel (%p358) target = $region64
        $region63: #{predictor_forward.15} parent=59 // pred_region
          %362 = dma.done [#allocation3], 16
        $region64: #{predictor_forward.15} parent=59 // pred_fallthru
          _
        // Predicated region
        $region65: #{predictor_forward.15} parent=59 // pred_check
          %p363 = pneg %p171
        $region66: #{predictor_forward.15} parent=59 // pred_check_branch
          %365 = sbr.rel (%p363) target = $region68
        $region67: #{predictor_forward.15} parent=59 // pred_region
          %367 = dma.done [#allocation5], 16
        $region68: #{predictor_forward.15} parent=59 // pred_fallthru
          _
        // Predicated region
        $region69: #{predictor_forward.15} parent=59 // pred_check
          %p368 = pneg %p192
        $region70: #{predictor_forward.15} parent=59 // pred_check_branch
          %370 = sbr.rel (%p368) target = $region72
        $region71: #{predictor_forward.15} parent=59 // pred_region
          %372 = dma.done [#allocation5], 16
        $region72: #{predictor_forward.15} parent=59 // pred_fallthru
          _
        // Predicated region
        $region73: #{predictor_forward.15} parent=59 // pred_check
          %p373 = pneg %p213
        $region74: #{predictor_forward.15} parent=59 // pred_check_branch
          %375 = sbr.rel (%p373) target = $region76
        $region75: #{predictor_forward.15} parent=59 // pred_region
          %377 = dma.done [#allocation8], 256
        $region76: #{predictor_forward.15} parent=59 // pred_fallthru
          _
        %p378 = scmp.lt.s32.totalorder %s24, 1
        %s379 = scalar_select %p378, %s24, 1
        %s380 = smul.addr %s379, 4
        %s381 = scalar_lea.vmem %s0, %s380
        %p382 = pneg %p45
        %p383 = pneg %p42
        %p384 = pneg %p66
        %p385 = pneg %p63
        %p386 = pneg %p87
        %p387 = pneg %p84
        %p388 = pneg %p108
        %p389 = pneg %p105
        %p390 = pneg %p129
        %p391 = pneg %p126
        %p392 = pneg %p150
        %p393 = pneg %p147
        %p394 = pneg %p171
        %p395 = pneg %p168
        %p396 = pneg %p192
        %p397 = pneg %p189
        %p398 = pneg %p213
        %p399 = pneg %p210
        %p400 = pneg %p234
        %p401 = pneg %p231
        %p402 = pneg %p260
        %p403 = pneg %p257
        %p404 = scmp.lt.s32.totalorder %s24, 1
        %s405 = scalar_select %p404, %s24, 1
        %s406 = smul.addr %s405, 4
        %s407 = scalar_lea.vmem %s10, %s406
        %p408 = scmp.lt.s32.totalorder %s24, 1
        %s409 = scalar_select %p408, %s24, 1
        %s410 = smul.addr %s409, 4
        %s411 = scalar_lea.vmem %s0, %s410
        %p412 = scmp.lt.s32.totalorder %s24, 1
        %s413 = scalar_select %p412, %s24, 1
        %s414 = smul.addr %s413, 4
        %s415 = scalar_lea.vmem %s10, %s414
        %v417 = vld [vmem:[%s411] sm:$0xf]
        %v418 = vunpack.c.l.bf16 %v417
        %v419 = vld [vmem:[%s1] sm:$0x1]
        %v420 = vld [vmem:[#allocation2] sm:$0x1]
        %vm421 = vcmask 261120
        %v422 = vsel %vm421, %v418, 0.0
        %423 = vadd.xlane.f32.xlu0 %v422
        %v424 = vpop.xlane.xlu0 %423
        %v425 = vrcp.pop 32.0
        %v426 = vmul.f32 32.0, %v425
        %v427 = vsub.f32 1.0, %v426
        %v428 = vmul.f32 %v425, %v427
        %v429 = vadd.f32 %v425, %v428
        %vm430 = vweird.f32 %v425
        %v431 = vsel %vm430, %v425, %v429
        %v432 = vmul.f32 %v424, %v431
        %v433 = vsub.f32 %v418, %v432
        %v434 = vmul.f32 %v433, %v433
        %v435 = vsel %vm421, %v434, 0.0
        %436 = vadd.xlane.f32.xlu0 %v435
        %v437 = vpop.xlane.xlu0 %436
        %v438 = vmul.f32 %v437, %v431
        %v439 = vadd.f32 %v438, 1e-05
        %v440 = vrsqrt.pop %v439
        %v441 = vmul.f32 %v440, %v439
        %v442 = vmul.f32 %v441, %v440
        %v443 = vmul.f32 0.5, %v442
        %v444 = vsub.f32 1.5, %v443
        %v445 = vmul.f32 %v440, %v444
        %vm446 = vweird.f32 %v439
        %vm447 = vweird.f32 %v440
        %vm448 = vmor %vm446, %vm447
        %v449 = vsel %vm448, %v440, %v445
        %v450 = vmul.f32 %v433, %v449
        %v452 = vperm.slane %v419, 0
        %v454 = vmul.f32 %v450, %v452
        %v456 = vperm.slane %v420, 0
        %v458 = vadd.f32 %v454, %v456
        %v459 = vpack.c.bf16 %v458, %v458
        %v460 = vld [vmem:[%s3] sm:$0xf]
        %v461 = vld [vmem:[%s3 + $0x4] sm:$0xf]
        %v462 = vld [vmem:[%s3 + $0x8] sm:$0xf]
        %v463 = vld [vmem:[%s3 + $0xc] sm:$0xf]
        %v464 = vld [vmem:[%s4] sm:$0x1]
        %v466 = vperm.slane %v464, 0
        %v472 = vunpack.c.l.b16 %v460
        %v473 = vunpack.c.l.b16 %v461
        %v474 = vunpack.c.l.b16 %v462
        %v475 = vunpack.c.l.b16 %v463
        %v476 = vpack.c.b16 %v473, %v472
        %v477 = vpack.c.b16 %v475, %v474
        %v481 = vsel %vm421, %v459, 0
        %483 = vmatpush.bf16.msra.mxu0 0
        %484 = vmatpush.bf16.msra.mxu0 0
        %485 = vmatpush.bf16.msra.mxu0 0
        %486 = vmatpush.bf16.msra.mxu0 0
        %487 = vmatpush.bf16.msra.mxu0 0
        %488 = vmatpush.bf16.msra.mxu0 0
        %489 = vmatpush.bf16.msra.mxu0 %v477
        %490 = vmatpush.bf16.msra.mxu0 %v476
        %491 = vmatmul.bf16.gmra.mxu0 %v481
        %v492 = vpop.f32.mrf.mxu0
        %v493 = vadd.f32 %v466, %v492
        %v494 = vpop.f32.mrf.mxu0
        %495 = vdwg.mxu0
        %v496 = vxor.u32 %v493, 2147483648
        %v497 = vmul.f32 %v496, 1.442695
        %v498 = vpow.pop %v497
        %v499 = vadd.f32 %v498, 1.0
        %v500 = vrcp.pop %v499
        %v501 = vmul.f32 %v499, %v500
        %v502 = vsub.f32 1.0, %v501
        %v503 = vmul.f32 %v500, %v502
        %v504 = vadd.f32 %v500, %v503
        %vm505 = vweird.f32 %v499
        %vm506 = vweird.f32 %v500
        %vm507 = vmor %vm505, %vm506
        %v508 = vsel %vm507, %v500, %v504
        %v509 = vand.u32 2147483647, %v499
        %vm510 = vcmp.eq.f32.partialorder %v509, 8.507059e+37
        %v511 = vand.u32 %v499, 2147483648
        %v512 = vor.u32 1.1754944e-38, %v511
        %v513 = vsel %vm510, %v512, %v508
        %v514 = vmul.f32 1.0, %v513
        %516 = vrot.lane.b32.xlu0 %v514, 96
        %v517 = vpop.permute.xlu0 %516
        %v519 = vmul.f32 %v493, %v517
        %v520 = vlaneseq
        %v521 = vshrl.u32 %v520, 7
        %v522 = vrot.slane %v519, 7
        %v523 = vadd.s32 %v521, 4294967295
        %vm524 = vcmp.ge.s32.totalorder %v523, 0
        %vm525 = vcmp.lt.s32.totalorder %v523, 8
        %vm526 = vmand %vm524, %vm525
        %v527 = vsel %vm526, 1, 0
        %v528 = vcvt.s32.f32 %v527
        %v529 = vmul.f32 %v522, %v528
        %v530 = vld [vmem:[%s5] sm:$0x1]
        %v531 = vperm.slane %v530, 0
        %v532 = vmul.f32 %v529, %v531
        %v533 = vadd.f32 %v532, 0.0
        %vm534 = vcmp.ge.s32.totalorder %v521, 0
        %vm535 = vcmp.lt.s32.totalorder %v521, 8
        %vm536 = vmand %vm534, %vm535
        %v537 = vsel %vm536, 1, 0
        %v538 = vcvt.s32.f32 %v537
        %v539 = vmul.f32 %v519, %v538
        %v540 = vld [vmem:[%s5 + $0x1] sm:$0x1]
        %v541 = vperm.slane %v540, 0
        %v542 = vmul.f32 %v539, %v541
        %v543 = vadd.f32 %v533, %v542
        %v544 = vrot.slane %v519, 1
        %v545 = vadd.s32 %v521, 1
        %vm546 = vcmp.ge.s32.totalorder %v545, 0
        %vm547 = vcmp.lt.s32.totalorder %v545, 8
        %vm548 = vmand %vm546, %vm547
        %v549 = vsel %vm548, 1, 0
        %v550 = vcvt.s32.f32 %v549
        %v551 = vmul.f32 %v544, %v550
        %v552 = vld [vmem:[%s5 + $0x2] sm:$0x1]
        %v553 = vperm.slane %v552, 0
        %v554 = vmul.f32 %v551, %v553
        %v555 = vadd.f32 %v543, %v554
        %v556 = vld [vmem:[#allocation4] sm:$0x1]
        %v558 = vperm.slane %v556, 0
        %v560 = vmul.f32 %v555, %v558
        %v561 = vld [vmem:[#allocation6] sm:$0x1]
        %v563 = vperm.slane %v561, 0
        %v565 = vadd.f32 %v560, %v563
        %v566 = vxor.u32 %v565, 2147483648
        %v567 = vmul.f32 %v566, 1.442695
        %v568 = vpow.pop %v567
        %v569 = vadd.f32 %v568, 1.0
        %v570 = vrcp.pop %v569
        %v571 = vmul.f32 %v569, %v570
        %v572 = vsub.f32 1.0, %v571
        %v573 = vmul.f32 %v570, %v572
        %v574 = vadd.f32 %v570, %v573
        %vm575 = vweird.f32 %v569
        %vm576 = vweird.f32 %v570
        %vm577 = vmor %vm575, %vm576
        %v578 = vsel %vm577, %v570, %v574
        %v579 = vand.u32 2147483647, %v569
        %vm580 = vcmp.eq.f32.partialorder %v579, 8.507059e+37
        %v581 = vand.u32 %v569, 2147483648
        %v582 = vor.u32 1.1754944e-38, %v581
        %v583 = vsel %vm580, %v582, %v578
        %v584 = vmul.f32 1.0, %v583
        %v585 = vmul.f32 %v565, %v584
        %v586 = vpack.c.bf16 %v585, %v585
        %v587 = vld [vmem:[#allocation7] sm:$0xf]
        %v588 = vld [vmem:[#allocation7 + $0x4] sm:$0xf]
        %v589 = vld [vmem:[#allocation7 + $0x8] sm:$0xf]
        %v590 = vld [vmem:[#allocation7 + $0xc] sm:$0xf]
        %v591 = vld [vmem:[%s9] sm:$0x1]
        %v593 = vperm.slane %v591, 0
        %v599 = vunpack.c.l.b16 %v587
        %v600 = vunpack.c.l.b16 %v588
        %v601 = vunpack.c.l.b16 %v589
        %v602 = vunpack.c.l.b16 %v590
        %v603 = vpack.c.b16 %v600, %v599
        %v604 = vpack.c.b16 %v602, %v601
        %v608 = vsel %vm421, %v586, 0
        %610 = vmatpush.bf16.msra.mxu0 0
        %611 = vmatpush.bf16.msra.mxu0 0
        %612 = vmatpush.bf16.msra.mxu0 0
        %613 = vmatpush.bf16.msra.mxu0 0
        %614 = vmatpush.bf16.msra.mxu0 0
        %615 = vmatpush.bf16.msra.mxu0 0
        %616 = vmatpush.bf16.msra.mxu0 %v604
        %617 = vmatpush.bf16.msra.mxu0 %v603
        %618 = vmatmul.bf16.gmra.mxu0 %v608
        %v619 = vpop.f32.mrf.mxu0
        %v620 = vadd.f32 %v593, %v619
        %v621 = vpop.f32.mrf.mxu0
        %622 = vdwg.mxu0
        %v623 = vadd.f32 %v418, %v620
        %v624 = vpack.c.bf16 %v623, %v623
        %vm625 = vcmask 257024
        %626 = vst.msk [vmem:[%s415] sm:$0xf] %vm625, %v624
        %p627 = scmp.lt.s32.totalorder %s24, 1
        %s628 = scalar_select %p627, %s24, 1
        %s629 = smul.addr %s628, 4
        %s630 = scalar_lea.vmem %s10, %s629
        // Predicated region
        $region77: #{predictor_forward.15} parent=59 // pred_check
          %p631 = pneg %p257
        $region78: #{predictor_forward.15} parent=59 // pred_check_branch
          %633 = sbr.rel (%p631) target = $region80
        $region79: #{predictor_forward.15} parent=59 // pred_region
          _
        $region80: #{predictor_forward.15} parent=59 // pred_fallthru
          _
      $region60: #{predictor_forward.15} parent=5 // pred_fallthru
        _
      %p634 = scmp.le.s32.totalorder 2, %s19
      // Predicated region
      $region81: #{predictor_forward.15} parent=5 // pred_check
        %p635 = pneg %p634
      $region82: #{predictor_forward.15} parent=5 // pred_check_branch
        %637 = sbr.rel (%p635) target = $region84
      $region83: #{predictor_forward.15} parent=5 // pred_region
        %s638 = ssub.s32 %s19, 2
        // Predicated region
        $region85: #{predictor_forward.15} parent=83 // pred_check
          %p639 = pneg %p263
        $region86: #{predictor_forward.15} parent=83 // pred_check_branch
          %641 = sbr.rel (%p639) target = $region88
        $region87: #{predictor_forward.15} parent=83 // pred_region
          %p642 = scmp.lt.s32.totalorder %s25, 1
          %s643 = scalar_select %p642, %s25, 1
          %s644 = smul.addr %s643, 4
          %s645 = scalar_lea.vmem %s10, %s644
        $region88: #{predictor_forward.15} parent=83 // pred_fallthru
          _
      $region84: #{predictor_forward.15} parent=5 // pred_fallthru
        _
    $region6: #{predictor_forward.15} parent=1 // loop_footer
      %s23 = sadd.s32 1, %s19
    $region7: #{predictor_forward.15} parent=1 // loop_footer_branch
      %18 = sbr.rel target = $region3
    $region8: #{predictor_forward.15} parent=1 // loop_exit
      _
    %646 = vsyncpa [#allocation3], 1
    %s647 = scalar_lea.sflag [#allocation3], 1
    %648 = vsyncpa %s647, 1
    %649 = vsyncpa [#allocation5], 1
    %650 = vsyncpa [#allocation8], 1

</llo_original>
